<compile_context>
chip_gen: v5e
topology: v5e:2x2
jax: 0.10.0
libtpu: 0.0.40
codegen_flags: <defaults>
</compile_context>

<pallas_src>
import numpy as np
import jax
import jax.numpy as jnp
from jax.experimental import pallas as pl
from jax.experimental.pallas import tpu as pltpu

# ---- hyper-parameters (shapes implied by HoHyGCNGCN.__init__ / forward) ----
DIM_IN = 2
DIM_E_IN = 2
DIM_OUT = 16
WINDOW_LEN = 4          # x_window is unused in forward
LINK_LEN = 3
EMBED_DIM = 8
TIME_DIM = 55           # forward hard-codes dim_in + 55
NODE_NUM = 200          # forward hard-codes size=[200, 39]
EDGE_NUM = 100          # forward hard-codes size=[100, 23]
HYPEREDGE_NUM = 39
HYPERNODE_NUM = 23
BATCH = 2

O2 = DIM_OUT // 2       # 8
O4 = DIM_OUT // 4       # 4
O8 = DIM_OUT // 8       # 2
CIN = DIM_IN + TIME_DIM  # 57
DO2 = EMBED_DIM * O2     # 64
KC = LINK_LEN * CIN      # 171


# --------------------------------------------------------------------------
# Fused kernel: one grid step == one batch element.
# --------------------------------------------------------------------------
def fused_kernel(x_ref, xe_ref, xt_ref,
                 a_ref, embrep_ref, s_ref, wcat_ref, bias_ref,
                 pn_ref, pe_ref, l_ref, inc_ref, pk_ref,
                 out_ref):
    f32 = jnp.float32

    # ---- graph-conv path -------------------------------------------------
    xb = x_ref[0]                                                    # [N, 2]
    # merge_x built in registers (broadcast + concat) -- no 91 KB HBM array.
    mx = jnp.concatenate(
        [xb, jnp.broadcast_to(xt_ref[0], (NODE_NUM, TIME_DIM))], axis=-1)  # [N, 57]

    A = a_ref[...]                                                   # [N, N] (precomputed)
    y1 = jnp.dot(A, mx, preferred_element_type=f32)                  # A   @ mx
    y2 = jnp.dot(A, y1, preferred_element_type=f32)                  # A^2 @ mx

    # One K=171 matmul instead of three K=57 matmuls (one MXU fill/drain).
    ycat = jnp.concatenate([mx, y1, y2], axis=-1)                    # [N, 171]
    G = jnp.dot(ycat, wcat_ref[...], preferred_element_type=f32)     # [N, 64]

    # Lane-dense emb contraction: (emb_rep * G) @ S  (replaces the 8-way
    # sub-vreg lane-slice loop).
    x_gconv = jnp.dot(embrep_ref[...] * G, s_ref[...],
                      preferred_element_type=f32)                    # [N, 8]

    # ---- node-side hypergraph conv (dropout = identity at inference) -------
    wn = pk_ref[0:4, 0:4]                                            # [4, 4]
    bn = pk_ref[4:5, 0:4]                                            # [1, 4]
    n_agg = jnp.dot(pn_ref[...], xb, preferred_element_type=f32)     # [N, 2]
    x_node_hyper = jnp.dot(jnp.concatenate([xb, n_agg], axis=-1), wn,
                           preferred_element_type=f32) + bn          # [N, 4]

    # ---- edge path: enc_edge -> HigherOrderConv -> fused incidence agg -----
    xe = xe_ref[0]                                                   # [E, 2]
    we = pk_ref[0:4, 4:6]                                            # [4, 2]
    be = pk_ref[4:5, 4:6]                                            # [1, 2]
    e_agg = jnp.dot(pe_ref[...], xe, preferred_element_type=f32)     # [E, 2]
    x_edge_hyper = jnp.dot(jnp.concatenate([xe, e_agg], axis=-1), we,
                           preferred_element_type=f32) + be          # [E, 2]

    wh = pk_ref[0:2, 6:8]                                            # [2, 2]
    bh = pk_ref[4:5, 6:8]                                            # [1, 2]
    hconv = jnp.dot(jnp.dot(l_ref[...], x_edge_hyper, preferred_element_type=f32),
                    wh, preferred_element_type=f32) + bh             # [E, 2]

    eh_cat = jnp.concatenate([x_edge_hyper, hconv], axis=-1)         # [E, 4]
    agg = jnp.dot(inc_ref[...], eh_cat, preferred_element_type=f32)  # [N, 4]

    # ---- assemble + ONE lane-dense store -----------------------------------
    full = jnp.concatenate([x_gconv, x_node_hyper, agg], axis=-1) + bias_ref[...]
    out_ref[0] = full                                                # [N, 16]


# --------------------------------------------------------------------------
# Batch-invariant hypergraph propagation:  P = D_n^-1 H D_e^-1 H^T
# (matches mean-aggregation BiGraphConv; computed once per call by XLA).
# --------------------------------------------------------------------------
def _prop_matrix(H):
    dn = jnp.maximum(H.sum(axis=1, keepdims=True), 1.0)   # [rows, 1]
    de = jnp.maximum(H.sum(axis=0, keepdims=True), 1.0)   # [1, cols]
    return (H / dn) @ (H / de).T                          # [rows, rows]


# --------------------------------------------------------------------------
# Forward wrapper: one pallas_call, grid=(B,) marked "parallel" (v7x gets one
# batch element per TensorCore; on single-TC v5e/v6e the extra grid step is
# ~0.35 us and all constant-index operands are fetched only once).
# --------------------------------------------------------------------------
def hohygcn_forward(params, x, x_e, x_time, x_window, node_embeddings,
                    hodge_laplacian, incidence_matrix, hyper_edge_data, hyper_node_data):
    del x_window  # unused in the reference forward
    B, N, _ = x.shape
    E = x_e.shape[1]

    # --- batch-invariant preamble: computed ONCE per forward by XLA ---------
    emb = node_embeddings
    A = jax.nn.softmax(jnp.maximum(emb @ emb.T, 0.0), axis=1)        # [N, N]
    bias = emb @ params["bias_pool"]                                 # [N, 16]
    emb_rep = jnp.repeat(emb, O2, axis=1)                            # [N, 64]
    S = jnp.tile(jnp.eye(O2, dtype=jnp.float32), (EMBED_DIM, 1))     # [64, 8] (constant)
    P_node = _prop_matrix(hyper_edge_data)                           # [N, N]
    P_edge = _prop_matrix(hyper_node_data)                           # [E, E]

    c2 = lambda b: (0, 0)  # constant block index -> operand DMA'd once

    return pl.pallas_call(
        fused_kernel,
        out_shape=jax.ShapeDtypeStruct((B, N, DIM_OUT), jnp.float32),
        grid=(B,),
        in_specs=[
            pl.BlockSpec((1, N, DIM_IN), lambda b: (b, 0, 0)),       # x
            pl.BlockSpec((1, E, DIM_E_IN), lambda b: (b, 0, 0)),     # x_e
            pl.BlockSpec((1, 1, TIME_DIM), lambda b: (b, 0, 0)),     # x_time
            pl.BlockSpec((N, N), c2),                                # A
            pl.BlockSpec((N, DO2), c2),                              # emb_rep
            pl.BlockSpec((DO2, O2), c2),                             # S (group-sum gather)
            pl.BlockSpec((KC, DO2), c2),                             # wp_cat [171,64]
            pl.BlockSpec((N, DIM_OUT), c2),                          # bias
            pl.BlockSpec((N, N), c2),                                # P_node
            pl.BlockSpec((E, E), c2),                                # P_edge
            pl.BlockSpec((E, E), c2),                                # hodge_laplacian
            pl.BlockSpec((N, E), c2),                                # incidence_matrix
            pl.BlockSpec((8, 8), c2),                                # packed small params
        ],
        out_specs=pl.BlockSpec((1, N, DIM_OUT), lambda b: (b, 0, 0)),
        compiler_params=pltpu.CompilerParams(
            dimension_semantics=("parallel",)),
    )(x, x_e, x_time, A, emb_rep, S, params["wp_cat"], bias,
      P_node, P_edge, hodge_laplacian, incidence_matrix, params["param_pack"])


# --------------------------------------------------------------------------
# Parameter init (deterministic, shapes from HoHyGCNGCN.__init__).
# Kernel-ready derived tensors (weight reorder + small-param pack) are built
# HERE, once, not in the per-call path.
# --------------------------------------------------------------------------
def init_params(key):
    ks = jax.random.split(key, 5)
    p = {
        "weights_pool": 0.1 * jax.random.normal(ks[0], (EMBED_DIM, LINK_LEN, CIN, O2), jnp.float32),
        "bias_pool":    0.1 * jax.random.normal(ks[1], (EMBED_DIM, DIM_OUT), jnp.float32),
        "enc_node_w":   0.1 * jax.random.normal(ks[2], (2 * DIM_IN, O4), jnp.float32),
        "enc_node_b":   jnp.zeros((1, O4), jnp.float32),
        "enc_edge_w":   0.1 * jax.random.normal(ks[3], (2 * DIM_E_IN, O8), jnp.float32),
        "enc_edge_b":   jnp.zeros((1, O8), jnp.float32),
        "hoc_w":        0.1 * jax.random.normal(ks[4], (O8, O8), jnp.float32),
        "hoc_b":        jnp.zeros((1, O8), jnp.float32),
    }
    # wp_cat[k*CIN + c, d*O2 + o] = weights_pool[d, k, c, o]   -> [171, 64]
    p["wp_cat"] = jnp.transpose(p["weights_pool"], (1, 2, 0, 3)).reshape(KC, DO2)
    # Pack the seven tiny tensors into one [8,8] block (static slices in-kernel).
    pk = jnp.zeros((8, 8), jnp.float32)
    pk = pk.at[0:4, 0:4].set(p["enc_node_w"])
    pk = pk.at[4:5, 0:4].set(p["enc_node_b"])
    pk = pk.at[0:4, 4:6].set(p["enc_edge_w"])
    pk = pk.at[4:5, 4:6].set(p["enc_edge_b"])
    pk = pk.at[0:2, 6:8].set(p["hoc_w"])
    pk = pk.at[4:5, 6:8].set(p["hoc_b"])
    p["param_pack"] = pk
    return p


# --------------------------------------------------------------------------
# Pure-JAX reference (mirrors the PyTorch forward) for validation
# --------------------------------------------------------------------------
def reference_forward(params, x, x_e, x_time, node_embeddings, L, inc, He_node, He_edge):
    N = node_embeddings.shape[0]
    A = jax.nn.softmax(jnp.maximum(node_embeddings @ node_embeddings.T, 0.0), axis=1)
    sup = [jnp.eye(N, dtype=jnp.float32), A]
    for k in range(2, LINK_LEN):
        sup.append(A @ sup[k - 1])
    supports = jnp.stack(sup, 0)
    merge_x = jnp.concatenate([x, jnp.broadcast_to(x_time, (x.shape[0], N, TIME_DIM))], -1)
    weights = jnp.einsum('nd,dkio->nkio', node_embeddings, params["weights_pool"])
    bias = node_embeddings @ params["bias_pool"]
    x_g = jnp.einsum('knm,bmc->bknc', supports, merge_x).transpose(0, 2, 1, 3)
    x_gconv = jnp.einsum('bnki,nkio->bno', x_g, weights)

    def bigraph(xb, H, W, b):
        deg_e = jnp.maximum(H.sum(0), 1.0)[:, None]
        e_feat = (H.T @ xb) / deg_e
        deg_n = jnp.maximum(H.sum(1), 1.0)[:, None]
        n_agg = (H @ e_feat) / deg_n
        return jnp.concatenate([xb, n_agg], -1) @ W + b

    x_node_hyper = jax.vmap(lambda xb: bigraph(xb, He_node, params["enc_node_w"], params["enc_node_b"]))(x)
    x_edge_hyper = jax.vmap(lambda xb: bigraph(xb, He_edge, params["enc_edge_w"], params["enc_edge_b"]))(x_e)
    hconv = jax.vmap(lambda xb: (L @ xb) @ params["hoc_w"] + params["hoc_b"])(x_edge_hyper)
    x_e_hh = jnp.concatenate([x_edge_hyper, hconv], -1)
    x_edge_hh_node = jnp.einsum('bom,mn->bon', x_e_hh.transpose(0, 2, 1), inc.T).transpose(0, 2, 1)
    return jnp.concatenate([x_gconv, x_node_hyper, x_edge_hh_node], -1) + bias


if __name__ == "__main__":
    key = jax.random.PRNGKey(0)
    kp, kx, kxe, kt, ke, kl, ki, khe, khn, kw = jax.random.split(key, 10)
    params = init_params(kp)

    x = jax.random.normal(kx, (BATCH, NODE_NUM, DIM_IN), jnp.float32)
    x_e = jax.random.normal(kxe, (BATCH, EDGE_NUM, DIM_E_IN), jnp.float32)
    x_time = jax.random.normal(kt, (BATCH, 1, TIME_DIM), jnp.float32)
    x_window = jax.random.normal(kw, (BATCH, WINDOW_LEN, NODE_NUM, DIM_IN), jnp.float32)  # unused
    node_embeddings = jax.random.normal(ke, (NODE_NUM, EMBED_DIM), jnp.float32)
    hodge_laplacian = 0.1 * jax.random.normal(kl, (EDGE_NUM, EDGE_NUM), jnp.float32)
    incidence_matrix = (jax.random.uniform(ki, (NODE_NUM, EDGE_NUM)) < 0.05).astype(jnp.float32)
    hyper_edge_data = (jax.random.uniform(khe, (NODE_NUM, HYPEREDGE_NUM)) < 0.2).astype(jnp.float32)
    hyper_node_data = (jax.random.uniform(khn, (EDGE_NUM, HYPERNODE_NUM)) < 0.2).astype(jnp.float32)

    fwd = jax.jit(hohygcn_forward)
    out = fwd(params, x, x_e, x_time, x_window, node_embeddings,
              hodge_laplacian, incidence_matrix, hyper_edge_data, hyper_node_data)
    out = jax.block_until_ready(out)
    assert out.shape == (BATCH, NODE_NUM, DIM_OUT), out.shape

    ref = reference_forward(params, x, x_e, x_time, node_embeddings, hodge_laplacian,
                            incidence_matrix, hyper_edge_data, hyper_node_data)
    # Tolerance kept at 2e-2: kernel (Mosaic) and reference (XLA) both run f32
    # matmuls at TPU default (bf16-pass) MXU precision with different (but
    # mathematically equivalent) op orderings, so the residual difference is
    # precision-mode noise, not logic.
    np.testing.assert_allclose(np.asarray(out), np.asarray(ref), rtol=2e-2, atol=2e-2)
    print("KERNEL_OK")
</pallas_src>

<mosaic_0001>
module attributes {stable_mosaic.version = 11 : i64} {
  func.func @fused_kernel(%arg0: i32, %arg1: memref<1x200x2xf32, #tpu.memory_space<vmem>>, %arg2: memref<1x100x2xf32, #tpu.memory_space<vmem>>, %arg3: memref<1x1x55xf32, #tpu.memory_space<vmem>>, %arg4: memref<200x200xf32, #tpu.memory_space<vmem>>, %arg5: memref<200x64xf32, #tpu.memory_space<vmem>>, %arg6: memref<64x8xf32, #tpu.memory_space<vmem>>, %arg7: memref<171x64xf32, #tpu.memory_space<vmem>>, %arg8: memref<200x16xf32, #tpu.memory_space<vmem>>, %arg9: memref<200x200xf32, #tpu.memory_space<vmem>>, %arg10: memref<100x100xf32, #tpu.memory_space<vmem>>, %arg11: memref<100x100xf32, #tpu.memory_space<vmem>>, %arg12: memref<200x100xf32, #tpu.memory_space<vmem>>, %arg13: memref<8x8xf32, #tpu.memory_space<vmem>>, %arg14: memref<1x200x16xf32, #tpu.memory_space<vmem>>) attributes {dimension_semantics = [#tpu.dimension_semantics<parallel>], iteration_bounds = array<i64: 2>, scalar_prefetch = 0 : i64, scratch_operands = 0 : i64, tpu.core_type = #tpu.core_type<tc>, window_params = [{transform_indices = @transform_0, window_bounds = array<i64: 1, 200, 2>}, {transform_indices = @transform_1, window_bounds = array<i64: 1, 100, 2>}, {transform_indices = @transform_2, window_bounds = array<i64: 1, 1, 55>}, {pipeline_mode = #tpu.pipeline_mode<synchronous>, transform_indices = @transform_3, window_bounds = array<i64: 200, 200>}, {pipeline_mode = #tpu.pipeline_mode<synchronous>, transform_indices = @transform_4, window_bounds = array<i64: 200, 64>}, {pipeline_mode = #tpu.pipeline_mode<synchronous>, transform_indices = @transform_5, window_bounds = array<i64: 64, 8>}, {pipeline_mode = #tpu.pipeline_mode<synchronous>, transform_indices = @transform_6, window_bounds = array<i64: 171, 64>}, {pipeline_mode = #tpu.pipeline_mode<synchronous>, transform_indices = @transform_7, window_bounds = array<i64: 200, 16>}, {pipeline_mode = #tpu.pipeline_mode<synchronous>, transform_indices = @transform_8, window_bounds = array<i64: 200, 200>}, {pipeline_mode = #tpu.pipeline_mode<synchronous>, transform_indices = @transform_9, window_bounds = array<i64: 100, 100>}, {pipeline_mode = #tpu.pipeline_mode<synchronous>, transform_indices = @transform_10, window_bounds = array<i64: 100, 100>}, {pipeline_mode = #tpu.pipeline_mode<synchronous>, transform_indices = @transform_11, window_bounds = array<i64: 200, 100>}, {pipeline_mode = #tpu.pipeline_mode<synchronous>, transform_indices = @transform_12, window_bounds = array<i64: 8, 8>}, {transform_indices = @transform_13, window_bounds = array<i64: 1, 200, 16>}]} {
    %c0 = arith.constant 0 : index
    %c0_0 = arith.constant 0 : index
    %c0_1 = arith.constant 0 : index
    %0 = vector.load %arg1[%c0, %c0_0, %c0_1] : memref<1x200x2xf32, #tpu.memory_space<vmem>>, vector<1x200x2xf32>
    %1 = vector.shape_cast %0 : vector<1x200x2xf32> to vector<200x2xf32>
    %c0_2 = arith.constant 0 : index
    %c0_3 = arith.constant 0 : index
    %c0_4 = arith.constant 0 : index
    %2 = vector.load %arg3[%c0_2, %c0_3, %c0_4] : memref<1x1x55xf32, #tpu.memory_space<vmem>>, vector<1x1x55xf32>
    %3 = vector.shape_cast %2 : vector<1x1x55xf32> to vector<1x55xf32>
    %4 = vector.shape_cast %3 : vector<1x55xf32> to vector<1x55xf32>
    %5 = vector.broadcast %4 : vector<1x55xf32> to vector<200x55xf32>
    %6 = tpu.concatenate %1, %5 in 1 : vector<200x2xf32>, vector<200x55xf32> -> vector<200x57xf32>
    %c0_5 = arith.constant 0 : index
    %c0_6 = arith.constant 0 : index
    %7 = vector.load %arg4[%c0_5, %c0_6] : memref<200x200xf32, #tpu.memory_space<vmem>>, vector<200x200xf32>
    %cst = arith.constant dense<0.000000e+00> : vector<200x57xf32>
    %8 = tpu.matmul %7, %6, %cst {dimension_numbers = #tpu.dot_dimension_numbers<[1], [0], [0], [1], [0, 0, 1, 1], [], []>} : vector<200x200xf32>, vector<200x57xf32>, vector<200x57xf32> -> vector<200x57xf32>
    %cst_7 = arith.constant dense<0.000000e+00> : vector<200x57xf32>
    %9 = tpu.matmul %7, %8, %cst_7 {dimension_numbers = #tpu.dot_dimension_numbers<[1], [0], [0], [1], [0, 0, 1, 1], [], []>} : vector<200x200xf32>, vector<200x57xf32>, vector<200x57xf32> -> vector<200x57xf32>
    %10 = tpu.concatenate %6, %8, %9 in 1 : vector<200x57xf32>, vector<200x57xf32>, vector<200x57xf32> -> vector<200x171xf32>
    %c0_8 = arith.constant 0 : index
    %c0_9 = arith.constant 0 : index
    %11 = vector.load %arg7[%c0_8, %c0_9] : memref<171x64xf32, #tpu.memory_space<vmem>>, vector<171x64xf32>
    %cst_10 = arith.constant dense<0.000000e+00> : vector<200x64xf32>
    %12 = tpu.matmul %10, %11, %cst_10 {dimension_numbers = #tpu.dot_dimension_numbers<[1], [0], [0], [1], [0, 0, 1, 1], [], []>} : vector<200x171xf32>, vector<171x64xf32>, vector<200x64xf32> -> vector<200x64xf32>
    %c0_11 = arith.constant 0 : index
    %c0_12 = arith.constant 0 : index
    %13 = vector.load %arg5[%c0_11, %c0_12] : memref<200x64xf32, #tpu.memory_space<vmem>>, vector<200x64xf32>
    %14 = arith.mulf %13, %12 : vector<200x64xf32>
    %c0_13 = arith.constant 0 : index
    %c0_14 = arith.constant 0 : index
    %15 = vector.load %arg6[%c0_13, %c0_14] : memref<64x8xf32, #tpu.memory_space<vmem>>, vector<64x8xf32>
    %cst_15 = arith.constant dense<0.000000e+00> : vector<200x8xf32>
    %16 = tpu.matmul %14, %15, %cst_15 {dimension_numbers = #tpu.dot_dimension_numbers<[1], [0], [0], [1], [0, 0, 1, 1], [], []>} : vector<200x64xf32>, vector<64x8xf32>, vector<200x8xf32> -> vector<200x8xf32>
    %c0_16 = arith.constant 0 : index
    %c0_17 = arith.constant 0 : index
    %17 = vector.load %arg13[%c0_16, %c0_17] : memref<8x8xf32, #tpu.memory_space<vmem>>, vector<4x4xf32>
    %c4 = arith.constant 4 : index
    %c0_18 = arith.constant 0 : index
    %18 = vector.load %arg13[%c4, %c0_18] : memref<8x8xf32, #tpu.memory_space<vmem>>, vector<1x4xf32>
    %c0_19 = arith.constant 0 : index
    %c0_20 = arith.constant 0 : index
    %19 = vector.load %arg9[%c0_19, %c0_20] : memref<200x200xf32, #tpu.memory_space<vmem>>, vector<200x200xf32>
    %cst_21 = arith.constant dense<0.000000e+00> : vector<200x2xf32>
    %20 = tpu.matmul %19, %1, %cst_21 {dimension_numbers = #tpu.dot_dimension_numbers<[1], [0], [0], [1], [0, 0, 1, 1], [], []>} : vector<200x200xf32>, vector<200x2xf32>, vector<200x2xf32> -> vector<200x2xf32>
    %21 = tpu.concatenate %1, %20 in 1 : vector<200x2xf32>, vector<200x2xf32> -> vector<200x4xf32>
    %cst_22 = arith.constant dense<0.000000e+00> : vector<200x4xf32>
    %22 = tpu.matmul %21, %17, %cst_22 {dimension_numbers = #tpu.dot_dimension_numbers<[1], [0], [0], [1], [0, 0, 1, 1], [], []>} : vector<200x4xf32>, vector<4x4xf32>, vector<200x4xf32> -> vector<200x4xf32>
    %23 = vector.broadcast %18 : vector<1x4xf32> to vector<200x4xf32>
    %24 = arith.addf %22, %23 : vector<200x4xf32>
    %c0_23 = arith.constant 0 : index
    %c0_24 = arith.constant 0 : index
    %c0_25 = arith.constant 0 : index
    %25 = vector.load %arg2[%c0_23, %c0_24, %c0_25] : memref<1x100x2xf32, #tpu.memory_space<vmem>>, vector<1x100x2xf32>
    %26 = vector.shape_cast %25 : vector<1x100x2xf32> to vector<100x2xf32>
    %c0_26 = arith.constant 0 : index
    %c4_27 = arith.constant 4 : index
    %27 = vector.load %arg13[%c0_26, %c4_27] : memref<8x8xf32, #tpu.memory_space<vmem>>, vector<4x2xf32>
    %c4_28 = arith.constant 4 : index
    %c4_29 = arith.constant 4 : index
    %28 = vector.load %arg13[%c4_28, %c4_29] : memref<8x8xf32, #tpu.memory_space<vmem>>, vector<1x2xf32>
    %c0_30 = arith.constant 0 : index
    %c0_31 = arith.constant 0 : index
    %29 = vector.load %arg10[%c0_30, %c0_31] : memref<100x100xf32, #tpu.memory_space<vmem>>, vector<100x100xf32>
    %cst_32 = arith.constant dense<0.000000e+00> : vector<100x2xf32>
    %30 = tpu.matmul %29, %26, %cst_32 {dimension_numbers = #tpu.dot_dimension_numbers<[1], [0], [0], [1], [0, 0, 1, 1], [], []>} : vector<100x100xf32>, vector<100x2xf32>, vector<100x2xf32> -> vector<100x2xf32>
    %31 = tpu.concatenate %26, %30 in 1 : vector<100x2xf32>, vector<100x2xf32> -> vector<100x4xf32>
    %cst_33 = arith.constant dense<0.000000e+00> : vector<100x2xf32>
    %32 = tpu.matmul %31, %27, %cst_33 {dimension_numbers = #tpu.dot_dimension_numbers<[1], [0], [0], [1], [0, 0, 1, 1], [], []>} : vector<100x4xf32>, vector<4x2xf32>, vector<100x2xf32> -> vector<100x2xf32>
    %33 = vector.broadcast %28 : vector<1x2xf32> to vector<100x2xf32>
    %34 = arith.addf %32, %33 : vector<100x2xf32>
    %c0_34 = arith.constant 0 : index
    %c6 = arith.constant 6 : index
    %35 = vector.load %arg13[%c0_34, %c6] : memref<8x8xf32, #tpu.memory_space<vmem>>, vector<2x2xf32>
    %c4_35 = arith.constant 4 : index
    %c6_36 = arith.constant 6 : index
    %36 = vector.load %arg13[%c4_35, %c6_36] : memref<8x8xf32, #tpu.memory_space<vmem>>, vector<1x2xf32>
    %c0_37 = arith.constant 0 : index
    %c0_38 = arith.constant 0 : index
    %37 = vector.load %arg11[%c0_37, %c0_38] : memref<100x100xf32, #tpu.memory_space<vmem>>, vector<100x100xf32>
    %cst_39 = arith.constant dense<0.000000e+00> : vector<100x2xf32>
    %38 = tpu.matmul %37, %34, %cst_39 {dimension_numbers = #tpu.dot_dimension_numbers<[1], [0], [0], [1], [0, 0, 1, 1], [], []>} : vector<100x100xf32>, vector<100x2xf32>, vector<100x2xf32> -> vector<100x2xf32>
    %cst_40 = arith.constant dense<0.000000e+00> : vector<100x2xf32>
    %39 = tpu.matmul %38, %35, %cst_40 {dimension_numbers = #tpu.dot_dimension_numbers<[1], [0], [0], [1], [0, 0, 1, 1], [], []>} : vector<100x2xf32>, vector<2x2xf32>, vector<100x2xf32> -> vector<100x2xf32>
    %40 = vector.broadcast %36 : vector<1x2xf32> to vector<100x2xf32>
    %41 = arith.addf %39, %40 : vector<100x2xf32>
    %42 = tpu.concatenate %34, %41 in 1 : vector<100x2xf32>, vector<100x2xf32> -> vector<100x4xf32>
    %c0_41 = arith.constant 0 : index
    %c0_42 = arith.constant 0 : index
    %43 = vector.load %arg12[%c0_41, %c0_42] : memref<200x100xf32, #tpu.memory_space<vmem>>, vector<200x100xf32>
    %cst_43 = arith.constant dense<0.000000e+00> : vector<200x4xf32>
    %44 = tpu.matmul %43, %42, %cst_43 {dimension_numbers = #tpu.dot_dimension_numbers<[1], [0], [0], [1], [0, 0, 1, 1], [], []>} : vector<200x100xf32>, vector<100x4xf32>, vector<200x4xf32> -> vector<200x4xf32>
    %45 = tpu.concatenate %16, %24, %44 in 1 : vector<200x8xf32>, vector<200x4xf32>, vector<200x4xf32> -> vector<200x16xf32>
    %c0_44 = arith.constant 0 : index
    %c0_45 = arith.constant 0 : index
    %46 = vector.load %arg8[%c0_44, %c0_45] : memref<200x16xf32, #tpu.memory_space<vmem>>, vector<200x16xf32>
    %47 = arith.addf %45, %46 : vector<200x16xf32>
    %c0_46 = arith.constant 0 : index
    %c0_47 = arith.constant 0 : index
    %c0_48 = arith.constant 0 : index
    %48 = vector.load %arg14[%c0_46, %c0_47, %c0_48] : memref<1x200x16xf32, #tpu.memory_space<vmem>>, vector<1x200x16xf32>
    %49 = vector.shape_cast %48 : vector<1x200x16xf32> to vector<200x16xf32>
    %50 = vector.shape_cast %47 : vector<200x16xf32> to vector<1x200x16xf32>
    tpu.vector_store %arg14[%c0_46, %c0_47, %c0_48], %50 {strides = array<i32>} : memref<1x200x16xf32, #tpu.memory_space<vmem>>, vector<1x200x16xf32>,
    return
  }
  func.func @transform_0(%arg0: i32) -> (i32, i32, i32) {
    %c0_i32 = arith.constant 0 : i32
    %c0_i32_0 = arith.constant 0 : i32
    %c0_i32_1 = arith.constant 0 : i32
    return %arg0, %c0_i32, %c0_i32_0 : i32, i32, i32
  }
  func.func @transform_1(%arg0: i32) -> (i32, i32, i32) {
    %c0_i32 = arith.constant 0 : i32
    %c0_i32_0 = arith.constant 0 : i32
    %c0_i32_1 = arith.constant 0 : i32
    return %arg0, %c0_i32, %c0_i32_0 : i32, i32, i32
  }
  func.func @transform_2(%arg0: i32) -> (i32, i32, i32) {
    %c0_i32 = arith.constant 0 : i32
    %c0_i32_0 = arith.constant 0 : i32
    %c0_i32_1 = arith.constant 0 : i32
    return %arg0, %c0_i32, %c0_i32_0 : i32, i32, i32
  }
  func.func @transform_3(%arg0: i32) -> (i32, i32) {
    %c0_i32 = arith.constant 0 : i32
    %c0_i32_0 = arith.constant 0 : i32
    %c0_i32_1 = arith.constant 0 : i32
    return %c0_i32, %c0_i32_0 : i32, i32
  }
  func.func @transform_4(%arg0: i32) -> (i32, i32) {
    %c0_i32 = arith.constant 0 : i32
    %c0_i32_0 = arith.constant 0 : i32
    %c0_i32_1 = arith.constant 0 : i32
    return %c0_i32, %c0_i32_0 : i32, i32
  }
  func.func @transform_5(%arg0: i32) -> (i32, i32) {
    %c0_i32 = arith.constant 0 : i32
    %c0_i32_0 = arith.constant 0 : i32
    %c0_i32_1 = arith.constant 0 : i32
    return %c0_i32, %c0_i32_0 : i32, i32
  }
  func.func @transform_6(%arg0: i32) -> (i32, i32) {
    %c0_i32 = arith.constant 0 : i32
    %c0_i32_0 = arith.constant 0 : i32
    %c0_i32_1 = arith.constant 0 : i32
    return %c0_i32, %c0_i32_0 : i32, i32
  }
  func.func @transform_7(%arg0: i32) -> (i32, i32) {
    %c0_i32 = arith.constant 0 : i32
    %c0_i32_0 = arith.constant 0 : i32
    %c0_i32_1 = arith.constant 0 : i32
    return %c0_i32, %c0_i32_0 : i32, i32
  }
  func.func @transform_8(%arg0: i32) -> (i32, i32) {
    %c0_i32 = arith.constant 0 : i32
    %c0_i32_0 = arith.constant 0 : i32
    %c0_i32_1 = arith.constant 0 : i32
    return %c0_i32, %c0_i32_0 : i32, i32
  }
  func.func @transform_9(%arg0: i32) -> (i32, i32) {
    %c0_i32 = arith.constant 0 : i32
    %c0_i32_0 = arith.constant 0 : i32
    %c0_i32_1 = arith.constant 0 : i32
    return %c0_i32, %c0_i32_0 : i32, i32
  }
  func.func @transform_10(%arg0: i32) -> (i32, i32) {
    %c0_i32 = arith.constant 0 : i32
    %c0_i32_0 = arith.constant 0 : i32
    %c0_i32_1 = arith.constant 0 : i32
    return %c0_i32, %c0_i32_0 : i32, i32
  }
  func.func @transform_11(%arg0: i32) -> (i32, i32) {
    %c0_i32 = arith.constant 0 : i32
    %c0_i32_0 = arith.constant 0 : i32
    %c0_i32_1 = arith.constant 0 : i32
    return %c0_i32, %c0_i32_0 : i32, i32
  }
  func.func @transform_12(%arg0: i32) -> (i32, i32) {
    %c0_i32 = arith.constant 0 : i32
    %c0_i32_0 = arith.constant 0 : i32
    %c0_i32_1 = arith.constant 0 : i32
    return %c0_i32, %c0_i32_0 : i32, i32
  }
  func.func @transform_13(%arg0: i32) -> (i32, i32, i32) {
    %c0_i32 = arith.constant 0 : i32
    %c0_i32_0 = arith.constant 0 : i32
    %c0_i32_1 = arith.constant 0 : i32
    return %arg0, %c0_i32, %c0_i32_0 : i32, i32, i32
  }
}

</mosaic_0001>

<llo_original>
// kernel: hohygcn_forward.1
$region0: #{hohygcn_forward.1}
  #allocation0 [shape = 'u32[]', space=smem, size = 0x4, offset = 0x4, fixed_abs, tag = 'smem constant byte address 0x4 - core index']
  #allocation1 [shape = 'u32[72,128]{1,0:T(1,128)}', space=vmem, size = 0x9000, scoped, tag = 'internal scratch']
  %s0 = inlined_call_operand.vmem [shape: f32[2,200,2], index: 0, kind: input, shape index: {}]
  %s1 = inlined_call_operand.vmem [shape: f32[2,100,2], index: 1, kind: input, shape index: {}]
  %s2 = inlined_call_operand.vmem [shape: f32[2,1,55], index: 2, kind: input, shape index: {}]
  %s3 = inlined_call_operand.vmem [shape: f32[200,200], index: 3, kind: input, shape index: {}]
  %s4 = inlined_call_operand.vmem [shape: f32[200,64], index: 4, kind: input, shape index: {}]
  %s5 = inlined_call_operand.vmem [shape: f32[64,8], index: 5, kind: input, shape index: {}]
  %s6 = inlined_call_operand.vmem [shape: f32[171,64], index: 6, kind: input, shape index: {}]
  %s7 = inlined_call_operand.vmem [shape: f32[200,16], index: 7, kind: input, shape index: {}]
  %s8 = inlined_call_operand.vmem [shape: f32[200,200], index: 8, kind: input, shape index: {}]
  %s9 = inlined_call_operand.vmem [shape: f32[100,100], index: 9, kind: input, shape index: {}]
  %s10 = inlined_call_operand.vmem [shape: f32[100,100], index: 10, kind: input, shape index: {}]
  %s11 = inlined_call_operand.vmem [shape: f32[200,100], index: 11, kind: input, shape index: {}]
  %s12 = inlined_call_operand.vmem [shape: f32[8,8], index: 12, kind: input, shape index: {}]
  %s13 = inlined_call_operand.vmem [shape: f32[2,200,16], index: 13, kind: output, shape index: {}]
  %s14 = sld [smem:[#allocation0]]
  $region85: #{hohygcn_forward.1} parent=0
    _
  %s16 = ssub.s32 1, %s14
  %s17 = scalar_select 0, %s16, %s14
  loop: start=0, step=1, limit=4
  $region2: #{hohygcn_forward.1} parent=0 // loop_pre_header
    _
  $region3: #{hohygcn_forward.1} parent=0 // loop_header
    %s19 = sphi 0, %s23
    %p20 = scmp.ge.s32.totalorder %s19, 4
    %s29 = sphi 0, %s31
    %s32 = sphi 0, %s29
    %s33 = sphi 0, %s32
    %s49 = sphi 0, %s33
    %s55 = sphi 0, %s57
    %s58 = sphi 0, %s55
    %s59 = sphi 0, %s58
    %s75 = sphi 0, %s59
    %s81 = sphi 0, %s83
    %s84 = sphi 0, %s81
    %s85 = sphi 0, %s84
    %s101 = sphi 0, %s85
    %s105 = sphi 0, %s105
    %s107 = sphi 0, %s105
    %s108 = sphi 0, %s107
    %s122 = sphi 0, %s108
    %s126 = sphi 0, %s126
    %s128 = sphi 0, %s126
    %s129 = sphi 0, %s128
    %s143 = sphi 0, %s129
    %s147 = sphi 0, %s147
    %s149 = sphi 0, %s147
    %s150 = sphi 0, %s149
    %s164 = sphi 0, %s150
    %s168 = sphi 0, %s168
    %s170 = sphi 0, %s168
    %s171 = sphi 0, %s170
    %s185 = sphi 0, %s171
    %s189 = sphi 0, %s189
    %s191 = sphi 0, %s189
    %s192 = sphi 0, %s191
    %s206 = sphi 0, %s192
    %s210 = sphi 0, %s210
    %s212 = sphi 0, %s210
    %s213 = sphi 0, %s212
    %s227 = sphi 0, %s213
    %s231 = sphi 0, %s231
    %s233 = sphi 0, %s231
    %s234 = sphi 0, %s233
    %s248 = sphi 0, %s234
    %s252 = sphi 0, %s252
    %s254 = sphi 0, %s252
    %s255 = sphi 0, %s254
    %s269 = sphi 0, %s255
    %s273 = sphi 0, %s273
    %s275 = sphi 0, %s273
    %s276 = sphi 0, %s275
    %s290 = sphi 0, %s276
    %s294 = sphi 0, %s294
    %s296 = sphi 0, %s294
    %s297 = sphi 0, %s296
    %s311 = sphi 0, %s297
    %s317 = sphi 0, %s319
    %s320 = sphi 0, %s317
    %s321 = sphi 0, %s320
    %s337 = sphi 0, %s321
  $region4: #{hohygcn_forward.1} parent=0 // loop_header_branch
    %22 = sbr.rel (%p20) target = $region8
  $region5: #{hohygcn_forward.1} parent=0 // loop_body
    %s24 = ssub.s32 %s19, 1
    %s25 = ssub.s32 %s19, 2
    %s26 = sadd.s32 %s19, 1
    %s27 = ssub.s32 %s19, %s26
    %p28 = scmp.eq.s32.totalorder %s27, 0
    %s30 = sadd.s32 %s29, 1
    %s31 = scalar_select %p28, %s29, %s30
    %p34 = pneg %p28
    %p35 = scmp.eq.s32.totalorder %s19, 1
    %p36 = por %p34, %p35
    %p37 = scmp.ne.s32.totalorder %s29, %s32
    %p38 = scmp.eq.s32.totalorder %s19, 0
    %p39 = por %p37, %p38
    %p40 = scmp.ne.s32.totalorder %s29, %s32
    %p41 = scmp.eq.s32.totalorder %s24, 1
    %p42 = por %p40, %p41
    %p43 = scmp.ne.s32.totalorder %s32, %s33
    %p44 = scmp.eq.s32.totalorder %s24, 0
    %p45 = por %p43, %p44
    %p46 = scmp.ne.s32.totalorder %s32, %s33
    %p47 = scmp.eq.s32.totalorder %s25, 1
    %p48 = por %p46, %p47
    %p50 = scmp.ne.s32.totalorder %s33, %s49
    %p51 = scmp.eq.s32.totalorder %s25, 0
    %p52 = por %p50, %p51
    %s53 = ssub.s32 %s19, %s26
    %p54 = scmp.eq.s32.totalorder %s53, 0
    %s56 = sadd.s32 %s55, 1
    %s57 = scalar_select %p54, %s55, %s56
    %p60 = pneg %p54
    %p61 = scmp.eq.s32.totalorder %s19, 1
    %p62 = por %p60, %p61
    %p63 = scmp.ne.s32.totalorder %s55, %s58
    %p64 = scmp.eq.s32.totalorder %s19, 0
    %p65 = por %p63, %p64
    %p66 = scmp.ne.s32.totalorder %s55, %s58
    %p67 = scmp.eq.s32.totalorder %s24, 1
    %p68 = por %p66, %p67
    %p69 = scmp.ne.s32.totalorder %s58, %s59
    %p70 = scmp.eq.s32.totalorder %s24, 0
    %p71 = por %p69, %p70
    %p72 = scmp.ne.s32.totalorder %s58, %s59
    %p73 = scmp.eq.s32.totalorder %s25, 1
    %p74 = por %p72, %p73
    %p76 = scmp.ne.s32.totalorder %s59, %s75
    %p77 = scmp.eq.s32.totalorder %s25, 0
    %p78 = por %p76, %p77
    %s79 = ssub.s32 %s19, %s26
    %p80 = scmp.eq.s32.totalorder %s79, 0
    %s82 = sadd.s32 %s81, 1
    %s83 = scalar_select %p80, %s81, %s82
    %p86 = pneg %p80
    %p87 = scmp.eq.s32.totalorder %s19, 1
    %p88 = por %p86, %p87
    %p89 = scmp.ne.s32.totalorder %s81, %s84
    %p90 = scmp.eq.s32.totalorder %s19, 0
    %p91 = por %p89, %p90
    %p92 = scmp.ne.s32.totalorder %s81, %s84
    %p93 = scmp.eq.s32.totalorder %s24, 1
    %p94 = por %p92, %p93
    %p95 = scmp.ne.s32.totalorder %s84, %s85
    %p96 = scmp.eq.s32.totalorder %s24, 0
    %p97 = por %p95, %p96
    %p98 = scmp.ne.s32.totalorder %s84, %s85
    %p99 = scmp.eq.s32.totalorder %s25, 1
    %p100 = por %p98, %p99
    %p102 = scmp.ne.s32.totalorder %s85, %s101
    %p103 = scmp.eq.s32.totalorder %s25, 0
    %p104 = por %p102, %p103
    %s106 = sadd.s32 %s105, 1
    %p109 = scmp.eq.s32.totalorder %s19, 1
    %p110 = scmp.ne.s32.totalorder %s105, %s107
    %p111 = scmp.eq.s32.totalorder %s19, 0
    %p112 = por %p110, %p111
    %p113 = scmp.ne.s32.totalorder %s105, %s107
    %p114 = scmp.eq.s32.totalorder %s24, 1
    %p115 = por %p113, %p114
    %p116 = scmp.ne.s32.totalorder %s107, %s108
    %p117 = scmp.eq.s32.totalorder %s24, 0
    %p118 = por %p116, %p117
    %p119 = scmp.ne.s32.totalorder %s107, %s108
    %p120 = scmp.eq.s32.totalorder %s25, 1
    %p121 = por %p119, %p120
    %p123 = scmp.ne.s32.totalorder %s108, %s122
    %p124 = scmp.eq.s32.totalorder %s25, 0
    %p125 = por %p123, %p124
    %s127 = sadd.s32 %s126, 1
    %p130 = scmp.eq.s32.totalorder %s19, 1
    %p131 = scmp.ne.s32.totalorder %s126, %s128
    %p132 = scmp.eq.s32.totalorder %s19, 0
    %p133 = por %p131, %p132
    %p134 = scmp.ne.s32.totalorder %s126, %s128
    %p135 = scmp.eq.s32.totalorder %s24, 1
    %p136 = por %p134, %p135
    %p137 = scmp.ne.s32.totalorder %s128, %s129
    %p138 = scmp.eq.s32.totalorder %s24, 0
    %p139 = por %p137, %p138
    %p140 = scmp.ne.s32.totalorder %s128, %s129
    %p141 = scmp.eq.s32.totalorder %s25, 1
    %p142 = por %p140, %p141
    %p144 = scmp.ne.s32.totalorder %s129, %s143
    %p145 = scmp.eq.s32.totalorder %s25, 0
    %p146 = por %p144, %p145
    %s148 = sadd.s32 %s147, 1
    %p151 = scmp.eq.s32.totalorder %s19, 1
    %p152 = scmp.ne.s32.totalorder %s147, %s149
    %p153 = scmp.eq.s32.totalorder %s19, 0
    %p154 = por %p152, %p153
    %p155 = scmp.ne.s32.totalorder %s147, %s149
    %p156 = scmp.eq.s32.totalorder %s24, 1
    %p157 = por %p155, %p156
    %p158 = scmp.ne.s32.totalorder %s149, %s150
    %p159 = scmp.eq.s32.totalorder %s24, 0
    %p160 = por %p158, %p159
    %p161 = scmp.ne.s32.totalorder %s149, %s150
    %p162 = scmp.eq.s32.totalorder %s25, 1
    %p163 = por %p161, %p162
    %p165 = scmp.ne.s32.totalorder %s150, %s164
    %p166 = scmp.eq.s32.totalorder %s25, 0
    %p167 = por %p165, %p166
    %s169 = sadd.s32 %s168, 1
    %p172 = scmp.eq.s32.totalorder %s19, 1
    %p173 = scmp.ne.s32.totalorder %s168, %s170
    %p174 = scmp.eq.s32.totalorder %s19, 0
    %p175 = por %p173, %p174
    %p176 = scmp.ne.s32.totalorder %s168, %s170
    %p177 = scmp.eq.s32.totalorder %s24, 1
    %p178 = por %p176, %p177
    %p179 = scmp.ne.s32.totalorder %s170, %s171
    %p180 = scmp.eq.s32.totalorder %s24, 0
    %p181 = por %p179, %p180
    %p182 = scmp.ne.s32.totalorder %s170, %s171
    %p183 = scmp.eq.s32.totalorder %s25, 1
    %p184 = por %p182, %p183
    %p186 = scmp.ne.s32.totalorder %s171, %s185
    %p187 = scmp.eq.s32.totalorder %s25, 0
    %p188 = por %p186, %p187
    %s190 = sadd.s32 %s189, 1
    %p193 = scmp.eq.s32.totalorder %s19, 1
    %p194 = scmp.ne.s32.totalorder %s189, %s191
    %p195 = scmp.eq.s32.totalorder %s19, 0
    %p196 = por %p194, %p195
    %p197 = scmp.ne.s32.totalorder %s189, %s191
    %p198 = scmp.eq.s32.totalorder %s24, 1
    %p199 = por %p197, %p198
    %p200 = scmp.ne.s32.totalorder %s191, %s192
    %p201 = scmp.eq.s32.totalorder %s24, 0
    %p202 = por %p200, %p201
    %p203 = scmp.ne.s32.totalorder %s191, %s192
    %p204 = scmp.eq.s32.totalorder %s25, 1
    %p205 = por %p203, %p204
    %p207 = scmp.ne.s32.totalorder %s192, %s206
    %p208 = scmp.eq.s32.totalorder %s25, 0
    %p209 = por %p207, %p208
    %s211 = sadd.s32 %s210, 1
    %p214 = scmp.eq.s32.totalorder %s19, 1
    %p215 = scmp.ne.s32.totalorder %s210, %s212
    %p216 = scmp.eq.s32.totalorder %s19, 0
    %p217 = por %p215, %p216
    %p218 = scmp.ne.s32.totalorder %s210, %s212
    %p219 = scmp.eq.s32.totalorder %s24, 1
    %p220 = por %p218, %p219
    %p221 = scmp.ne.s32.totalorder %s212, %s213
    %p222 = scmp.eq.s32.totalorder %s24, 0
    %p223 = por %p221, %p222
    %p224 = scmp.ne.s32.totalorder %s212, %s213
    %p225 = scmp.eq.s32.totalorder %s25, 1
    %p226 = por %p224, %p225
    %p228 = scmp.ne.s32.totalorder %s213, %s227
    %p229 = scmp.eq.s32.totalorder %s25, 0
    %p230 = por %p228, %p229
    %s232 = sadd.s32 %s231, 1
    %p235 = scmp.eq.s32.totalorder %s19, 1
    %p236 = scmp.ne.s32.totalorder %s231, %s233
    %p237 = scmp.eq.s32.totalorder %s19, 0
    %p238 = por %p236, %p237
    %p239 = scmp.ne.s32.totalorder %s231, %s233
    %p240 = scmp.eq.s32.totalorder %s24, 1
    %p241 = por %p239, %p240
    %p242 = scmp.ne.s32.totalorder %s233, %s234
    %p243 = scmp.eq.s32.totalorder %s24, 0
    %p244 = por %p242, %p243
    %p245 = scmp.ne.s32.totalorder %s233, %s234
    %p246 = scmp.eq.s32.totalorder %s25, 1
    %p247 = por %p245, %p246
    %p249 = scmp.ne.s32.totalorder %s234, %s248
    %p250 = scmp.eq.s32.totalorder %s25, 0
    %p251 = por %p249, %p250
    %s253 = sadd.s32 %s252, 1
    %p256 = scmp.eq.s32.totalorder %s19, 1
    %p257 = scmp.ne.s32.totalorder %s252, %s254
    %p258 = scmp.eq.s32.totalorder %s19, 0
    %p259 = por %p257, %p258
    %p260 = scmp.ne.s32.totalorder %s252, %s254
    %p261 = scmp.eq.s32.totalorder %s24, 1
    %p262 = por %p260, %p261
    %p263 = scmp.ne.s32.totalorder %s254, %s255
    %p264 = scmp.eq.s32.totalorder %s24, 0
    %p265 = por %p263, %p264
    %p266 = scmp.ne.s32.totalorder %s254, %s255
    %p267 = scmp.eq.s32.totalorder %s25, 1
    %p268 = por %p266, %p267
    %p270 = scmp.ne.s32.totalorder %s255, %s269
    %p271 = scmp.eq.s32.totalorder %s25, 0
    %p272 = por %p270, %p271
    %s274 = sadd.s32 %s273, 1
    %p277 = scmp.eq.s32.totalorder %s19, 1
    %p278 = scmp.ne.s32.totalorder %s273, %s275
    %p279 = scmp.eq.s32.totalorder %s19, 0
    %p280 = por %p278, %p279
    %p281 = scmp.ne.s32.totalorder %s273, %s275
    %p282 = scmp.eq.s32.totalorder %s24, 1
    %p283 = por %p281, %p282
    %p284 = scmp.ne.s32.totalorder %s275, %s276
    %p285 = scmp.eq.s32.totalorder %s24, 0
    %p286 = por %p284, %p285
    %p287 = scmp.ne.s32.totalorder %s275, %s276
    %p288 = scmp.eq.s32.totalorder %s25, 1
    %p289 = por %p287, %p288
    %p291 = scmp.ne.s32.totalorder %s276, %s290
    %p292 = scmp.eq.s32.totalorder %s25, 0
    %p293 = por %p291, %p292
    %s295 = sadd.s32 %s294, 1
    %p298 = scmp.eq.s32.totalorder %s19, 1
    %p299 = scmp.ne.s32.totalorder %s294, %s296
    %p300 = scmp.eq.s32.totalorder %s19, 0
    %p301 = por %p299, %p300
    %p302 = scmp.ne.s32.totalorder %s294, %s296
    %p303 = scmp.eq.s32.totalorder %s24, 1
    %p304 = por %p302, %p303
    %p305 = scmp.ne.s32.totalorder %s296, %s297
    %p306 = scmp.eq.s32.totalorder %s24, 0
    %p307 = por %p305, %p306
    %p308 = scmp.ne.s32.totalorder %s296, %s297
    %p309 = scmp.eq.s32.totalorder %s25, 1
    %p310 = por %p308, %p309
    %p312 = scmp.ne.s32.totalorder %s297, %s311
    %p313 = scmp.eq.s32.totalorder %s25, 0
    %p314 = por %p312, %p313
    %s315 = ssub.s32 %s19, %s26
    %p316 = scmp.eq.s32.totalorder %s315, 0
    %s318 = sadd.s32 %s317, 1
    %s319 = scalar_select %p316, %s317, %s318
    %p322 = pneg %p316
    %p323 = scmp.eq.s32.totalorder %s19, 1
    %p324 = por %p322, %p323
    %p325 = scmp.ne.s32.totalorder %s317, %s320
    %p326 = scmp.eq.s32.totalorder %s19, 0
    %p327 = por %p325, %p326
    %p328 = scmp.ne.s32.totalorder %s317, %s320
    %p329 = scmp.eq.s32.totalorder %s24, 1
    %p330 = por %p328, %p329
    %p331 = scmp.ne.s32.totalorder %s320, %s321
    %p332 = scmp.eq.s32.totalorder %s24, 0
    %p333 = por %p331, %p332
    %p334 = scmp.ne.s32.totalorder %s320, %s321
    %p335 = scmp.eq.s32.totalorder %s25, 1
    %p336 = por %p334, %p335
    %p338 = scmp.ne.s32.totalorder %s321, %s337
    %p339 = scmp.eq.s32.totalorder %s25, 0
    %p340 = por %p338, %p339
    %p341 = scmp.le.s32.totalorder 1, %s19
    %p342 = scmp.lt.s32.totalorder %s19, 3
    %p343 = pnand %p341, %p342
    %p344 = pneg %p343
    // Predicated region
    $region9: #{hohygcn_forward.1} parent=5 // pred_check
      _
    $region10: #{hohygcn_forward.1} parent=5 // pred_check_branch
      %346 = sbr.rel (%p343) target = $region12
    $region11: #{hohygcn_forward.1} parent=5 // pred_region
      %s347 = ssub.s32 %s19, 1
      // Predicated region
      $region13: #{hohygcn_forward.1} parent=11 // pred_check
        %p348 = pneg %p118
      $region14: #{hohygcn_forward.1} parent=11 // pred_check_branch
        %350 = sbr.rel (%p348) target = $region16
      $region15: #{hohygcn_forward.1} parent=11 // pred_region
        _
      $region16: #{hohygcn_forward.1} parent=11 // pred_fallthru
        _
      // Predicated region
      $region17: #{hohygcn_forward.1} parent=11 // pred_check
        %p351 = pneg %p139
      $region18: #{hohygcn_forward.1} parent=11 // pred_check_branch
        %353 = sbr.rel (%p351) target = $region20
      $region19: #{hohygcn_forward.1} parent=11 // pred_region
        _
      $region20: #{hohygcn_forward.1} parent=11 // pred_fallthru
        _
      // Predicated region
      $region21: #{hohygcn_forward.1} parent=11 // pred_check
        %p354 = pneg %p160
      $region22: #{hohygcn_forward.1} parent=11 // pred_check_branch
        %356 = sbr.rel (%p354) target = $region24
      $region23: #{hohygcn_forward.1} parent=11 // pred_region
        _
      $region24: #{hohygcn_forward.1} parent=11 // pred_fallthru
        _
      // Predicated region
      $region25: #{hohygcn_forward.1} parent=11 // pred_check
        %p357 = pneg %p181
      $region26: #{hohygcn_forward.1} parent=11 // pred_check_branch
        %359 = sbr.rel (%p357) target = $region28
      $region27: #{hohygcn_forward.1} parent=11 // pred_region
        _
      $region28: #{hohygcn_forward.1} parent=11 // pred_fallthru
        _
      // Predicated region
      $region29: #{hohygcn_forward.1} parent=11 // pred_check
        %p360 = pneg %p202
      $region30: #{hohygcn_forward.1} parent=11 // pred_check_branch
        %362 = sbr.rel (%p360) target = $region32
      $region31: #{hohygcn_forward.1} parent=11 // pred_region
        _
      $region32: #{hohygcn_forward.1} parent=11 // pred_fallthru
        _
      // Predicated region
      $region33: #{hohygcn_forward.1} parent=11 // pred_check
        %p363 = pneg %p223
      $region34: #{hohygcn_forward.1} parent=11 // pred_check_branch
        %365 = sbr.rel (%p363) target = $region36
      $region35: #{hohygcn_forward.1} parent=11 // pred_region
        _
      $region36: #{hohygcn_forward.1} parent=11 // pred_fallthru
        _
      // Predicated region
      $region37: #{hohygcn_forward.1} parent=11 // pred_check
        %p366 = pneg %p244
      $region38: #{hohygcn_forward.1} parent=11 // pred_check_branch
        %368 = sbr.rel (%p366) target = $region40
      $region39: #{hohygcn_forward.1} parent=11 // pred_region
        _
      $region40: #{hohygcn_forward.1} parent=11 // pred_fallthru
        _
      // Predicated region
      $region41: #{hohygcn_forward.1} parent=11 // pred_check
        %p369 = pneg %p265
      $region42: #{hohygcn_forward.1} parent=11 // pred_check_branch
        %371 = sbr.rel (%p369) target = $region44
      $region43: #{hohygcn_forward.1} parent=11 // pred_region
        _
      $region44: #{hohygcn_forward.1} parent=11 // pred_fallthru
        _
      // Predicated region
      $region45: #{hohygcn_forward.1} parent=11 // pred_check
        %p372 = pneg %p286
      $region46: #{hohygcn_forward.1} parent=11 // pred_check_branch
        %374 = sbr.rel (%p372) target = $region48
      $region47: #{hohygcn_forward.1} parent=11 // pred_region
        _
      $region48: #{hohygcn_forward.1} parent=11 // pred_fallthru
        _
      // Predicated region
      $region49: #{hohygcn_forward.1} parent=11 // pred_check
        %p375 = pneg %p307
      $region50: #{hohygcn_forward.1} parent=11 // pred_check_branch
        %377 = sbr.rel (%p375) target = $region52
      $region51: #{hohygcn_forward.1} parent=11 // pred_region
        _
      $region52: #{hohygcn_forward.1} parent=11 // pred_fallthru
        _
    $region12: #{hohygcn_forward.1} parent=5 // pred_fallthru
      _
    %p378 = scmp.lt.s32.totalorder %s19, 2
    // Predicated region
    $region53: #{hohygcn_forward.1} parent=5 // pred_check
      %p379 = pneg %p378
    $region54: #{hohygcn_forward.1} parent=5 // pred_check_branch
      %381 = sbr.rel (%p379) target = $region56
    $region55: #{hohygcn_forward.1} parent=5 // pred_region
      // Predicated region
      $region57: #{hohygcn_forward.1} parent=55 // pred_check
        %p382 = pneg %p39
      $region58: #{hohygcn_forward.1} parent=55 // pred_check_branch
        %384 = sbr.rel (%p382) target = $region60
      $region59: #{hohygcn_forward.1} parent=55 // pred_region
        %p385 = scmp.lt.s32.totalorder %s19, 1
        %s386 = scalar_select %p385, %s19, 1
        %s387 = smul.addr %s386, 25
        %s388 = smul.addr %s387, 8
        %s389 = scalar_lea.vmem %s0, %s388
      $region60: #{hohygcn_forward.1} parent=55 // pred_fallthru
        _
      // Predicated region
      $region61: #{hohygcn_forward.1} parent=55 // pred_check
        %p390 = pneg %p65
      $region62: #{hohygcn_forward.1} parent=55 // pred_check_branch
        %392 = sbr.rel (%p390) target = $region64
      $region63: #{hohygcn_forward.1} parent=55 // pred_region
        %p393 = scmp.lt.s32.totalorder %s19, 1
        %s394 = scalar_select %p393, %s19, 1
        %s395 = smul.addr %s394, 13
        %s396 = smul.addr %s395, 8
        %s397 = scalar_lea.vmem %s1, %s396
      $region64: #{hohygcn_forward.1} parent=55 // pred_fallthru
        _
      // Predicated region
      $region65: #{hohygcn_forward.1} parent=55 // pred_check
        %p398 = pneg %p91
      $region66: #{hohygcn_forward.1} parent=55 // pred_check_branch
        %400 = sbr.rel (%p398) target = $region68
      $region67: #{hohygcn_forward.1} parent=55 // pred_region
        %p401 = scmp.lt.s32.totalorder %s19, 1
        %s402 = scalar_select %p401, %s19, 1
        %s403 = scalar_lea.vmem %s2, %s402
      $region68: #{hohygcn_forward.1} parent=55 // pred_fallthru
        _
    $region56: #{hohygcn_forward.1} parent=5 // pred_fallthru
      _
    %p404 = scmp.le.s32.totalorder 1, %s19
    %p405 = scmp.lt.s32.totalorder %s19, 3
    %p406 = pnand %p404, %p405
    %p407 = pneg %p406
    // Predicated region
    $region69: #{hohygcn_forward.1} parent=5 // pred_check
      _
    $region70: #{hohygcn_forward.1} parent=5 // pred_check_branch
      %409 = sbr.rel (%p406) target = $region72
    $region71: #{hohygcn_forward.1} parent=5 // pred_region
      %s410 = ssub.s32 %s19, 1
      %p411 = scmp.lt.s32.totalorder %s24, 1
      %s412 = scalar_select %p411, %s24, 1
      %s413 = smul.addr %s412, 25
      %s414 = smul.addr %s413, 8
      %s415 = scalar_lea.vmem %s0, %s414
      %p416 = pneg %p45
      %p417 = pneg %p42
      %p418 = scmp.lt.s32.totalorder %s24, 1
      %s419 = scalar_select %p418, %s24, 1
      %s420 = smul.addr %s419, 13
      %s421 = smul.addr %s420, 8
      %s422 = scalar_lea.vmem %s1, %s421
      %p423 = pneg %p71
      %p424 = pneg %p68
      %p425 = scmp.lt.s32.totalorder %s24, 1
      %s426 = scalar_select %p425, %s24, 1
      %s427 = scalar_lea.vmem %s2, %s426
      %p428 = pneg %p97
      %p429 = pneg %p94
      %p430 = pneg %p118
      %p431 = pneg %p115
      %p432 = pneg %p139
      %p433 = pneg %p136
      %p434 = pneg %p160
      %p435 = pneg %p157
      %p436 = pneg %p181
      %p437 = pneg %p178
      %p438 = pneg %p202
      %p439 = pneg %p199
      %p440 = pneg %p223
      %p441 = pneg %p220
      %p442 = pneg %p244
      %p443 = pneg %p241
      %p444 = pneg %p265
      %p445 = pneg %p262
      %p446 = pneg %p286
      %p447 = pneg %p283
      %p448 = pneg %p307
      %p449 = pneg %p304
      %p450 = pneg %p333
      %p451 = pneg %p330
      %p452 = scmp.lt.s32.totalorder %s24, 1
      %s453 = scalar_select %p452, %s24, 1
      %s454 = smul.addr %s453, 25
      %s455 = smul.addr %s454, 8
      %s456 = scalar_lea.vmem %s13, %s455
      %p457 = scmp.lt.s32.totalorder %s24, 1
      %s458 = scalar_select %p457, %s24, 1
      %s459 = smul.addr %s458, 25
      %s460 = smul.addr %s459, 8
      %s461 = scalar_lea.vmem %s0, %s460
      %p462 = scmp.lt.s32.totalorder %s24, 1
      %s463 = scalar_select %p462, %s24, 1
      %s464 = smul.addr %s463, 13
      %s465 = smul.addr %s464, 8
      %s466 = scalar_lea.vmem %s1, %s465
      %p467 = scmp.lt.s32.totalorder %s24, 1
      %s468 = scalar_select %p467, %s24, 1
      %s469 = scalar_lea.vmem %s2, %s468
      %p470 = scmp.lt.s32.totalorder %s24, 1
      %s471 = scalar_select %p470, %s24, 1
      %s472 = smul.addr %s471, 25
      %s473 = smul.addr %s472, 8
      %s474 = scalar_lea.vmem %s13, %s473
      %v475 = vld [vmem:[%s461] sm:$0xff]
      %v476 = vld [vmem:[%s461 + $0x8] sm:$0xff]
      %v477 = vld [vmem:[%s461 + $0x10] sm:$0xff]
      %v478 = vld [vmem:[%s461 + $0x18] sm:$0xff]
      %v479 = vld [vmem:[%s461 + $0x20] sm:$0xff]
      %v480 = vld [vmem:[%s461 + $0x28] sm:$0xff]
      %v481 = vld [vmem:[%s461 + $0x30] sm:$0xff]
      %v482 = vld [vmem:[%s461 + $0x38] sm:$0xff]
      %v483 = vld [vmem:[%s461 + $0x40] sm:$0xff]
      %v484 = vld [vmem:[%s461 + $0x48] sm:$0xff]
      %v485 = vld [vmem:[%s461 + $0x50] sm:$0xff]
      %v486 = vld [vmem:[%s461 + $0x58] sm:$0xff]
      %v487 = vld [vmem:[%s461 + $0x60] sm:$0xff]
      %v488 = vld [vmem:[%s461 + $0x68] sm:$0xff]
      %v489 = vld [vmem:[%s461 + $0x70] sm:$0xff]
      %v490 = vld [vmem:[%s461 + $0x78] sm:$0xff]
      %v491 = vld [vmem:[%s461 + $0x80] sm:$0xff]
      %v492 = vld [vmem:[%s461 + $0x88] sm:$0xff]
      %v493 = vld [vmem:[%s461 + $0x90] sm:$0xff]
      %v494 = vld [vmem:[%s461 + $0x98] sm:$0xff]
      %v495 = vld [vmem:[%s461 + $0xa0] sm:$0xff]
      %v496 = vld [vmem:[%s461 + $0xa8] sm:$0xff]
      %v497 = vld [vmem:[%s461 + $0xb0] sm:$0xff]
      %v498 = vld [vmem:[%s461 + $0xb8] sm:$0xff]
      %v499 = vld [vmem:[%s461 + $0xc0] sm:$0xff]
      %v500 = vld [vmem:[%s469] sm:$0x1]
      %v502 = vperm.slane %v500, 0
      %503 = vrot.lane.b32.xlu0 %v502, 2
      %v504 = vpop.permute.xlu0 %503
      %vm506 = vcmask 15360
      %v507 = vsel %vm506, %v475, %v504
      %v508 = vsel %vm506, %v476, %v504
      %v509 = vsel %vm506, %v477, %v504
      %v510 = vsel %vm506, %v478, %v504
      %v511 = vsel %vm506, %v479, %v504
      %v512 = vsel %vm506, %v480, %v504
      %v513 = vsel %vm506, %v481, %v504
      %v514 = vsel %vm506, %v482, %v504
      %v515 = vsel %vm506, %v483, %v504
      %v516 = vsel %vm506, %v484, %v504
      %v517 = vsel %vm506, %v485, %v504
      %v518 = vsel %vm506, %v486, %v504
      %v519 = vsel %vm506, %v487, %v504
      %v520 = vsel %vm506, %v488, %v504
      %v521 = vsel %vm506, %v489, %v504
      %v522 = vsel %vm506, %v490, %v504
      %v523 = vsel %vm506, %v491, %v504
      %v524 = vsel %vm506, %v492, %v504
      %v525 = vsel %vm506, %v493, %v504
      %v526 = vsel %vm506, %v494, %v504
      %v527 = vsel %vm506, %v495, %v504
      %v528 = vsel %vm506, %v496, %v504
      %v529 = vsel %vm506, %v497, %v504
      %v530 = vsel %vm506, %v498, %v504
      %v531 = vsel %vm506, %v499, %v504
      %v532 = vld [vmem:[%s3] sm:$0xff]
      %v533 = vld [vmem:[%s3 + $0x8] sm:$0xff]
      %v534 = vld [vmem:[%s3 + $0x10] sm:$0xff]
      %v535 = vld [vmem:[%s3 + $0x18] sm:$0xff]
      %v536 = vld [vmem:[%s3 + $0x20] sm:$0xff]
      %v537 = vld [vmem:[%s3 + $0x28] sm:$0xff]
      %v538 = vld [vmem:[%s3 + $0x30] sm:$0xff]
      %v539 = vld [vmem:[%s3 + $0x38] sm:$0xff]
      %v540 = vld [vmem:[%s3 + $0x40] sm:$0xff]
      %v541 = vld [vmem:[%s3 + $0x48] sm:$0xff]
      %v542 = vld [vmem:[%s3 + $0x50] sm:$0xff]
      %v543 = vld [vmem:[%s3 + $0x58] sm:$0xff]
      %v544 = vld [vmem:[%s3 + $0x60] sm:$0xff]
      %v545 = vld [vmem:[%s3 + $0x68] sm:$0xff]
      %v546 = vld [vmem:[%s3 + $0x70] sm:$0xff]
      %v547 = vld [vmem:[%s3 + $0x78] sm:$0xff]
      %v548 = vld [vmem:[%s3 + $0x80] sm:$0xff]
      %v549 = vld [vmem:[%s3 + $0x88] sm:$0xff]
      %v550 = vld [vmem:[%s3 + $0x90] sm:$0xff]
      %v551 = vld [vmem:[%s3 + $0x98] sm:$0xff]
      %v552 = vld [vmem:[%s3 + $0xa0] sm:$0xff]
      %v553 = vld [vmem:[%s3 + $0xa8] sm:$0xff]
      %v554 = vld [vmem:[%s3 + $0xb0] sm:$0xff]
      %v555 = vld [vmem:[%s3 + $0xb8] sm:$0xff]
      %v556 = vld [vmem:[%s3 + $0xc0] sm:$0xff]
      %v557 = vld [vmem:[%s3 + $0xc8] sm:$0xff]
      %v558 = vld [vmem:[%s3 + $0xd0] sm:$0xff]
      %v559 = vld [vmem:[%s3 + $0xd8] sm:$0xff]
      %v560 = vld [vmem:[%s3 + $0xe0] sm:$0xff]
      %v561 = vld [vmem:[%s3 + $0xe8] sm:$0xff]
      %v562 = vld [vmem:[%s3 + $0xf0] sm:$0xff]
      %v563 = vld [vmem:[%s3 + $0xf8] sm:$0xff]
      %v564 = vld [vmem:[%s3 + $0x100] sm:$0xff]
      %v565 = vld [vmem:[%s3 + $0x108] sm:$0xff]
      %v566 = vld [vmem:[%s3 + $0x110] sm:$0xff]
      %v567 = vld [vmem:[%s3 + $0x118] sm:$0xff]
      %v568 = vld [vmem:[%s3 + $0x120] sm:$0xff]
      %v569 = vld [vmem:[%s3 + $0x128] sm:$0xff]
      %v570 = vld [vmem:[%s3 + $0x130] sm:$0xff]
      %v571 = vld [vmem:[%s3 + $0x138] sm:$0xff]
      %v572 = vld [vmem:[%s3 + $0x140] sm:$0xff]
      %v573 = vld [vmem:[%s3 + $0x148] sm:$0xff]
      %v574 = vld [vmem:[%s3 + $0x150] sm:$0xff]
      %v575 = vld [vmem:[%s3 + $0x158] sm:$0xff]
      %v576 = vld [vmem:[%s3 + $0x160] sm:$0xff]
      %v577 = vld [vmem:[%s3 + $0x168] sm:$0xff]
      %v578 = vld [vmem:[%s3 + $0x170] sm:$0xff]
      %v579 = vld [vmem:[%s3 + $0x178] sm:$0xff]
      %v580 = vld [vmem:[%s3 + $0x180] sm:$0xff]
      %v581 = vld [vmem:[%s3 + $0x188] sm:$0xff]
      %vm582 = vcmask 588800
      %v584 = vsel %vm582, %v533, 0
      %v587 = vsel %vm582, %v535, 0
      %v590 = vsel %vm582, %v537, 0
      %v593 = vsel %vm582, %v539, 0
      %v596 = vsel %vm582, %v541, 0
      %v599 = vsel %vm582, %v543, 0
      %v602 = vsel %vm582, %v545, 0
      %v605 = vsel %vm582, %v547, 0
      %v608 = vsel %vm582, %v549, 0
      %v611 = vsel %vm582, %v551, 0
      %v614 = vsel %vm582, %v553, 0
      %v617 = vsel %vm582, %v555, 0
      %v620 = vsel %vm582, %v557, 0
      %v623 = vsel %vm582, %v559, 0
      %v626 = vsel %vm582, %v561, 0
      %v629 = vsel %vm582, %v563, 0
      %v632 = vsel %vm582, %v565, 0
      %v635 = vsel %vm582, %v567, 0
      %v638 = vsel %vm582, %v569, 0
      %v641 = vsel %vm582, %v571, 0
      %v644 = vsel %vm582, %v573, 0
      %v647 = vsel %vm582, %v575, 0
      %v650 = vsel %vm582, %v577, 0
      %v653 = vsel %vm582, %v579, 0
      %v656 = vsel %vm582, %v581, 0
      %658 = vmatpush.msra.mxu0 %v522
      %659 = vmatpush.msra.mxu0 %v521
      %660 = vmatpush.msra.mxu0 %v520
      %661 = vmatpush.msra.mxu0 %v519
      %662 = vmatpush.msra.mxu0 %v518
      %663 = vmatpush.msra.mxu0 %v517
      %664 = vmatpush.msra.mxu0 %v516
      %665 = vmatpush.msra.mxu0 %v515
      %666 = vmatpush.msra.mxu0 %v514
      %667 = vmatpush.msra.mxu0 %v513
      %668 = vmatpush.msra.mxu0 %v512
      %669 = vmatpush.msra.mxu0 %v511
      %670 = vmatpush.msra.mxu0 %v510
      %671 = vmatpush.msra.mxu0 %v509
      %672 = vmatpush.msra.mxu0 %v508
      %673 = vmatpush.msra.mxu0 %v507
      %674 = vmatmul.f32.gmra.mxu0 %v532
      %v675 = vpop.f32.mrf.mxu0
      %v676 = vadd.f32 0.0, %v675
      %677 = vmatmul.f32.gmra.mxu0 %v534
      %v678 = vpop.f32.mrf.mxu0
      %v679 = vadd.f32 0.0, %v678
      %680 = vmatmul.f32.gmra.mxu0 %v536
      %v681 = vpop.f32.mrf.mxu0
      %v682 = vadd.f32 0.0, %v681
      %683 = vmatmul.f32.gmra.mxu0 %v538
      %v684 = vpop.f32.mrf.mxu0
      %v685 = vadd.f32 0.0, %v684
      %686 = vmatmul.f32.gmra.mxu0 %v540
      %v687 = vpop.f32.mrf.mxu0
      %v688 = vadd.f32 0.0, %v687
      %689 = vmatmul.f32.gmra.mxu0 %v542
      %v690 = vpop.f32.mrf.mxu0
      %v691 = vadd.f32 0.0, %v690
      %692 = vmatmul.f32.gmra.mxu0 %v544
      %v693 = vpop.f32.mrf.mxu0
      %v694 = vadd.f32 0.0, %v693
      %695 = vmatmul.f32.gmra.mxu0 %v546
      %v696 = vpop.f32.mrf.mxu0
      %v697 = vadd.f32 0.0, %v696
      %698 = vmatmul.f32.gmra.mxu0 %v548
      %v699 = vpop.f32.mrf.mxu0
      %v700 = vadd.f32 0.0, %v699
      %701 = vmatmul.f32.gmra.mxu0 %v550
      %v702 = vpop.f32.mrf.mxu0
      %v703 = vadd.f32 0.0, %v702
      %704 = vmatmul.f32.gmra.mxu0 %v552
      %v705 = vpop.f32.mrf.mxu0
      %v706 = vadd.f32 0.0, %v705
      %707 = vmatmul.f32.gmra.mxu0 %v554
      %v708 = vpop.f32.mrf.mxu0
      %v709 = vadd.f32 0.0, %v708
      %710 = vmatmul.f32.gmra.mxu0 %v556
      %v711 = vpop.f32.mrf.mxu0
      %v712 = vadd.f32 0.0, %v711
      %713 = vmatmul.f32.gmra.mxu0 %v558
      %v714 = vpop.f32.mrf.mxu0
      %v715 = vadd.f32 0.0, %v714
      %716 = vmatmul.f32.gmra.mxu0 %v560
      %v717 = vpop.f32.mrf.mxu0
      %v718 = vadd.f32 0.0, %v717
      %719 = vmatmul.f32.gmra.mxu0 %v562
      %v720 = vpop.f32.mrf.mxu0
      %v721 = vadd.f32 0.0, %v720
      %722 = vmatmul.f32.gmra.mxu0 %v564
      %v723 = vpop.f32.mrf.mxu0
      %v724 = vadd.f32 0.0, %v723
      %725 = vmatmul.f32.gmra.mxu0 %v566
      %v726 = vpop.f32.mrf.mxu0
      %v727 = vadd.f32 0.0, %v726
      %728 = vmatmul.f32.gmra.mxu0 %v568
      %v729 = vpop.f32.mrf.mxu0
      %v730 = vadd.f32 0.0, %v729
      %731 = vmatmul.f32.gmra.mxu0 %v570
      %v732 = vpop.f32.mrf.mxu0
      %v733 = vadd.f32 0.0, %v732
      %734 = vmatmul.f32.gmra.mxu0 %v572
      %v735 = vpop.f32.mrf.mxu0
      %v736 = vadd.f32 0.0, %v735
      %737 = vmatmul.f32.gmra.mxu0 %v574
      %v738 = vpop.f32.mrf.mxu0
      %v739 = vadd.f32 0.0, %v738
      %740 = vmatmul.f32.gmra.mxu0 %v576
      %v741 = vpop.f32.mrf.mxu0
      %v742 = vadd.f32 0.0, %v741
      %743 = vmatmul.f32.gmra.mxu0 %v578
      %v744 = vpop.f32.mrf.mxu0
      %v745 = vadd.f32 0.0, %v744
      %746 = vmatmul.f32.gmra.mxu0 %v580
      %v747 = vpop.f32.mrf.mxu0
      %v748 = vadd.f32 0.0, %v747
      %749 = vdwg.mxu0
      %750 = vmatpush.msra.mxu0 0.0
      %751 = vmatpush.msra.mxu0 0.0
      %752 = vmatpush.msra.mxu0 0.0
      %753 = vmatpush.msra.mxu0 0.0
      %754 = vmatpush.msra.mxu0 0.0
      %755 = vmatpush.msra.mxu0 0.0
      %756 = vmatpush.msra.mxu0 0.0
      %757 = vmatpush.msra.mxu0 %v531
      %758 = vmatpush.msra.mxu0 %v530
      %759 = vmatpush.msra.mxu0 %v529
      %760 = vmatpush.msra.mxu0 %v528
      %761 = vmatpush.msra.mxu0 %v527
      %762 = vmatpush.msra.mxu0 %v526
      %763 = vmatpush.msra.mxu0 %v525
      %764 = vmatpush.msra.mxu0 %v524
      %765 = vmatpush.msra.mxu0 %v523
      %766 = vmatmul.f32.gmra.mxu0 %v584
      %v767 = vpop.f32.mrf.mxu0
      %v768 = vadd.f32 %v676, %v767
      %769 = vmatmul.f32.gmra.mxu0 %v587
      %v770 = vpop.f32.mrf.mxu0
      %v771 = vadd.f32 %v679, %v770
      %772 = vmatmul.f32.gmra.mxu0 %v590
      %v773 = vpop.f32.mrf.mxu0
      %v774 = vadd.f32 %v682, %v773
      %775 = vmatmul.f32.gmra.mxu0 %v593
      %v776 = vpop.f32.mrf.mxu0
      %v777 = vadd.f32 %v685, %v776
      %778 = vmatmul.f32.gmra.mxu0 %v596
      %v779 = vpop.f32.mrf.mxu0
      %v780 = vadd.f32 %v688, %v779
      %781 = vmatmul.f32.gmra.mxu0 %v599
      %v782 = vpop.f32.mrf.mxu0
      %v783 = vadd.f32 %v691, %v782
      %784 = vmatmul.f32.gmra.mxu0 %v602
      %v785 = vpop.f32.mrf.mxu0
      %v786 = vadd.f32 %v694, %v785
      %787 = vmatmul.f32.gmra.mxu0 %v605
      %v788 = vpop.f32.mrf.mxu0
      %v789 = vadd.f32 %v697, %v788
      %790 = vmatmul.f32.gmra.mxu0 %v608
      %v791 = vpop.f32.mrf.mxu0
      %v792 = vadd.f32 %v700, %v791
      %793 = vmatmul.f32.gmra.mxu0 %v611
      %v794 = vpop.f32.mrf.mxu0
      %v795 = vadd.f32 %v703, %v794
      %796 = vmatmul.f32.gmra.mxu0 %v614
      %v797 = vpop.f32.mrf.mxu0
      %v798 = vadd.f32 %v706, %v797
      %799 = vmatmul.f32.gmra.mxu0 %v617
      %v800 = vpop.f32.mrf.mxu0
      %v801 = vadd.f32 %v709, %v800
      %802 = vmatmul.f32.gmra.mxu0 %v620
      %v803 = vpop.f32.mrf.mxu0
      %v804 = vadd.f32 %v712, %v803
      %805 = vmatmul.f32.gmra.mxu0 %v623
      %v806 = vpop.f32.mrf.mxu0
      %v807 = vadd.f32 %v715, %v806
      %808 = vmatmul.f32.gmra.mxu0 %v626
      %v809 = vpop.f32.mrf.mxu0
      %v810 = vadd.f32 %v718, %v809
      %811 = vmatmul.f32.gmra.mxu0 %v629
      %v812 = vpop.f32.mrf.mxu0
      %v813 = vadd.f32 %v721, %v812
      %814 = vmatmul.f32.gmra.mxu0 %v632
      %v815 = vpop.f32.mrf.mxu0
      %v816 = vadd.f32 %v724, %v815
      %817 = vmatmul.f32.gmra.mxu0 %v635
      %v818 = vpop.f32.mrf.mxu0
      %v819 = vadd.f32 %v727, %v818
      %820 = vmatmul.f32.gmra.mxu0 %v638
      %v821 = vpop.f32.mrf.mxu0
      %v822 = vadd.f32 %v730, %v821
      %823 = vmatmul.f32.gmra.mxu0 %v641
      %v824 = vpop.f32.mrf.mxu0
      %v825 = vadd.f32 %v733, %v824
      %826 = vmatmul.f32.gmra.mxu0 %v644
      %v827 = vpop.f32.mrf.mxu0
      %v828 = vadd.f32 %v736, %v827
      %829 = vmatmul.f32.gmra.mxu0 %v647
      %v830 = vpop.f32.mrf.mxu0
      %v831 = vadd.f32 %v739, %v830
      %832 = vmatmul.f32.gmra.mxu0 %v650
      %v833 = vpop.f32.mrf.mxu0
      %v834 = vadd.f32 %v742, %v833
      %835 = vmatmul.f32.gmra.mxu0 %v653
      %v836 = vpop.f32.mrf.mxu0
      %v837 = vadd.f32 %v745, %v836
      %838 = vmatmul.f32.gmra.mxu0 %v656
      %v839 = vpop.f32.mrf.mxu0
      %v840 = vadd.f32 %v748, %v839
      %841 = vdwg.mxu0
      %842 = vmatpush.msra.mxu0 %v813
      %843 = vmatpush.msra.mxu0 %v810
      %844 = vmatpush.msra.mxu0 %v807
      %845 = vmatpush.msra.mxu0 %v804
      %846 = vmatpush.msra.mxu0 %v801
      %847 = vmatpush.msra.mxu0 %v798
      %848 = vmatpush.msra.mxu0 %v795
      %849 = vmatpush.msra.mxu0 %v792
      %850 = vmatpush.msra.mxu0 %v789
      %851 = vmatpush.msra.mxu0 %v786
      %852 = vmatpush.msra.mxu0 %v783
      %853 = vmatpush.msra.mxu0 %v780
      %854 = vmatpush.msra.mxu0 %v777
      %855 = vmatpush.msra.mxu0 %v774
      %856 = vmatpush.msra.mxu0 %v771
      %857 = vmatpush.msra.mxu0 %v768
      %858 = vmatmul.f32.gmra.mxu0 %v532
      %v859 = vpop.f32.mrf.mxu0
      %v860 = vadd.f32 0.0, %v859
      %861 = vmatmul.f32.gmra.mxu0 %v534
      %v862 = vpop.f32.mrf.mxu0
      %v863 = vadd.f32 0.0, %v862
      %864 = vmatmul.f32.gmra.mxu0 %v536
      %v865 = vpop.f32.mrf.mxu0
      %v866 = vadd.f32 0.0, %v865
      %867 = vmatmul.f32.gmra.mxu0 %v538
      %v868 = vpop.f32.mrf.mxu0
      %v869 = vadd.f32 0.0, %v868
      %870 = vmatmul.f32.gmra.mxu0 %v540
      %v871 = vpop.f32.mrf.mxu0
      %v872 = vadd.f32 0.0, %v871
      %873 = vmatmul.f32.gmra.mxu0 %v542
      %v874 = vpop.f32.mrf.mxu0
      %v875 = vadd.f32 0.0, %v874
      %876 = vmatmul.f32.gmra.mxu0 %v544
      %v877 = vpop.f32.mrf.mxu0
      %v878 = vadd.f32 0.0, %v877
      %879 = vmatmul.f32.gmra.mxu0 %v546
      %v880 = vpop.f32.mrf.mxu0
      %v881 = vadd.f32 0.0, %v880
      %882 = vmatmul.f32.gmra.mxu0 %v548
      %v883 = vpop.f32.mrf.mxu0
      %v884 = vadd.f32 0.0, %v883
      %885 = vmatmul.f32.gmra.mxu0 %v550
      %v886 = vpop.f32.mrf.mxu0
      %v887 = vadd.f32 0.0, %v886
      %888 = vmatmul.f32.gmra.mxu0 %v552
      %v889 = vpop.f32.mrf.mxu0
      %v890 = vadd.f32 0.0, %v889
      %891 = vmatmul.f32.gmra.mxu0 %v554
      %v892 = vpop.f32.mrf.mxu0
      %v893 = vadd.f32 0.0, %v892
      %894 = vmatmul.f32.gmra.mxu0 %v556
      %v895 = vpop.f32.mrf.mxu0
      %v896 = vadd.f32 0.0, %v895
      %897 = vmatmul.f32.gmra.mxu0 %v558
      %v898 = vpop.f32.mrf.mxu0
      %v899 = vadd.f32 0.0, %v898
      %900 = vmatmul.f32.gmra.mxu0 %v560
      %v901 = vpop.f32.mrf.mxu0
      %v902 = vadd.f32 0.0, %v901
      %903 = vmatmul.f32.gmra.mxu0 %v562
      %v904 = vpop.f32.mrf.mxu0
      %v905 = vadd.f32 0.0, %v904
      %906 = vmatmul.f32.gmra.mxu0 %v564
      %v907 = vpop.f32.mrf.mxu0
      %v908 = vadd.f32 0.0, %v907
      %909 = vmatmul.f32.gmra.mxu0 %v566
      %v910 = vpop.f32.mrf.mxu0
      %v911 = vadd.f32 0.0, %v910
      %912 = vmatmul.f32.gmra.mxu0 %v568
      %v913 = vpop.f32.mrf.mxu0
      %v914 = vadd.f32 0.0, %v913
      %915 = vmatmul.f32.gmra.mxu0 %v570
      %v916 = vpop.f32.mrf.mxu0
      %v917 = vadd.f32 0.0, %v916
      %918 = vmatmul.f32.gmra.mxu0 %v572
      %v919 = vpop.f32.mrf.mxu0
      %v920 = vadd.f32 0.0, %v919
      %921 = vmatmul.f32.gmra.mxu0 %v574
      %v922 = vpop.f32.mrf.mxu0
      %v923 = vadd.f32 0.0, %v922
      %924 = vmatmul.f32.gmra.mxu0 %v576
      %v925 = vpop.f32.mrf.mxu0
      %v926 = vadd.f32 0.0, %v925
      %927 = vmatmul.f32.gmra.mxu0 %v578
      %v928 = vpop.f32.mrf.mxu0
      %v929 = vadd.f32 0.0, %v928
      %930 = vmatmul.f32.gmra.mxu0 %v580
      %v931 = vpop.f32.mrf.mxu0
      %v932 = vadd.f32 0.0, %v931
      %933 = vdwg.mxu0
      %934 = vmatpush.msra.mxu0 0.0
      %935 = vmatpush.msra.mxu0 0.0
      %936 = vmatpush.msra.mxu0 0.0
      %937 = vmatpush.msra.mxu0 0.0
      %938 = vmatpush.msra.mxu0 0.0
      %939 = vmatpush.msra.mxu0 0.0
      %940 = vmatpush.msra.mxu0 0.0
      %941 = vmatpush.msra.mxu0 %v840
      %942 = vmatpush.msra.mxu0 %v837
      %943 = vmatpush.msra.mxu0 %v834
      %944 = vmatpush.msra.mxu0 %v831
      %945 = vmatpush.msra.mxu0 %v828
      %946 = vmatpush.msra.mxu0 %v825
      %947 = vmatpush.msra.mxu0 %v822
      %948 = vmatpush.msra.mxu0 %v819
      %949 = vmatpush.msra.mxu0 %v816
      %950 = vmatmul.f32.gmra.mxu0 %v584
      %v951 = vpop.f32.mrf.mxu0
      %v952 = vadd.f32 %v860, %v951
      %953 = vmatmul.f32.gmra.mxu0 %v587
      %v954 = vpop.f32.mrf.mxu0
      %v955 = vadd.f32 %v863, %v954
      %956 = vmatmul.f32.gmra.mxu0 %v590
      %v957 = vpop.f32.mrf.mxu0
      %v958 = vadd.f32 %v866, %v957
      %959 = vmatmul.f32.gmra.mxu0 %v593
      %v960 = vpop.f32.mrf.mxu0
      %v961 = vadd.f32 %v869, %v960
      %962 = vmatmul.f32.gmra.mxu0 %v596
      %v963 = vpop.f32.mrf.mxu0
      %v964 = vadd.f32 %v872, %v963
      %965 = vmatmul.f32.gmra.mxu0 %v599
      %v966 = vpop.f32.mrf.mxu0
      %v967 = vadd.f32 %v875, %v966
      %968 = vmatmul.f32.gmra.mxu0 %v602
      %v969 = vpop.f32.mrf.mxu0
      %v970 = vadd.f32 %v878, %v969
      %971 = vmatmul.f32.gmra.mxu0 %v605
      %v972 = vpop.f32.mrf.mxu0
      %v973 = vadd.f32 %v881, %v972
      %974 = vmatmul.f32.gmra.mxu0 %v608
      %v975 = vpop.f32.mrf.mxu0
      %v976 = vadd.f32 %v884, %v975
      %977 = vmatmul.f32.gmra.mxu0 %v611
      %v978 = vpop.f32.mrf.mxu0
      %v979 = vadd.f32 %v887, %v978
      %980 = vmatmul.f32.gmra.mxu0 %v614
      %v981 = vpop.f32.mrf.mxu0
      %v982 = vadd.f32 %v890, %v981
      %983 = vmatmul.f32.gmra.mxu0 %v617
      %v984 = vpop.f32.mrf.mxu0
      %v985 = vadd.f32 %v893, %v984
      %986 = vmatmul.f32.gmra.mxu0 %v620
      %v987 = vpop.f32.mrf.mxu0
      %v988 = vadd.f32 %v896, %v987
      %989 = vmatmul.f32.gmra.mxu0 %v623
      %v990 = vpop.f32.mrf.mxu0
      %v991 = vadd.f32 %v899, %v990
      %992 = vmatmul.f32.gmra.mxu0 %v626
      %v993 = vpop.f32.mrf.mxu0
      %v994 = vadd.f32 %v902, %v993
      %995 = vmatmul.f32.gmra.mxu0 %v629
      %v996 = vpop.f32.mrf.mxu0
      %v997 = vadd.f32 %v905, %v996
      %998 = vmatmul.f32.gmra.mxu0 %v632
      %v999 = vpop.f32.mrf.mxu0
      %v1000 = vadd.f32 %v908, %v999
      %1001 = vmatmul.f32.gmra.mxu0 %v635
      %v1002 = vpop.f32.mrf.mxu0
      %v1003 = vadd.f32 %v911, %v1002
      %1004 = vmatmul.f32.gmra.mxu0 %v638
      %v1005 = vpop.f32.mrf.mxu0
      %v1006 = vadd.f32 %v914, %v1005
      %1007 = vmatmul.f32.gmra.mxu0 %v641
      %v1008 = vpop.f32.mrf.mxu0
      %v1009 = vadd.f32 %v917, %v1008
      %1010 = vmatmul.f32.gmra.mxu0 %v644
      %v1011 = vpop.f32.mrf.mxu0
      %v1012 = vadd.f32 %v920, %v1011
      %1013 = vmatmul.f32.gmra.mxu0 %v647
      %v1014 = vpop.f32.mrf.mxu0
      %v1015 = vadd.f32 %v923, %v1014
      %1016 = vmatmul.f32.gmra.mxu0 %v650
      %v1017 = vpop.f32.mrf.mxu0
      %v1018 = vadd.f32 %v926, %v1017
      %1019 = vmatmul.f32.gmra.mxu0 %v653
      %v1020 = vpop.f32.mrf.mxu0
      %v1021 = vadd.f32 %v929, %v1020
      %1022 = vmatmul.f32.gmra.mxu0 %v656
      %v1023 = vpop.f32.mrf.mxu0
      %v1024 = vadd.f32 %v932, %v1023
      %1025 = vdwg.mxu0
      %1051 = vrot.lane.b32.xlu0 %v768, 57
      %v1052 = vpop.permute.xlu0 %1051
      %1053 = vrot.lane.b32.xlu0 %v771, 57
      %v1054 = vpop.permute.xlu0 %1053
      %1055 = vrot.lane.b32.xlu0 %v774, 57
      %v1056 = vpop.permute.xlu0 %1055
      %1057 = vrot.lane.b32.xlu0 %v777, 57
      %v1058 = vpop.permute.xlu0 %1057
      %1059 = vrot.lane.b32.xlu0 %v780, 57
      %v1060 = vpop.permute.xlu0 %1059
      %1061 = vrot.lane.b32.xlu0 %v783, 57
      %v1062 = vpop.permute.xlu0 %1061
      %1063 = vrot.lane.b32.xlu0 %v786, 57
      %v1064 = vpop.permute.xlu0 %1063
      %1065 = vrot.lane.b32.xlu0 %v789, 57
      %v1066 = vpop.permute.xlu0 %1065
      %1067 = vrot.lane.b32.xlu0 %v792, 57
      %v1068 = vpop.permute.xlu0 %1067
      %1069 = vrot.lane.b32.xlu0 %v795, 57
      %v1070 = vpop.permute.xlu0 %1069
      %1071 = vrot.lane.b32.xlu0 %v798, 57
      %v1072 = vpop.permute.xlu0 %1071
      %1073 = vrot.lane.b32.xlu0 %v801, 57
      %v1074 = vpop.permute.xlu0 %1073
      %1075 = vrot.lane.b32.xlu0 %v804, 57
      %v1076 = vpop.permute.xlu0 %1075
      %1077 = vrot.lane.b32.xlu0 %v807, 57
      %v1078 = vpop.permute.xlu0 %1077
      %1079 = vrot.lane.b32.xlu0 %v810, 57
      %v1080 = vpop.permute.xlu0 %1079
      %1081 = vrot.lane.b32.xlu0 %v813, 57
      %v1082 = vpop.permute.xlu0 %1081
      %1083 = vrot.lane.b32.xlu0 %v816, 57
      %v1084 = vpop.permute.xlu0 %1083
      %1085 = vrot.lane.b32.xlu0 %v819, 57
      %v1086 = vpop.permute.xlu0 %1085
      %1087 = vrot.lane.b32.xlu0 %v822, 57
      %v1088 = vpop.permute.xlu0 %1087
      %1089 = vrot.lane.b32.xlu0 %v825, 57
      %v1090 = vpop.permute.xlu0 %1089
      %1091 = vrot.lane.b32.xlu0 %v828, 57
      %v1092 = vpop.permute.xlu0 %1091
      %1093 = vrot.lane.b32.xlu0 %v831, 57
      %v1094 = vpop.permute.xlu0 %1093
      %1095 = vrot.lane.b32.xlu0 %v834, 57
      %v1096 = vpop.permute.xlu0 %1095
      %1097 = vrot.lane.b32.xlu0 %v837, 57
      %v1098 = vpop.permute.xlu0 %1097
      %1099 = vrot.lane.b32.xlu0 %v840, 57
      %v1100 = vpop.permute.xlu0 %1099
      %1151 = vrot.lane.b32.xlu0 %v952, 114
      %v1152 = vpop.permute.xlu0 %1151
      %1153 = vrot.lane.b32.xlu0 %v955, 114
      %v1154 = vpop.permute.xlu0 %1153
      %1155 = vrot.lane.b32.xlu0 %v958, 114
      %v1156 = vpop.permute.xlu0 %1155
      %1157 = vrot.lane.b32.xlu0 %v961, 114
      %v1158 = vpop.permute.xlu0 %1157
      %1159 = vrot.lane.b32.xlu0 %v964, 114
      %v1160 = vpop.permute.xlu0 %1159
      %1161 = vrot.lane.b32.xlu0 %v967, 114
      %v1162 = vpop.permute.xlu0 %1161
      %1163 = vrot.lane.b32.xlu0 %v970, 114
      %v1164 = vpop.permute.xlu0 %1163
      %1165 = vrot.lane.b32.xlu0 %v973, 114
      %v1166 = vpop.permute.xlu0 %1165
      %1167 = vrot.lane.b32.xlu0 %v976, 114
      %v1168 = vpop.permute.xlu0 %1167
      %1169 = vrot.lane.b32.xlu0 %v979, 114
      %v1170 = vpop.permute.xlu0 %1169
      %1171 = vrot.lane.b32.xlu0 %v982, 114
      %v1172 = vpop.permute.xlu0 %1171
      %1173 = vrot.lane.b32.xlu0 %v985, 114
      %v1174 = vpop.permute.xlu0 %1173
      %1175 = vrot.lane.b32.xlu0 %v988, 114
      %v1176 = vpop.permute.xlu0 %1175
      %1177 = vrot.lane.b32.xlu0 %v991, 114
      %v1178 = vpop.permute.xlu0 %1177
      %1179 = vrot.lane.b32.xlu0 %v994, 114
      %v1180 = vpop.permute.xlu0 %1179
      %1181 = vrot.lane.b32.xlu0 %v997, 114
      %v1182 = vpop.permute.xlu0 %1181
      %1183 = vrot.lane.b32.xlu0 %v1000, 114
      %v1184 = vpop.permute.xlu0 %1183
      %1185 = vrot.lane.b32.xlu0 %v1003, 114
      %v1186 = vpop.permute.xlu0 %1185
      %1187 = vrot.lane.b32.xlu0 %v1006, 114
      %v1188 = vpop.permute.xlu0 %1187
      %1189 = vrot.lane.b32.xlu0 %v1009, 114
      %v1190 = vpop.permute.xlu0 %1189
      %1191 = vrot.lane.b32.xlu0 %v1012, 114
      %v1192 = vpop.permute.xlu0 %1191
      %1193 = vrot.lane.b32.xlu0 %v1015, 114
      %v1194 = vpop.permute.xlu0 %1193
      %1195 = vrot.lane.b32.xlu0 %v1018, 114
      %v1196 = vpop.permute.xlu0 %1195
      %1197 = vrot.lane.b32.xlu0 %v1021, 114
      %v1198 = vpop.permute.xlu0 %1197
      %1199 = vrot.lane.b32.xlu0 %v1024, 114
      %v1200 = vpop.permute.xlu0 %1199
      %vm1226 = vcmask 465920
      %v1227 = vsel %vm1226, %v507, %v1052
      %v1228 = vsel %vm1226, %v508, %v1054
      %v1229 = vsel %vm1226, %v509, %v1056
      %v1230 = vsel %vm1226, %v510, %v1058
      %v1231 = vsel %vm1226, %v511, %v1060
      %v1232 = vsel %vm1226, %v512, %v1062
      %v1233 = vsel %vm1226, %v513, %v1064
      %v1234 = vsel %vm1226, %v514, %v1066
      %v1235 = vsel %vm1226, %v515, %v1068
      %v1236 = vsel %vm1226, %v516, %v1070
      %v1237 = vsel %vm1226, %v517, %v1072
      %v1238 = vsel %vm1226, %v518, %v1074
      %v1239 = vsel %vm1226, %v519, %v1076
      %v1240 = vsel %vm1226, %v520, %v1078
      %v1241 = vsel %vm1226, %v521, %v1080
      %v1242 = vsel %vm1226, %v522, %v1082
      %v1243 = vsel %vm1226, %v523, %v1084
      %v1244 = vsel %vm1226, %v524, %v1086
      %v1245 = vsel %vm1226, %v525, %v1088
      %v1246 = vsel %vm1226, %v526, %v1090
      %v1247 = vsel %vm1226, %v527, %v1092
      %v1248 = vsel %vm1226, %v528, %v1094
      %v1249 = vsel %vm1226, %v529, %v1096
      %v1250 = vsel %vm1226, %v530, %v1098
      %v1251 = vsel %vm1226, %v531, %v1100
      %vm1252 = vcmask 932864
      %v1253 = vsel %vm1252, %v1227, %v1152
      %v1254 = vsel %vm1252, %v1228, %v1154
      %v1255 = vsel %vm1252, %v1229, %v1156
      %v1256 = vsel %vm1252, %v1230, %v1158
      %v1257 = vsel %vm1252, %v1231, %v1160
      %v1258 = vsel %vm1252, %v1232, %v1162
      %v1259 = vsel %vm1252, %v1233, %v1164
      %v1260 = vsel %vm1252, %v1234, %v1166
      %v1261 = vsel %vm1252, %v1235, %v1168
      %v1262 = vsel %vm1252, %v1236, %v1170
      %v1263 = vsel %vm1252, %v1237, %v1172
      %v1264 = vsel %vm1252, %v1238, %v1174
      %v1265 = vsel %vm1252, %v1239, %v1176
      %v1266 = vsel %vm1252, %v1240, %v1178
      %v1267 = vsel %vm1252, %v1241, %v1180
      %v1268 = vsel %vm1252, %v1242, %v1182
      %v1269 = vsel %vm1252, %v1243, %v1184
      %v1270 = vsel %vm1252, %v1244, %v1186
      %v1271 = vsel %vm1252, %v1245, %v1188
      %v1272 = vsel %vm1252, %v1246, %v1190
      %v1273 = vsel %vm1252, %v1247, %v1192
      %v1274 = vsel %vm1252, %v1248, %v1194
      %v1275 = vsel %vm1252, %v1249, %v1196
      %v1276 = vsel %vm1252, %v1250, %v1198
      %v1277 = vsel %vm1252, %v1251, %v1200
      %v1278 = vld [vmem:[%s6] sm:$0xff]
      %v1279 = vld [vmem:[%s6 + $0x8] sm:$0xff]
      %v1280 = vld [vmem:[%s6 + $0x10] sm:$0xff]
      %v1281 = vld [vmem:[%s6 + $0x18] sm:$0xff]
      %v1282 = vld [vmem:[%s6 + $0x20] sm:$0xff]
      %v1283 = vld [vmem:[%s6 + $0x28] sm:$0xff]
      %v1284 = vld [vmem:[%s6 + $0x30] sm:$0xff]
      %v1285 = vld [vmem:[%s6 + $0x38] sm:$0xff]
      %v1286 = vld [vmem:[%s6 + $0x40] sm:$0xff]
      %v1287 = vld [vmem:[%s6 + $0x48] sm:$0xff]
      %v1288 = vld [vmem:[%s6 + $0x50] sm:$0xff]
      %v1289 = vld [vmem:[%s6 + $0x58] sm:$0xff]
      %v1290 = vld [vmem:[%s6 + $0x60] sm:$0xff]
      %v1291 = vld [vmem:[%s6 + $0x68] sm:$0xff]
      %v1292 = vld [vmem:[%s6 + $0x70] sm:$0xff]
      %v1293 = vld [vmem:[%s6 + $0x78] sm:$0xff]
      %v1294 = vld [vmem:[%s6 + $0x80] sm:$0xff]
      %v1295 = vld [vmem:[%s6 + $0x88] sm:$0xff]
      %v1296 = vld [vmem:[%s6 + $0x90] sm:$0xff]
      %v1297 = vld [vmem:[%s6 + $0x98] sm:$0xff]
      %v1298 = vld [vmem:[%s6 + $0xa0] sm:$0xff]
      %v1299 = vld [vmem:[%s6 + $0xa8] sm:$0x7]
      %vm1300 = vcmask 351232
      %v1301 = vsel %vm1300, %v1152, 0
      %v1303 = vsel %vm1300, %v1154, 0
      %v1305 = vsel %vm1300, %v1156, 0
      %v1307 = vsel %vm1300, %v1158, 0
      %v1309 = vsel %vm1300, %v1160, 0
      %v1311 = vsel %vm1300, %v1162, 0
      %v1313 = vsel %vm1300, %v1164, 0
      %v1315 = vsel %vm1300, %v1166, 0
      %v1317 = vsel %vm1300, %v1168, 0
      %v1319 = vsel %vm1300, %v1170, 0
      %v1321 = vsel %vm1300, %v1172, 0
      %v1323 = vsel %vm1300, %v1174, 0
      %v1325 = vsel %vm1300, %v1176, 0
      %v1327 = vsel %vm1300, %v1178, 0
      %v1329 = vsel %vm1300, %v1180, 0
      %v1331 = vsel %vm1300, %v1182, 0
      %v1333 = vsel %vm1300, %v1184, 0
      %v1335 = vsel %vm1300, %v1186, 0
      %v1337 = vsel %vm1300, %v1188, 0
      %v1339 = vsel %vm1300, %v1190, 0
      %v1341 = vsel %vm1300, %v1192, 0
      %v1343 = vsel %vm1300, %v1194, 0
      %v1345 = vsel %vm1300, %v1196, 0
      %v1347 = vsel %vm1300, %v1198, 0
      %v1349 = vsel %vm1300, %v1200, 0
      %vm1351 = vcmask 1042432
      %v1353 = vsel %vm1351, %v1299, 0
      %1355 = vmatpush.msra.mxu0 %v1293
      %1356 = vmatpush.msra.mxu0 %v1292
      %1357 = vmatpush.msra.mxu0 %v1291
      %1358 = vmatpush.msra.mxu0 %v1290
      %1359 = vmatpush.msra.mxu0 %v1289
      %1360 = vmatpush.msra.mxu0 %v1288
      %1361 = vmatpush.msra.mxu0 %v1287
      %1362 = vmatpush.msra.mxu0 %v1286
      %1363 = vmatpush.msra.mxu0 %v1285
      %1364 = vmatpush.msra.mxu0 %v1284
      %1365 = vmatpush.msra.mxu0 %v1283
      %1366 = vmatpush.msra.mxu0 %v1282
      %1367 = vmatpush.msra.mxu0 %v1281
      %1368 = vmatpush.msra.mxu0 %v1280
      %1369 = vmatpush.msra.mxu0 %v1279
      %1370 = vmatpush.msra.mxu0 %v1278
      %1371 = vmatmul.f32.gmra.mxu0 %v1253
      %v1372 = vpop.f32.mrf.mxu0
      %v1373 = vadd.f32 0.0, %v1372
      %1374 = vmatmul.f32.gmra.mxu0 %v1254
      %v1375 = vpop.f32.mrf.mxu0
      %v1376 = vadd.f32 0.0, %v1375
      %1377 = vmatmul.f32.gmra.mxu0 %v1255
      %v1378 = vpop.f32.mrf.mxu0
      %v1379 = vadd.f32 0.0, %v1378
      %1380 = vmatmul.f32.gmra.mxu0 %v1256
      %v1381 = vpop.f32.mrf.mxu0
      %v1382 = vadd.f32 0.0, %v1381
      %1383 = vmatmul.f32.gmra.mxu0 %v1257
      %v1384 = vpop.f32.mrf.mxu0
      %v1385 = vadd.f32 0.0, %v1384
      %1386 = vmatmul.f32.gmra.mxu0 %v1258
      %v1387 = vpop.f32.mrf.mxu0
      %v1388 = vadd.f32 0.0, %v1387
      %1389 = vmatmul.f32.gmra.mxu0 %v1259
      %v1390 = vpop.f32.mrf.mxu0
      %v1391 = vadd.f32 0.0, %v1390
      %1392 = vmatmul.f32.gmra.mxu0 %v1260
      %v1393 = vpop.f32.mrf.mxu0
      %v1394 = vadd.f32 0.0, %v1393
      %1395 = vmatmul.f32.gmra.mxu0 %v1261
      %v1396 = vpop.f32.mrf.mxu0
      %v1397 = vadd.f32 0.0, %v1396
      %1398 = vmatmul.f32.gmra.mxu0 %v1262
      %v1399 = vpop.f32.mrf.mxu0
      %v1400 = vadd.f32 0.0, %v1399
      %1401 = vmatmul.f32.gmra.mxu0 %v1263
      %v1402 = vpop.f32.mrf.mxu0
      %v1403 = vadd.f32 0.0, %v1402
      %1404 = vmatmul.f32.gmra.mxu0 %v1264
      %v1405 = vpop.f32.mrf.mxu0
      %v1406 = vadd.f32 0.0, %v1405
      %1407 = vmatmul.f32.gmra.mxu0 %v1265
      %v1408 = vpop.f32.mrf.mxu0
      %v1409 = vadd.f32 0.0, %v1408
      %1410 = vmatmul.f32.gmra.mxu0 %v1266
      %v1411 = vpop.f32.mrf.mxu0
      %v1412 = vadd.f32 0.0, %v1411
      %1413 = vmatmul.f32.gmra.mxu0 %v1267
      %v1414 = vpop.f32.mrf.mxu0
      %v1415 = vadd.f32 0.0, %v1414
      %1416 = vmatmul.f32.gmra.mxu0 %v1268
      %v1417 = vpop.f32.mrf.mxu0
      %v1418 = vadd.f32 0.0, %v1417
      %1419 = vmatmul.f32.gmra.mxu0 %v1269
      %v1420 = vpop.f32.mrf.mxu0
      %v1421 = vadd.f32 0.0, %v1420
      %1422 = vmatmul.f32.gmra.mxu0 %v1270
      %v1423 = vpop.f32.mrf.mxu0
      %v1424 = vadd.f32 0.0, %v1423
      %1425 = vmatmul.f32.gmra.mxu0 %v1271
      %v1426 = vpop.f32.mrf.mxu0
      %v1427 = vadd.f32 0.0, %v1426
      %1428 = vmatmul.f32.gmra.mxu0 %v1272
      %v1429 = vpop.f32.mrf.mxu0
      %v1430 = vadd.f32 0.0, %v1429
      %1431 = vmatmul.f32.gmra.mxu0 %v1273
      %v1432 = vpop.f32.mrf.mxu0
      %v1433 = vadd.f32 0.0, %v1432
      %1434 = vmatmul.f32.gmra.mxu0 %v1274
      %v1435 = vpop.f32.mrf.mxu0
      %v1436 = vadd.f32 0.0, %v1435
      %1437 = vmatmul.f32.gmra.mxu0 %v1275
      %v1438 = vpop.f32.mrf.mxu0
      %v1439 = vadd.f32 0.0, %v1438
      %1440 = vmatmul.f32.gmra.mxu0 %v1276
      %v1441 = vpop.f32.mrf.mxu0
      %v1442 = vadd.f32 0.0, %v1441
      %1443 = vmatmul.f32.gmra.mxu0 %v1277
      %v1444 = vpop.f32.mrf.mxu0
      %v1445 = vadd.f32 0.0, %v1444
      %1446 = vdwg.mxu0
      %1447 = vmatpush.msra.mxu0 0.0
      %1448 = vmatpush.msra.mxu0 0.0
      %1449 = vmatpush.msra.mxu0 0.0
      %1450 = vmatpush.msra.mxu0 0.0
      %1451 = vmatpush.msra.mxu0 0.0
      %1452 = vmatpush.msra.mxu0 0.0
      %1453 = vmatpush.msra.mxu0 0.0
      %1454 = vmatpush.msra.mxu0 0.0
      %1455 = vmatpush.msra.mxu0 0.0
      %1456 = vmatpush.msra.mxu0 0.0
      %1457 = vmatpush.msra.mxu0 %v1353
      %1458 = vmatpush.msra.mxu0 %v1298
      %1459 = vmatpush.msra.mxu0 %v1297
      %1460 = vmatpush.msra.mxu0 %v1296
      %1461 = vmatpush.msra.mxu0 %v1295
      %1462 = vmatpush.msra.mxu0 %v1294
      %1463 = vmatmul.f32.gmra.mxu0 %v1301
      %v1464 = vpop.f32.mrf.mxu0
      %v1465 = vadd.f32 %v1373, %v1464
      %1466 = vmatmul.f32.gmra.mxu0 %v1303
      %v1467 = vpop.f32.mrf.mxu0
      %v1468 = vadd.f32 %v1376, %v1467
      %1469 = vmatmul.f32.gmra.mxu0 %v1305
      %v1470 = vpop.f32.mrf.mxu0
      %v1471 = vadd.f32 %v1379, %v1470
      %1472 = vmatmul.f32.gmra.mxu0 %v1307
      %v1473 = vpop.f32.mrf.mxu0
      %v1474 = vadd.f32 %v1382, %v1473
      %1475 = vmatmul.f32.gmra.mxu0 %v1309
      %v1476 = vpop.f32.mrf.mxu0
      %v1477 = vadd.f32 %v1385, %v1476
      %1478 = vmatmul.f32.gmra.mxu0 %v1311
      %v1479 = vpop.f32.mrf.mxu0
      %v1480 = vadd.f32 %v1388, %v1479
      %1481 = vmatmul.f32.gmra.mxu0 %v1313
      %v1482 = vpop.f32.mrf.mxu0
      %v1483 = vadd.f32 %v1391, %v1482
      %1484 = vmatmul.f32.gmra.mxu0 %v1315
      %v1485 = vpop.f32.mrf.mxu0
      %v1486 = vadd.f32 %v1394, %v1485
      %1487 = vmatmul.f32.gmra.mxu0 %v1317
      %v1488 = vpop.f32.mrf.mxu0
      %v1489 = vadd.f32 %v1397, %v1488
      %1490 = vmatmul.f32.gmra.mxu0 %v1319
      %v1491 = vpop.f32.mrf.mxu0
      %v1492 = vadd.f32 %v1400, %v1491
      %1493 = vmatmul.f32.gmra.mxu0 %v1321
      %v1494 = vpop.f32.mrf.mxu0
      %v1495 = vadd.f32 %v1403, %v1494
      %1496 = vmatmul.f32.gmra.mxu0 %v1323
      %v1497 = vpop.f32.mrf.mxu0
      %v1498 = vadd.f32 %v1406, %v1497
      %1499 = vmatmul.f32.gmra.mxu0 %v1325
      %v1500 = vpop.f32.mrf.mxu0
      %v1501 = vadd.f32 %v1409, %v1500
      %1502 = vmatmul.f32.gmra.mxu0 %v1327
      %v1503 = vpop.f32.mrf.mxu0
      %v1504 = vadd.f32 %v1412, %v1503
      %1505 = vmatmul.f32.gmra.mxu0 %v1329
      %v1506 = vpop.f32.mrf.mxu0
      %v1507 = vadd.f32 %v1415, %v1506
      %1508 = vmatmul.f32.gmra.mxu0 %v1331
      %v1509 = vpop.f32.mrf.mxu0
      %v1510 = vadd.f32 %v1418, %v1509
      %1511 = vmatmul.f32.gmra.mxu0 %v1333
      %v1512 = vpop.f32.mrf.mxu0
      %v1513 = vadd.f32 %v1421, %v1512
      %1514 = vmatmul.f32.gmra.mxu0 %v1335
      %v1515 = vpop.f32.mrf.mxu0
      %v1516 = vadd.f32 %v1424, %v1515
      %1517 = vmatmul.f32.gmra.mxu0 %v1337
      %v1518 = vpop.f32.mrf.mxu0
      %v1519 = vadd.f32 %v1427, %v1518
      %1520 = vmatmul.f32.gmra.mxu0 %v1339
      %v1521 = vpop.f32.mrf.mxu0
      %v1522 = vadd.f32 %v1430, %v1521
      %1523 = vmatmul.f32.gmra.mxu0 %v1341
      %v1524 = vpop.f32.mrf.mxu0
      %v1525 = vadd.f32 %v1433, %v1524
      %1526 = vmatmul.f32.gmra.mxu0 %v1343
      %v1527 = vpop.f32.mrf.mxu0
      %v1528 = vadd.f32 %v1436, %v1527
      %1529 = vmatmul.f32.gmra.mxu0 %v1345
      %v1530 = vpop.f32.mrf.mxu0
      %v1531 = vadd.f32 %v1439, %v1530
      %1532 = vmatmul.f32.gmra.mxu0 %v1347
      %v1533 = vpop.f32.mrf.mxu0
      %v1534 = vadd.f32 %v1442, %v1533
      %1535 = vmatmul.f32.gmra.mxu0 %v1349
      %v1536 = vpop.f32.mrf.mxu0
      %v1537 = vadd.f32 %v1445, %v1536
      %1538 = vdwg.mxu0
      %v1539 = vld [vmem:[%s4] sm:$0xff]
      %v1540 = vld [vmem:[%s4 + $0x8] sm:$0xff]
      %v1541 = vld [vmem:[%s4 + $0x10] sm:$0xff]
      %v1542 = vld [vmem:[%s4 + $0x18] sm:$0xff]
      %v1543 = vld [vmem:[%s4 + $0x20] sm:$0xff]
      %v1544 = vld [vmem:[%s4 + $0x28] sm:$0xff]
      %v1545 = vld [vmem:[%s4 + $0x30] sm:$0xff]
      %v1546 = vld [vmem:[%s4 + $0x38] sm:$0xff]
      %v1547 = vld [vmem:[%s4 + $0x40] sm:$0xff]
      %v1548 = vld [vmem:[%s4 + $0x48] sm:$0xff]
      %v1549 = vld [vmem:[%s4 + $0x50] sm:$0xff]
      %v1550 = vld [vmem:[%s4 + $0x58] sm:$0xff]
      %v1551 = vld [vmem:[%s4 + $0x60] sm:$0xff]
      %v1552 = vld [vmem:[%s4 + $0x68] sm:$0xff]
      %v1553 = vld [vmem:[%s4 + $0x70] sm:$0xff]
      %v1554 = vld [vmem:[%s4 + $0x78] sm:$0xff]
      %v1555 = vld [vmem:[%s4 + $0x80] sm:$0xff]
      %v1556 = vld [vmem:[%s4 + $0x88] sm:$0xff]
      %v1557 = vld [vmem:[%s4 + $0x90] sm:$0xff]
      %v1558 = vld [vmem:[%s4 + $0x98] sm:$0xff]
      %v1559 = vld [vmem:[%s4 + $0xa0] sm:$0xff]
      %v1560 = vld [vmem:[%s4 + $0xa8] sm:$0xff]
      %v1561 = vld [vmem:[%s4 + $0xb0] sm:$0xff]
      %v1562 = vld [vmem:[%s4 + $0xb8] sm:$0xff]
      %v1563 = vld [vmem:[%s4 + $0xc0] sm:$0xff]
      %v1564 = vmul.f32 %v1539, %v1465
      %v1565 = vmul.f32 %v1540, %v1468
      %v1566 = vmul.f32 %v1541, %v1471
      %v1567 = vmul.f32 %v1542, %v1474
      %v1568 = vmul.f32 %v1543, %v1477
      %v1569 = vmul.f32 %v1544, %v1480
      %v1570 = vmul.f32 %v1545, %v1483
      %v1571 = vmul.f32 %v1546, %v1486
      %v1572 = vmul.f32 %v1547, %v1489
      %v1573 = vmul.f32 %v1548, %v1492
      %v1574 = vmul.f32 %v1549, %v1495
      %v1575 = vmul.f32 %v1550, %v1498
      %v1576 = vmul.f32 %v1551, %v1501
      %v1577 = vmul.f32 %v1552, %v1504
      %v1578 = vmul.f32 %v1553, %v1507
      %v1579 = vmul.f32 %v1554, %v1510
      %v1580 = vmul.f32 %v1555, %v1513
      %v1581 = vmul.f32 %v1556, %v1516
      %v1582 = vmul.f32 %v1557, %v1519
      %v1583 = vmul.f32 %v1558, %v1522
      %v1584 = vmul.f32 %v1559, %v1525
      %v1585 = vmul.f32 %v1560, %v1528
      %v1586 = vmul.f32 %v1561, %v1531
      %v1587 = vmul.f32 %v1562, %v1534
      %v1588 = vmul.f32 %v1563, %v1537
      %v1589 = vld [vmem:[%s5] sm:$0xff]
      %v1590 = vld [vmem:[%s5 + $0x8] sm:$0xff]
      %v1591 = vld [vmem:[%s5 + $0x10] sm:$0xff]
      %v1592 = vld [vmem:[%s5 + $0x18] sm:$0xff]
      %v1593 = vld [vmem:[%s5 + $0x20] sm:$0xff]
      %v1594 = vld [vmem:[%s5 + $0x28] sm:$0xff]
      %v1595 = vld [vmem:[%s5 + $0x30] sm:$0xff]
      %v1596 = vld [vmem:[%s5 + $0x38] sm:$0xff]
      %vm1597 = vcmask 523264
      %v1599 = vsel %vm1597, %v1564, 0
      %v1602 = vsel %vm1597, %v1565, 0
      %v1605 = vsel %vm1597, %v1566, 0
      %v1608 = vsel %vm1597, %v1567, 0
      %v1611 = vsel %vm1597, %v1568, 0
      %v1614 = vsel %vm1597, %v1569, 0
      %v1617 = vsel %vm1597, %v1570, 0
      %v1620 = vsel %vm1597, %v1571, 0
      %v1623 = vsel %vm1597, %v1572, 0
      %v1626 = vsel %vm1597, %v1573, 0
      %v1629 = vsel %vm1597, %v1574, 0
      %v1632 = vsel %vm1597, %v1575, 0
      %v1635 = vsel %vm1597, %v1576, 0
      %v1638 = vsel %vm1597, %v1577, 0
      %v1641 = vsel %vm1597, %v1578, 0
      %v1644 = vsel %vm1597, %v1579, 0
      %v1647 = vsel %vm1597, %v1580, 0
      %v1650 = vsel %vm1597, %v1581, 0
      %v1653 = vsel %vm1597, %v1582, 0
      %v1656 = vsel %vm1597, %v1583, 0
      %v1659 = vsel %vm1597, %v1584, 0
      %v1662 = vsel %vm1597, %v1585, 0
      %v1665 = vsel %vm1597, %v1586, 0
      %v1668 = vsel %vm1597, %v1587, 0
      %v1671 = vsel %vm1597, %v1588, 0
      %1673 = vmatpush.msra.mxu0 0.0
      %1674 = vmatpush.msra.mxu0 0.0
      %1675 = vmatpush.msra.mxu0 0.0
      %1676 = vmatpush.msra.mxu0 0.0
      %1677 = vmatpush.msra.mxu0 0.0
      %1678 = vmatpush.msra.mxu0 0.0
      %1679 = vmatpush.msra.mxu0 0.0
      %1680 = vmatpush.msra.mxu0 0.0
      %1681 = vmatpush.msra.mxu0 %v1596
      %1682 = vmatpush.msra.mxu0 %v1595
      %1683 = vmatpush.msra.mxu0 %v1594
      %1684 = vmatpush.msra.mxu0 %v1593
      %1685 = vmatpush.msra.mxu0 %v1592
      %1686 = vmatpush.msra.mxu0 %v1591
      %1687 = vmatpush.msra.mxu0 %v1590
      %1688 = vmatpush.msra.mxu0 %v1589
      %1689 = vmatmul.f32.gmra.mxu0 %v1599
      %v1690 = vpop.f32.mrf.mxu0
      %v1691 = vadd.f32 0.0, %v1690
      %1692 = vmatmul.f32.gmra.mxu0 %v1602
      %v1693 = vpop.f32.mrf.mxu0
      %v1694 = vadd.f32 0.0, %v1693
      %1695 = vmatmul.f32.gmra.mxu0 %v1605
      %v1696 = vpop.f32.mrf.mxu0
      %v1697 = vadd.f32 0.0, %v1696
      %1698 = vmatmul.f32.gmra.mxu0 %v1608
      %v1699 = vpop.f32.mrf.mxu0
      %v1700 = vadd.f32 0.0, %v1699
      %1701 = vmatmul.f32.gmra.mxu0 %v1611
      %v1702 = vpop.f32.mrf.mxu0
      %v1703 = vadd.f32 0.0, %v1702
      %1704 = vmatmul.f32.gmra.mxu0 %v1614
      %v1705 = vpop.f32.mrf.mxu0
      %v1706 = vadd.f32 0.0, %v1705
      %1707 = vmatmul.f32.gmra.mxu0 %v1617
      %v1708 = vpop.f32.mrf.mxu0
      %v1709 = vadd.f32 0.0, %v1708
      %1710 = vmatmul.f32.gmra.mxu0 %v1620
      %v1711 = vpop.f32.mrf.mxu0
      %v1712 = vadd.f32 0.0, %v1711
      %1713 = vmatmul.f32.gmra.mxu0 %v1623
      %v1714 = vpop.f32.mrf.mxu0
      %v1715 = vadd.f32 0.0, %v1714
      %1716 = vmatmul.f32.gmra.mxu0 %v1626
      %v1717 = vpop.f32.mrf.mxu0
      %v1718 = vadd.f32 0.0, %v1717
      %1719 = vmatmul.f32.gmra.mxu0 %v1629
      %v1720 = vpop.f32.mrf.mxu0
      %v1721 = vadd.f32 0.0, %v1720
      %1722 = vmatmul.f32.gmra.mxu0 %v1632
      %v1723 = vpop.f32.mrf.mxu0
      %v1724 = vadd.f32 0.0, %v1723
      %1725 = vmatmul.f32.gmra.mxu0 %v1635
      %v1726 = vpop.f32.mrf.mxu0
      %v1727 = vadd.f32 0.0, %v1726
      %1728 = vmatmul.f32.gmra.mxu0 %v1638
      %v1729 = vpop.f32.mrf.mxu0
      %v1730 = vadd.f32 0.0, %v1729
      %1731 = vmatmul.f32.gmra.mxu0 %v1641
      %v1732 = vpop.f32.mrf.mxu0
      %v1733 = vadd.f32 0.0, %v1732
      %1734 = vmatmul.f32.gmra.mxu0 %v1644
      %v1735 = vpop.f32.mrf.mxu0
      %v1736 = vadd.f32 0.0, %v1735
      %1737 = vmatmul.f32.gmra.mxu0 %v1647
      %v1738 = vpop.f32.mrf.mxu0
      %v1739 = vadd.f32 0.0, %v1738
      %1740 = vmatmul.f32.gmra.mxu0 %v1650
      %v1741 = vpop.f32.mrf.mxu0
      %v1742 = vadd.f32 0.0, %v1741
      %1743 = vmatmul.f32.gmra.mxu0 %v1653
      %v1744 = vpop.f32.mrf.mxu0
      %v1745 = vadd.f32 0.0, %v1744
      %1746 = vmatmul.f32.gmra.mxu0 %v1656
      %v1747 = vpop.f32.mrf.mxu0
      %v1748 = vadd.f32 0.0, %v1747
      %1749 = vmatmul.f32.gmra.mxu0 %v1659
      %v1750 = vpop.f32.mrf.mxu0
      %v1751 = vadd.f32 0.0, %v1750
      %1752 = vmatmul.f32.gmra.mxu0 %v1662
      %v1753 = vpop.f32.mrf.mxu0
      %v1754 = vadd.f32 0.0, %v1753
      %1755 = vmatmul.f32.gmra.mxu0 %v1665
      %v1756 = vpop.f32.mrf.mxu0
      %v1757 = vadd.f32 0.0, %v1756
      %1758 = vmatmul.f32.gmra.mxu0 %v1668
      %v1759 = vpop.f32.mrf.mxu0
      %v1760 = vadd.f32 0.0, %v1759
      %1761 = vmatmul.f32.gmra.mxu0 %v1671
      %v1762 = vpop.f32.mrf.mxu0
      %v1763 = vadd.f32 0.0, %v1762
      %1764 = vdwg.mxu0
      %v1765 = vld [vmem:[%s12] sm:$0xf]
      %v1766 = vld [vmem:[%s12 + $0x4] sm:$0x1]
      %v1767 = vld [vmem:[%s8] sm:$0xff]
      %v1768 = vld [vmem:[%s8 + $0x8] sm:$0xff]
      %v1769 = vld [vmem:[%s8 + $0x10] sm:$0xff]
      %v1770 = vld [vmem:[%s8 + $0x18] sm:$0xff]
      %v1771 = vld [vmem:[%s8 + $0x20] sm:$0xff]
      %v1772 = vld [vmem:[%s8 + $0x28] sm:$0xff]
      %v1773 = vld [vmem:[%s8 + $0x30] sm:$0xff]
      %v1774 = vld [vmem:[%s8 + $0x38] sm:$0xff]
      %v1775 = vld [vmem:[%s8 + $0x40] sm:$0xff]
      %v1776 = vld [vmem:[%s8 + $0x48] sm:$0xff]
      %v1777 = vld [vmem:[%s8 + $0x50] sm:$0xff]
      %v1778 = vld [vmem:[%s8 + $0x58] sm:$0xff]
      %v1779 = vld [vmem:[%s8 + $0x60] sm:$0xff]
      %v1780 = vld [vmem:[%s8 + $0x68] sm:$0xff]
      %v1781 = vld [vmem:[%s8 + $0x70] sm:$0xff]
      %v1782 = vld [vmem:[%s8 + $0x78] sm:$0xff]
      %v1783 = vld [vmem:[%s8 + $0x80] sm:$0xff]
      %v1784 = vld [vmem:[%s8 + $0x88] sm:$0xff]
      %v1785 = vld [vmem:[%s8 + $0x90] sm:$0xff]
      %v1786 = vld [vmem:[%s8 + $0x98] sm:$0xff]
      %v1787 = vld [vmem:[%s8 + $0xa0] sm:$0xff]
      %v1788 = vld [vmem:[%s8 + $0xa8] sm:$0xff]
      %v1789 = vld [vmem:[%s8 + $0xb0] sm:$0xff]
      %v1790 = vld [vmem:[%s8 + $0xb8] sm:$0xff]
      %v1791 = vld [vmem:[%s8 + $0xc0] sm:$0xff]
      %v1792 = vld [vmem:[%s8 + $0xc8] sm:$0xff]
      %v1793 = vld [vmem:[%s8 + $0xd0] sm:$0xff]
      %v1794 = vld [vmem:[%s8 + $0xd8] sm:$0xff]
      %v1795 = vld [vmem:[%s8 + $0xe0] sm:$0xff]
      %v1796 = vld [vmem:[%s8 + $0xe8] sm:$0xff]
      %v1797 = vld [vmem:[%s8 + $0xf0] sm:$0xff]
      %v1798 = vld [vmem:[%s8 + $0xf8] sm:$0xff]
      %v1799 = vld [vmem:[%s8 + $0x100] sm:$0xff]
      %v1800 = vld [vmem:[%s8 + $0x108] sm:$0xff]
      %v1801 = vld [vmem:[%s8 + $0x110] sm:$0xff]
      %v1802 = vld [vmem:[%s8 + $0x118] sm:$0xff]
      %v1803 = vld [vmem:[%s8 + $0x120] sm:$0xff]
      %v1804 = vld [vmem:[%s8 + $0x128] sm:$0xff]
      %v1805 = vld [vmem:[%s8 + $0x130] sm:$0xff]
      %v1806 = vld [vmem:[%s8 + $0x138] sm:$0xff]
      %v1807 = vld [vmem:[%s8 + $0x140] sm:$0xff]
      %v1808 = vld [vmem:[%s8 + $0x148] sm:$0xff]
      %v1809 = vld [vmem:[%s8 + $0x150] sm:$0xff]
      %v1810 = vld [vmem:[%s8 + $0x158] sm:$0xff]
      %v1811 = vld [vmem:[%s8 + $0x160] sm:$0xff]
      %v1812 = vld [vmem:[%s8 + $0x168] sm:$0xff]
      %v1813 = vld [vmem:[%s8 + $0x170] sm:$0xff]
      %v1814 = vld [vmem:[%s8 + $0x178] sm:$0xff]
      %v1815 = vld [vmem:[%s8 + $0x180] sm:$0xff]
      %v1816 = vld [vmem:[%s8 + $0x188] sm:$0xff]
      %v1818 = vsel %vm582, %v1768, 0
      %v1821 = vsel %vm582, %v1770, 0
      %v1824 = vsel %vm582, %v1772, 0
      %v1827 = vsel %vm582, %v1774, 0
      %v1830 = vsel %vm582, %v1776, 0
      %v1833 = vsel %vm582, %v1778, 0
      %v1836 = vsel %vm582, %v1780, 0
      %v1839 = vsel %vm582, %v1782, 0
      %v1842 = vsel %vm582, %v1784, 0
      %v1845 = vsel %vm582, %v1786, 0
      %v1848 = vsel %vm582, %v1788, 0
      %v1851 = vsel %vm582, %v1790, 0
      %v1854 = vsel %vm582, %v1792, 0
      %v1857 = vsel %vm582, %v1794, 0
      %v1860 = vsel %vm582, %v1796, 0
      %v1863 = vsel %vm582, %v1798, 0
      %v1866 = vsel %vm582, %v1800, 0
      %v1869 = vsel %vm582, %v1802, 0
      %v1872 = vsel %vm582, %v1804, 0
      %v1875 = vsel %vm582, %v1806, 0
      %v1878 = vsel %vm582, %v1808, 0
      %v1881 = vsel %vm582, %v1810, 0
      %v1884 = vsel %vm582, %v1812, 0
      %v1887 = vsel %vm582, %v1814, 0
      %v1890 = vsel %vm582, %v1816, 0
      %1892 = vmatpush.msra.mxu0 %v490
      %1893 = vmatpush.msra.mxu0 %v489
      %1894 = vmatpush.msra.mxu0 %v488
      %1895 = vmatpush.msra.mxu0 %v487
      %1896 = vmatpush.msra.mxu0 %v486
      %1897 = vmatpush.msra.mxu0 %v485
      %1898 = vmatpush.msra.mxu0 %v484
      %1899 = vmatpush.msra.mxu0 %v483
      %1900 = vmatpush.msra.mxu0 %v482
      %1901 = vmatpush.msra.mxu0 %v481
      %1902 = vmatpush.msra.mxu0 %v480
      %1903 = vmatpush.msra.mxu0 %v479
      %1904 = vmatpush.msra.mxu0 %v478
      %1905 = vmatpush.msra.mxu0 %v477
      %1906 = vmatpush.msra.mxu0 %v476
      %1907 = vmatpush.msra.mxu0 %v475
      %1908 = vmatmul.f32.gmra.mxu0 %v1767
      %v1909 = vpop.f32.mrf.mxu0
      %v1910 = vadd.f32 0.0, %v1909
      %1911 = vmatmul.f32.gmra.mxu0 %v1769
      %v1912 = vpop.f32.mrf.mxu0
      %v1913 = vadd.f32 0.0, %v1912
      %1914 = vmatmul.f32.gmra.mxu0 %v1771
      %v1915 = vpop.f32.mrf.mxu0
      %v1916 = vadd.f32 0.0, %v1915
      %1917 = vmatmul.f32.gmra.mxu0 %v1773
      %v1918 = vpop.f32.mrf.mxu0
      %v1919 = vadd.f32 0.0, %v1918
      %1920 = vmatmul.f32.gmra.mxu0 %v1775
      %v1921 = vpop.f32.mrf.mxu0
      %v1922 = vadd.f32 0.0, %v1921
      %1923 = vmatmul.f32.gmra.mxu0 %v1777
      %v1924 = vpop.f32.mrf.mxu0
      %v1925 = vadd.f32 0.0, %v1924
      %1926 = vmatmul.f32.gmra.mxu0 %v1779
      %v1927 = vpop.f32.mrf.mxu0
      %v1928 = vadd.f32 0.0, %v1927
      %1929 = vmatmul.f32.gmra.mxu0 %v1781
      %v1930 = vpop.f32.mrf.mxu0
      %v1931 = vadd.f32 0.0, %v1930
      %1932 = vmatmul.f32.gmra.mxu0 %v1783
      %v1933 = vpop.f32.mrf.mxu0
      %v1934 = vadd.f32 0.0, %v1933
      %1935 = vmatmul.f32.gmra.mxu0 %v1785
      %v1936 = vpop.f32.mrf.mxu0
      %v1937 = vadd.f32 0.0, %v1936
      %1938 = vmatmul.f32.gmra.mxu0 %v1787
      %v1939 = vpop.f32.mrf.mxu0
      %v1940 = vadd.f32 0.0, %v1939
      %1941 = vmatmul.f32.gmra.mxu0 %v1789
      %v1942 = vpop.f32.mrf.mxu0
      %v1943 = vadd.f32 0.0, %v1942
      %1944 = vmatmul.f32.gmra.mxu0 %v1791
      %v1945 = vpop.f32.mrf.mxu0
      %v1946 = vadd.f32 0.0, %v1945
      %1947 = vmatmul.f32.gmra.mxu0 %v1793
      %v1948 = vpop.f32.mrf.mxu0
      %v1949 = vadd.f32 0.0, %v1948
      %1950 = vmatmul.f32.gmra.mxu0 %v1795
      %v1951 = vpop.f32.mrf.mxu0
      %v1952 = vadd.f32 0.0, %v1951
      %1953 = vmatmul.f32.gmra.mxu0 %v1797
      %v1954 = vpop.f32.mrf.mxu0
      %v1955 = vadd.f32 0.0, %v1954
      %1956 = vmatmul.f32.gmra.mxu0 %v1799
      %v1957 = vpop.f32.mrf.mxu0
      %v1958 = vadd.f32 0.0, %v1957
      %1959 = vmatmul.f32.gmra.mxu0 %v1801
      %v1960 = vpop.f32.mrf.mxu0
      %v1961 = vadd.f32 0.0, %v1960
      %1962 = vmatmul.f32.gmra.mxu0 %v1803
      %v1963 = vpop.f32.mrf.mxu0
      %v1964 = vadd.f32 0.0, %v1963
      %1965 = vmatmul.f32.gmra.mxu0 %v1805
      %v1966 = vpop.f32.mrf.mxu0
      %v1967 = vadd.f32 0.0, %v1966
      %1968 = vmatmul.f32.gmra.mxu0 %v1807
      %v1969 = vpop.f32.mrf.mxu0
      %v1970 = vadd.f32 0.0, %v1969
      %1971 = vmatmul.f32.gmra.mxu0 %v1809
      %v1972 = vpop.f32.mrf.mxu0
      %v1973 = vadd.f32 0.0, %v1972
      %1974 = vmatmul.f32.gmra.mxu0 %v1811
      %v1975 = vpop.f32.mrf.mxu0
      %v1976 = vadd.f32 0.0, %v1975
      %1977 = vmatmul.f32.gmra.mxu0 %v1813
      %v1978 = vpop.f32.mrf.mxu0
      %v1979 = vadd.f32 0.0, %v1978
      %1980 = vmatmul.f32.gmra.mxu0 %v1815
      %v1981 = vpop.f32.mrf.mxu0
      %v1982 = vadd.f32 0.0, %v1981
      %1983 = vdwg.mxu0
      %1984 = vmatpush.msra.mxu0 0.0
      %1985 = vmatpush.msra.mxu0 0.0
      %1986 = vmatpush.msra.mxu0 0.0
      %1987 = vmatpush.msra.mxu0 0.0
      %1988 = vmatpush.msra.mxu0 0.0
      %1989 = vmatpush.msra.mxu0 0.0
      %1990 = vmatpush.msra.mxu0 0.0
      %1991 = vmatpush.msra.mxu0 %v499
      %1992 = vmatpush.msra.mxu0 %v498
      %1993 = vmatpush.msra.mxu0 %v497
      %1994 = vmatpush.msra.mxu0 %v496
      %1995 = vmatpush.msra.mxu0 %v495
      %1996 = vmatpush.msra.mxu0 %v494
      %1997 = vmatpush.msra.mxu0 %v493
      %1998 = vmatpush.msra.mxu0 %v492
      %1999 = vmatpush.msra.mxu0 %v491
      %2000 = vmatmul.f32.gmra.mxu0 %v1818
      %v2001 = vpop.f32.mrf.mxu0
      %v2002 = vadd.f32 %v1910, %v2001
      %2003 = vmatmul.f32.gmra.mxu0 %v1821
      %v2004 = vpop.f32.mrf.mxu0
      %v2005 = vadd.f32 %v1913, %v2004
      %2006 = vmatmul.f32.gmra.mxu0 %v1824
      %v2007 = vpop.f32.mrf.mxu0
      %v2008 = vadd.f32 %v1916, %v2007
      %2009 = vmatmul.f32.gmra.mxu0 %v1827
      %v2010 = vpop.f32.mrf.mxu0
      %v2011 = vadd.f32 %v1919, %v2010
      %2012 = vmatmul.f32.gmra.mxu0 %v1830
      %v2013 = vpop.f32.mrf.mxu0
      %v2014 = vadd.f32 %v1922, %v2013
      %2015 = vmatmul.f32.gmra.mxu0 %v1833
      %v2016 = vpop.f32.mrf.mxu0
      %v2017 = vadd.f32 %v1925, %v2016
      %2018 = vmatmul.f32.gmra.mxu0 %v1836
      %v2019 = vpop.f32.mrf.mxu0
      %v2020 = vadd.f32 %v1928, %v2019
      %2021 = vmatmul.f32.gmra.mxu0 %v1839
      %v2022 = vpop.f32.mrf.mxu0
      %v2023 = vadd.f32 %v1931, %v2022
      %2024 = vmatmul.f32.gmra.mxu0 %v1842
      %v2025 = vpop.f32.mrf.mxu0
      %v2026 = vadd.f32 %v1934, %v2025
      %2027 = vmatmul.f32.gmra.mxu0 %v1845
      %v2028 = vpop.f32.mrf.mxu0
      %v2029 = vadd.f32 %v1937, %v2028
      %2030 = vmatmul.f32.gmra.mxu0 %v1848
      %v2031 = vpop.f32.mrf.mxu0
      %v2032 = vadd.f32 %v1940, %v2031
      %2033 = vmatmul.f32.gmra.mxu0 %v1851
      %v2034 = vpop.f32.mrf.mxu0
      %v2035 = vadd.f32 %v1943, %v2034
      %2036 = vmatmul.f32.gmra.mxu0 %v1854
      %v2037 = vpop.f32.mrf.mxu0
      %v2038 = vadd.f32 %v1946, %v2037
      %2039 = vmatmul.f32.gmra.mxu0 %v1857
      %v2040 = vpop.f32.mrf.mxu0
      %v2041 = vadd.f32 %v1949, %v2040
      %2042 = vmatmul.f32.gmra.mxu0 %v1860
      %v2043 = vpop.f32.mrf.mxu0
      %v2044 = vadd.f32 %v1952, %v2043
      %2045 = vmatmul.f32.gmra.mxu0 %v1863
      %v2046 = vpop.f32.mrf.mxu0
      %v2047 = vadd.f32 %v1955, %v2046
      %2048 = vmatmul.f32.gmra.mxu0 %v1866
      %v2049 = vpop.f32.mrf.mxu0
      %v2050 = vadd.f32 %v1958, %v2049
      %2051 = vmatmul.f32.gmra.mxu0 %v1869
      %v2052 = vpop.f32.mrf.mxu0
      %v2053 = vadd.f32 %v1961, %v2052
      %2054 = vmatmul.f32.gmra.mxu0 %v1872
      %v2055 = vpop.f32.mrf.mxu0
      %v2056 = vadd.f32 %v1964, %v2055
      %2057 = vmatmul.f32.gmra.mxu0 %v1875
      %v2058 = vpop.f32.mrf.mxu0
      %v2059 = vadd.f32 %v1967, %v2058
      %2060 = vmatmul.f32.gmra.mxu0 %v1878
      %v2061 = vpop.f32.mrf.mxu0
      %v2062 = vadd.f32 %v1970, %v2061
      %2063 = vmatmul.f32.gmra.mxu0 %v1881
      %v2064 = vpop.f32.mrf.mxu0
      %v2065 = vadd.f32 %v1973, %v2064
      %2066 = vmatmul.f32.gmra.mxu0 %v1884
      %v2067 = vpop.f32.mrf.mxu0
      %v2068 = vadd.f32 %v1976, %v2067
      %2069 = vmatmul.f32.gmra.mxu0 %v1887
      %v2070 = vpop.f32.mrf.mxu0
      %v2071 = vadd.f32 %v1979, %v2070
      %2072 = vmatmul.f32.gmra.mxu0 %v1890
      %v2073 = vpop.f32.mrf.mxu0
      %v2074 = vadd.f32 %v1982, %v2073
      %2075 = vdwg.mxu0
      %2101 = vrot.lane.b32.xlu0 %v2002, 2
      %v2102 = vpop.permute.xlu0 %2101
      %2103 = vrot.lane.b32.xlu0 %v2005, 2
      %v2104 = vpop.permute.xlu0 %2103
      %2105 = vrot.lane.b32.xlu0 %v2008, 2
      %v2106 = vpop.permute.xlu0 %2105
      %2107 = vrot.lane.b32.xlu0 %v2011, 2
      %v2108 = vpop.permute.xlu0 %2107
      %2109 = vrot.lane.b32.xlu0 %v2014, 2
      %v2110 = vpop.permute.xlu0 %2109
      %2111 = vrot.lane.b32.xlu0 %v2017, 2
      %v2112 = vpop.permute.xlu0 %2111
      %2113 = vrot.lane.b32.xlu0 %v2020, 2
      %v2114 = vpop.permute.xlu0 %2113
      %2115 = vrot.lane.b32.xlu0 %v2023, 2
      %v2116 = vpop.permute.xlu0 %2115
      %2117 = vrot.lane.b32.xlu0 %v2026, 2
      %v2118 = vpop.permute.xlu0 %2117
      %2119 = vrot.lane.b32.xlu0 %v2029, 2
      %v2120 = vpop.permute.xlu0 %2119
      %2121 = vrot.lane.b32.xlu0 %v2032, 2
      %v2122 = vpop.permute.xlu0 %2121
      %2123 = vrot.lane.b32.xlu0 %v2035, 2
      %v2124 = vpop.permute.xlu0 %2123
      %2125 = vrot.lane.b32.xlu0 %v2038, 2
      %v2126 = vpop.permute.xlu0 %2125
      %2127 = vrot.lane.b32.xlu0 %v2041, 2
      %v2128 = vpop.permute.xlu0 %2127
      %2129 = vrot.lane.b32.xlu0 %v2044, 2
      %v2130 = vpop.permute.xlu0 %2129
      %2131 = vrot.lane.b32.xlu0 %v2047, 2
      %v2132 = vpop.permute.xlu0 %2131
      %2133 = vrot.lane.b32.xlu0 %v2050, 2
      %v2134 = vpop.permute.xlu0 %2133
      %2135 = vrot.lane.b32.xlu0 %v2053, 2
      %v2136 = vpop.permute.xlu0 %2135
      %2137 = vrot.lane.b32.xlu0 %v2056, 2
      %v2138 = vpop.permute.xlu0 %2137
      %2139 = vrot.lane.b32.xlu0 %v2059, 2
      %v2140 = vpop.permute.xlu0 %2139
      %2141 = vrot.lane.b32.xlu0 %v2062, 2
      %v2142 = vpop.permute.xlu0 %2141
      %2143 = vrot.lane.b32.xlu0 %v2065, 2
      %v2144 = vpop.permute.xlu0 %2143
      %2145 = vrot.lane.b32.xlu0 %v2068, 2
      %v2146 = vpop.permute.xlu0 %2145
      %2147 = vrot.lane.b32.xlu0 %v2071, 2
      %v2148 = vpop.permute.xlu0 %2147
      %2149 = vrot.lane.b32.xlu0 %v2074, 2
      %v2150 = vpop.permute.xlu0 %2149
      %v2176 = vsel %vm506, %v475, %v2102
      %v2177 = vsel %vm506, %v476, %v2104
      %v2178 = vsel %vm506, %v477, %v2106
      %v2179 = vsel %vm506, %v478, %v2108
      %v2180 = vsel %vm506, %v479, %v2110
      %v2181 = vsel %vm506, %v480, %v2112
      %v2182 = vsel %vm506, %v481, %v2114
      %v2183 = vsel %vm506, %v482, %v2116
      %v2184 = vsel %vm506, %v483, %v2118
      %v2185 = vsel %vm506, %v484, %v2120
      %v2186 = vsel %vm506, %v485, %v2122
      %v2187 = vsel %vm506, %v486, %v2124
      %v2188 = vsel %vm506, %v487, %v2126
      %v2189 = vsel %vm506, %v488, %v2128
      %v2190 = vsel %vm506, %v489, %v2130
      %v2191 = vsel %vm506, %v490, %v2132
      %v2192 = vsel %vm506, %v491, %v2134
      %v2193 = vsel %vm506, %v492, %v2136
      %v2194 = vsel %vm506, %v493, %v2138
      %v2195 = vsel %vm506, %v494, %v2140
      %v2196 = vsel %vm506, %v495, %v2142
      %v2197 = vsel %vm506, %v496, %v2144
      %v2198 = vsel %vm506, %v497, %v2146
      %v2199 = vsel %vm506, %v498, %v2148
      %v2200 = vsel %vm506, %v499, %v2150
      %v2201 = vperm.slane %v1766, 0
      %vm2202 = vcmask 31744
      %v2204 = vsel %vm2202, %v2176, 0
      %v2207 = vsel %vm2202, %v2177, 0
      %v2210 = vsel %vm2202, %v2178, 0
      %v2213 = vsel %vm2202, %v2179, 0
      %v2216 = vsel %vm2202, %v2180, 0
      %v2219 = vsel %vm2202, %v2181, 0
      %v2222 = vsel %vm2202, %v2182, 0
      %v2225 = vsel %vm2202, %v2183, 0
      %v2228 = vsel %vm2202, %v2184, 0
      %v2231 = vsel %vm2202, %v2185, 0
      %v2234 = vsel %vm2202, %v2186, 0
      %v2237 = vsel %vm2202, %v2187, 0
      %v2240 = vsel %vm2202, %v2188, 0
      %v2243 = vsel %vm2202, %v2189, 0
      %v2246 = vsel %vm2202, %v2190, 0
      %v2249 = vsel %vm2202, %v2191, 0
      %v2252 = vsel %vm2202, %v2192, 0
      %v2255 = vsel %vm2202, %v2193, 0
      %v2258 = vsel %vm2202, %v2194, 0
      %v2261 = vsel %vm2202, %v2195, 0
      %v2264 = vsel %vm2202, %v2196, 0
      %v2267 = vsel %vm2202, %v2197, 0
      %v2270 = vsel %vm2202, %v2198, 0
      %v2273 = vsel %vm2202, %v2199, 0
      %v2276 = vsel %vm2202, %v2200, 0
      %vm2278 = vcmask 1043456
      %v2280 = vsel %vm2278, %v1765, 0
      %2282 = vmatpush.msra.mxu0 0.0
      %2283 = vmatpush.msra.mxu0 0.0
      %2284 = vmatpush.msra.mxu0 0.0
      %2285 = vmatpush.msra.mxu0 0.0
      %2286 = vmatpush.msra.mxu0 0.0
      %2287 = vmatpush.msra.mxu0 0.0
      %2288 = vmatpush.msra.mxu0 0.0
      %2289 = vmatpush.msra.mxu0 0.0
      %2290 = vmatpush.msra.mxu0 0.0
      %2291 = vmatpush.msra.mxu0 0.0
      %2292 = vmatpush.msra.mxu0 0.0
      %2293 = vmatpush.msra.mxu0 0.0
      %2294 = vmatpush.msra.mxu0 0.0
      %2295 = vmatpush.msra.mxu0 0.0
      %2296 = vmatpush.msra.mxu0 0.0
      %2297 = vmatpush.msra.mxu0 %v2280
      %2298 = vmatmul.f32.gmra.mxu0 %v2204
      %v2299 = vpop.f32.mrf.mxu0
      %v2300 = vadd.f32 %v2201, %v2299
      %2301 = vmatmul.f32.gmra.mxu0 %v2207
      %v2302 = vpop.f32.mrf.mxu0
      %v2303 = vadd.f32 %v2201, %v2302
      %2304 = vmatmul.f32.gmra.mxu0 %v2210
      %v2305 = vpop.f32.mrf.mxu0
      %v2306 = vadd.f32 %v2201, %v2305
      %2307 = vmatmul.f32.gmra.mxu0 %v2213
      %v2308 = vpop.f32.mrf.mxu0
      %v2309 = vadd.f32 %v2201, %v2308
      %2310 = vmatmul.f32.gmra.mxu0 %v2216
      %v2311 = vpop.f32.mrf.mxu0
      %v2312 = vadd.f32 %v2201, %v2311
      %2313 = vmatmul.f32.gmra.mxu0 %v2219
      %v2314 = vpop.f32.mrf.mxu0
      %v2315 = vadd.f32 %v2201, %v2314
      %2316 = vmatmul.f32.gmra.mxu0 %v2222
      %v2317 = vpop.f32.mrf.mxu0
      %v2318 = vadd.f32 %v2201, %v2317
      %2319 = vmatmul.f32.gmra.mxu0 %v2225
      %v2320 = vpop.f32.mrf.mxu0
      %v2321 = vadd.f32 %v2201, %v2320
      %2322 = vmatmul.f32.gmra.mxu0 %v2228
      %v2323 = vpop.f32.mrf.mxu0
      %v2324 = vadd.f32 %v2201, %v2323
      %2325 = vmatmul.f32.gmra.mxu0 %v2231
      %v2326 = vpop.f32.mrf.mxu0
      %v2327 = vadd.f32 %v2201, %v2326
      %2328 = vmatmul.f32.gmra.mxu0 %v2234
      %v2329 = vpop.f32.mrf.mxu0
      %v2330 = vadd.f32 %v2201, %v2329
      %2331 = vmatmul.f32.gmra.mxu0 %v2237
      %v2332 = vpop.f32.mrf.mxu0
      %v2333 = vadd.f32 %v2201, %v2332
      %2334 = vmatmul.f32.gmra.mxu0 %v2240
      %v2335 = vpop.f32.mrf.mxu0
      %v2336 = vadd.f32 %v2201, %v2335
      %2337 = vmatmul.f32.gmra.mxu0 %v2243
      %v2338 = vpop.f32.mrf.mxu0
      %v2339 = vadd.f32 %v2201, %v2338
      %2340 = vmatmul.f32.gmra.mxu0 %v2246
      %v2341 = vpop.f32.mrf.mxu0
      %v2342 = vadd.f32 %v2201, %v2341
      %2343 = vmatmul.f32.gmra.mxu0 %v2249
      %v2344 = vpop.f32.mrf.mxu0
      %v2345 = vadd.f32 %v2201, %v2344
      %2346 = vmatmul.f32.gmra.mxu0 %v2252
      %v2347 = vpop.f32.mrf.mxu0
      %v2348 = vadd.f32 %v2201, %v2347
      %2349 = vmatmul.f32.gmra.mxu0 %v2255
      %v2350 = vpop.f32.mrf.mxu0
      %v2351 = vadd.f32 %v2201, %v2350
      %2352 = vmatmul.f32.gmra.mxu0 %v2258
      %v2353 = vpop.f32.mrf.mxu0
      %v2354 = vadd.f32 %v2201, %v2353
      %2355 = vmatmul.f32.gmra.mxu0 %v2261
      %v2356 = vpop.f32.mrf.mxu0
      %v2357 = vadd.f32 %v2201, %v2356
      %2358 = vmatmul.f32.gmra.mxu0 %v2264
      %v2359 = vpop.f32.mrf.mxu0
      %v2360 = vadd.f32 %v2201, %v2359
      %2361 = vmatmul.f32.gmra.mxu0 %v2267
      %v2362 = vpop.f32.mrf.mxu0
      %v2363 = vadd.f32 %v2201, %v2362
      %2364 = vmatmul.f32.gmra.mxu0 %v2270
      %v2365 = vpop.f32.mrf.mxu0
      %v2366 = vadd.f32 %v2201, %v2365
      %2367 = vmatmul.f32.gmra.mxu0 %v2273
      %v2368 = vpop.f32.mrf.mxu0
      %v2369 = vadd.f32 %v2201, %v2368
      %2370 = vmatmul.f32.gmra.mxu0 %v2276
      %v2371 = vpop.f32.mrf.mxu0
      %v2372 = vadd.f32 %v2201, %v2371
      %2373 = vdwg.mxu0
      %v2374 = vld [vmem:[%s466] sm:$0xff]
      %v2375 = vld [vmem:[%s466 + $0x8] sm:$0xff]
      %v2376 = vld [vmem:[%s466 + $0x10] sm:$0xff]
      %v2377 = vld [vmem:[%s466 + $0x18] sm:$0xff]
      %v2378 = vld [vmem:[%s466 + $0x20] sm:$0xff]
      %v2379 = vld [vmem:[%s466 + $0x28] sm:$0xff]
      %v2380 = vld [vmem:[%s466 + $0x30] sm:$0xff]
      %v2381 = vld [vmem:[%s466 + $0x38] sm:$0xff]
      %v2382 = vld [vmem:[%s466 + $0x40] sm:$0xff]
      %v2383 = vld [vmem:[%s466 + $0x48] sm:$0xff]
      %v2384 = vld [vmem:[%s466 + $0x50] sm:$0xff]
      %v2385 = vld [vmem:[%s466 + $0x58] sm:$0xff]
      %v2386 = vld [vmem:[%s466 + $0x60] sm:$0xf]
      %v2387 = vld [vmem:[%s9] sm:$0xff]
      %v2388 = vld [vmem:[%s9 + $0x8] sm:$0xff]
      %v2389 = vld [vmem:[%s9 + $0x10] sm:$0xff]
      %v2390 = vld [vmem:[%s9 + $0x18] sm:$0xff]
      %v2391 = vld [vmem:[%s9 + $0x20] sm:$0xff]
      %v2392 = vld [vmem:[%s9 + $0x28] sm:$0xff]
      %v2393 = vld [vmem:[%s9 + $0x30] sm:$0xff]
      %v2394 = vld [vmem:[%s9 + $0x38] sm:$0xff]
      %v2395 = vld [vmem:[%s9 + $0x40] sm:$0xff]
      %v2396 = vld [vmem:[%s9 + $0x48] sm:$0xff]
      %v2397 = vld [vmem:[%s9 + $0x50] sm:$0xff]
      %v2398 = vld [vmem:[%s9 + $0x58] sm:$0xff]
      %v2399 = vld [vmem:[%s9 + $0x60] sm:$0xf]
      %vm2400 = vcmask 818176
      %v2402 = vsel %vm2400, %v2387, 0
      %v2405 = vsel %vm2400, %v2388, 0
      %v2408 = vsel %vm2400, %v2389, 0
      %v2411 = vsel %vm2400, %v2390, 0
      %v2414 = vsel %vm2400, %v2391, 0
      %v2417 = vsel %vm2400, %v2392, 0
      %v2420 = vsel %vm2400, %v2393, 0
      %v2423 = vsel %vm2400, %v2394, 0
      %v2426 = vsel %vm2400, %v2395, 0
      %v2429 = vsel %vm2400, %v2396, 0
      %v2432 = vsel %vm2400, %v2397, 0
      %v2435 = vsel %vm2400, %v2398, 0
      %v2438 = vsel %vm2400, %v2399, 0
      %v2441 = vsel %vm2278, %v2386, 0
      %2443 = vmatpush.msra.mxu0 0.0
      %2444 = vmatpush.msra.mxu0 0.0
      %2445 = vmatpush.msra.mxu0 0.0
      %2446 = vmatpush.msra.mxu0 %v2441
      %2447 = vmatpush.msra.mxu0 %v2385
      %2448 = vmatpush.msra.mxu0 %v2384
      %2449 = vmatpush.msra.mxu0 %v2383
      %2450 = vmatpush.msra.mxu0 %v2382
      %2451 = vmatpush.msra.mxu0 %v2381
      %2452 = vmatpush.msra.mxu0 %v2380
      %2453 = vmatpush.msra.mxu0 %v2379
      %2454 = vmatpush.msra.mxu0 %v2378
      %2455 = vmatpush.msra.mxu0 %v2377
      %2456 = vmatpush.msra.mxu0 %v2376
      %2457 = vmatpush.msra.mxu0 %v2375
      %2458 = vmatpush.msra.mxu0 %v2374
      %2459 = vmatmul.f32.gmra.mxu0 %v2402
      %v2460 = vpop.f32.mrf.mxu0
      %v2461 = vadd.f32 0.0, %v2460
      %2462 = vmatmul.f32.gmra.mxu0 %v2405
      %v2463 = vpop.f32.mrf.mxu0
      %v2464 = vadd.f32 0.0, %v2463
      %2465 = vmatmul.f32.gmra.mxu0 %v2408
      %v2466 = vpop.f32.mrf.mxu0
      %v2467 = vadd.f32 0.0, %v2466
      %2468 = vmatmul.f32.gmra.mxu0 %v2411
      %v2469 = vpop.f32.mrf.mxu0
      %v2470 = vadd.f32 0.0, %v2469
      %2471 = vmatmul.f32.gmra.mxu0 %v2414
      %v2472 = vpop.f32.mrf.mxu0
      %v2473 = vadd.f32 0.0, %v2472
      %2474 = vmatmul.f32.gmra.mxu0 %v2417
      %v2475 = vpop.f32.mrf.mxu0
      %v2476 = vadd.f32 0.0, %v2475
      %2477 = vmatmul.f32.gmra.mxu0 %v2420
      %v2478 = vpop.f32.mrf.mxu0
      %v2479 = vadd.f32 0.0, %v2478
      %2480 = vmatmul.f32.gmra.mxu0 %v2423
      %v2481 = vpop.f32.mrf.mxu0
      %v2482 = vadd.f32 0.0, %v2481
      %2483 = vmatmul.f32.gmra.mxu0 %v2426
      %v2484 = vpop.f32.mrf.mxu0
      %v2485 = vadd.f32 0.0, %v2484
      %2486 = vmatmul.f32.gmra.mxu0 %v2429
      %v2487 = vpop.f32.mrf.mxu0
      %v2488 = vadd.f32 0.0, %v2487
      %2489 = vmatmul.f32.gmra.mxu0 %v2432
      %v2490 = vpop.f32.mrf.mxu0
      %v2491 = vadd.f32 0.0, %v2490
      %2492 = vmatmul.f32.gmra.mxu0 %v2435
      %v2493 = vpop.f32.mrf.mxu0
      %v2494 = vadd.f32 0.0, %v2493
      %2495 = vmatmul.f32.gmra.mxu0 %v2438
      %v2496 = vpop.f32.mrf.mxu0
      %v2497 = vadd.f32 0.0, %v2496
      %2498 = vdwg.mxu0
      %2512 = vrot.lane.b32.xlu0 %v2461, 2
      %v2513 = vpop.permute.xlu0 %2512
      %2514 = vrot.lane.b32.xlu0 %v2464, 2
      %v2515 = vpop.permute.xlu0 %2514
      %2516 = vrot.lane.b32.xlu0 %v2467, 2
      %v2517 = vpop.permute.xlu0 %2516
      %2518 = vrot.lane.b32.xlu0 %v2470, 2
      %v2519 = vpop.permute.xlu0 %2518
      %2520 = vrot.lane.b32.xlu0 %v2473, 2
      %v2521 = vpop.permute.xlu0 %2520
      %2522 = vrot.lane.b32.xlu0 %v2476, 2
      %v2523 = vpop.permute.xlu0 %2522
      %2524 = vrot.lane.b32.xlu0 %v2479, 2
      %v2525 = vpop.permute.xlu0 %2524
      %2526 = vrot.lane.b32.xlu0 %v2482, 2
      %v2527 = vpop.permute.xlu0 %2526
      %2528 = vrot.lane.b32.xlu0 %v2485, 2
      %v2529 = vpop.permute.xlu0 %2528
      %2530 = vrot.lane.b32.xlu0 %v2488, 2
      %v2531 = vpop.permute.xlu0 %2530
      %2532 = vrot.lane.b32.xlu0 %v2491, 2
      %v2533 = vpop.permute.xlu0 %2532
      %2534 = vrot.lane.b32.xlu0 %v2494, 2
      %v2535 = vpop.permute.xlu0 %2534
      %2536 = vrot.lane.b32.xlu0 %v2497, 2
      %v2537 = vpop.permute.xlu0 %2536
      %v2551 = vsel %vm506, %v2374, %v2513
      %v2552 = vsel %vm506, %v2375, %v2515
      %v2553 = vsel %vm506, %v2376, %v2517
      %v2554 = vsel %vm506, %v2377, %v2519
      %v2555 = vsel %vm506, %v2378, %v2521
      %v2556 = vsel %vm506, %v2379, %v2523
      %v2557 = vsel %vm506, %v2380, %v2525
      %v2558 = vsel %vm506, %v2381, %v2527
      %v2559 = vsel %vm506, %v2382, %v2529
      %v2560 = vsel %vm506, %v2383, %v2531
      %v2561 = vsel %vm506, %v2384, %v2533
      %v2562 = vsel %vm506, %v2385, %v2535
      %v2563 = vsel %vm506, %v2386, %v2537
      %2564 = vrot.lane.b32.xlu0 %v1765, 124
      %v2565 = vpop.permute.xlu0 %2564
      %2567 = vrot.lane.b32.xlu0 %v2201, 124
      %v2568 = vpop.permute.xlu0 %2567
      %v2571 = vsel %vm2202, %v2551, 0
      %v2574 = vsel %vm2202, %v2552, 0
      %v2577 = vsel %vm2202, %v2553, 0
      %v2580 = vsel %vm2202, %v2554, 0
      %v2583 = vsel %vm2202, %v2555, 0
      %v2586 = vsel %vm2202, %v2556, 0
      %v2589 = vsel %vm2202, %v2557, 0
      %v2592 = vsel %vm2202, %v2558, 0
      %v2595 = vsel %vm2202, %v2559, 0
      %v2598 = vsel %vm2202, %v2560, 0
      %v2601 = vsel %vm2202, %v2561, 0
      %v2604 = vsel %vm2202, %v2562, 0
      %v2607 = vsel %vm2202, %v2563, 0
      %v2609 = vsel %vm2278, %v2565, 0
      %2611 = vmatpush.msra.mxu0 0.0
      %2612 = vmatpush.msra.mxu0 0.0
      %2613 = vmatpush.msra.mxu0 0.0
      %2614 = vmatpush.msra.mxu0 0.0
      %2615 = vmatpush.msra.mxu0 0.0
      %2616 = vmatpush.msra.mxu0 0.0
      %2617 = vmatpush.msra.mxu0 0.0
      %2618 = vmatpush.msra.mxu0 0.0
      %2619 = vmatpush.msra.mxu0 0.0
      %2620 = vmatpush.msra.mxu0 0.0
      %2621 = vmatpush.msra.mxu0 0.0
      %2622 = vmatpush.msra.mxu0 0.0
      %2623 = vmatpush.msra.mxu0 0.0
      %2624 = vmatpush.msra.mxu0 0.0
      %2625 = vmatpush.msra.mxu0 0.0
      %2626 = vmatpush.msra.mxu0 %v2609
      %2627 = vmatmul.f32.gmra.mxu0 %v2571
      %v2628 = vpop.f32.mrf.mxu0
      %v2629 = vadd.f32 %v2568, %v2628
      %2630 = vmatmul.f32.gmra.mxu0 %v2574
      %v2631 = vpop.f32.mrf.mxu0
      %v2632 = vadd.f32 %v2568, %v2631
      %2633 = vmatmul.f32.gmra.mxu0 %v2577
      %v2634 = vpop.f32.mrf.mxu0
      %v2635 = vadd.f32 %v2568, %v2634
      %2636 = vmatmul.f32.gmra.mxu0 %v2580
      %v2637 = vpop.f32.mrf.mxu0
      %v2638 = vadd.f32 %v2568, %v2637
      %2639 = vmatmul.f32.gmra.mxu0 %v2583
      %v2640 = vpop.f32.mrf.mxu0
      %v2641 = vadd.f32 %v2568, %v2640
      %2642 = vmatmul.f32.gmra.mxu0 %v2586
      %v2643 = vpop.f32.mrf.mxu0
      %v2644 = vadd.f32 %v2568, %v2643
      %2645 = vmatmul.f32.gmra.mxu0 %v2589
      %v2646 = vpop.f32.mrf.mxu0
      %v2647 = vadd.f32 %v2568, %v2646
      %2648 = vmatmul.f32.gmra.mxu0 %v2592
      %v2649 = vpop.f32.mrf.mxu0
      %v2650 = vadd.f32 %v2568, %v2649
      %2651 = vmatmul.f32.gmra.mxu0 %v2595
      %v2652 = vpop.f32.mrf.mxu0
      %v2653 = vadd.f32 %v2568, %v2652
      %2654 = vmatmul.f32.gmra.mxu0 %v2598
      %v2655 = vpop.f32.mrf.mxu0
      %v2656 = vadd.f32 %v2568, %v2655
      %2657 = vmatmul.f32.gmra.mxu0 %v2601
      %v2658 = vpop.f32.mrf.mxu0
      %v2659 = vadd.f32 %v2568, %v2658
      %2660 = vmatmul.f32.gmra.mxu0 %v2604
      %v2661 = vpop.f32.mrf.mxu0
      %v2662 = vadd.f32 %v2568, %v2661
      %2663 = vmatmul.f32.gmra.mxu0 %v2607
      %v2664 = vpop.f32.mrf.mxu0
      %v2665 = vadd.f32 %v2568, %v2664
      %2666 = vdwg.mxu0
      %v2667 = vld [vmem:[%s12] sm:$0x3]
      %v2668 = vld [vmem:[%s10] sm:$0xff]
      %v2669 = vld [vmem:[%s10 + $0x8] sm:$0xff]
      %v2670 = vld [vmem:[%s10 + $0x10] sm:$0xff]
      %v2671 = vld [vmem:[%s10 + $0x18] sm:$0xff]
      %v2672 = vld [vmem:[%s10 + $0x20] sm:$0xff]
      %v2673 = vld [vmem:[%s10 + $0x28] sm:$0xff]
      %v2674 = vld [vmem:[%s10 + $0x30] sm:$0xff]
      %v2675 = vld [vmem:[%s10 + $0x38] sm:$0xff]
      %v2676 = vld [vmem:[%s10 + $0x40] sm:$0xff]
      %v2677 = vld [vmem:[%s10 + $0x48] sm:$0xff]
      %v2678 = vld [vmem:[%s10 + $0x50] sm:$0xff]
      %v2679 = vld [vmem:[%s10 + $0x58] sm:$0xff]
      %v2680 = vld [vmem:[%s10 + $0x60] sm:$0xf]
      %v2682 = vsel %vm2400, %v2668, 0
      %v2685 = vsel %vm2400, %v2669, 0
      %v2688 = vsel %vm2400, %v2670, 0
      %v2691 = vsel %vm2400, %v2671, 0
      %v2694 = vsel %vm2400, %v2672, 0
      %v2697 = vsel %vm2400, %v2673, 0
      %v2700 = vsel %vm2400, %v2674, 0
      %v2703 = vsel %vm2400, %v2675, 0
      %v2706 = vsel %vm2400, %v2676, 0
      %v2709 = vsel %vm2400, %v2677, 0
      %v2712 = vsel %vm2400, %v2678, 0
      %v2715 = vsel %vm2400, %v2679, 0
      %v2718 = vsel %vm2400, %v2680, 0
      %v2721 = vsel %vm2278, %v2665, 0
      %2723 = vmatpush.msra.mxu0 0.0
      %2724 = vmatpush.msra.mxu0 0.0
      %2725 = vmatpush.msra.mxu0 0.0
      %2726 = vmatpush.msra.mxu0 %v2721
      %2727 = vmatpush.msra.mxu0 %v2662
      %2728 = vmatpush.msra.mxu0 %v2659
      %2729 = vmatpush.msra.mxu0 %v2656
      %2730 = vmatpush.msra.mxu0 %v2653
      %2731 = vmatpush.msra.mxu0 %v2650
      %2732 = vmatpush.msra.mxu0 %v2647
      %2733 = vmatpush.msra.mxu0 %v2644
      %2734 = vmatpush.msra.mxu0 %v2641
      %2735 = vmatpush.msra.mxu0 %v2638
      %2736 = vmatpush.msra.mxu0 %v2635
      %2737 = vmatpush.msra.mxu0 %v2632
      %2738 = vmatpush.msra.mxu0 %v2629
      %2739 = vmatmul.f32.gmra.mxu0 %v2682
      %v2740 = vpop.f32.mrf.mxu0
      %v2741 = vadd.f32 0.0, %v2740
      %2742 = vmatmul.f32.gmra.mxu0 %v2685
      %v2743 = vpop.f32.mrf.mxu0
      %v2744 = vadd.f32 0.0, %v2743
      %2745 = vmatmul.f32.gmra.mxu0 %v2688
      %v2746 = vpop.f32.mrf.mxu0
      %v2747 = vadd.f32 0.0, %v2746
      %2748 = vmatmul.f32.gmra.mxu0 %v2691
      %v2749 = vpop.f32.mrf.mxu0
      %v2750 = vadd.f32 0.0, %v2749
      %2751 = vmatmul.f32.gmra.mxu0 %v2694
      %v2752 = vpop.f32.mrf.mxu0
      %v2753 = vadd.f32 0.0, %v2752
      %2754 = vmatmul.f32.gmra.mxu0 %v2697
      %v2755 = vpop.f32.mrf.mxu0
      %v2756 = vadd.f32 0.0, %v2755
      %2757 = vmatmul.f32.gmra.mxu0 %v2700
      %v2758 = vpop.f32.mrf.mxu0
      %v2759 = vadd.f32 0.0, %v2758
      %2760 = vmatmul.f32.gmra.mxu0 %v2703
      %v2761 = vpop.f32.mrf.mxu0
      %v2762 = vadd.f32 0.0, %v2761
      %2763 = vmatmul.f32.gmra.mxu0 %v2706
      %v2764 = vpop.f32.mrf.mxu0
      %v2765 = vadd.f32 0.0, %v2764
      %2766 = vmatmul.f32.gmra.mxu0 %v2709
      %v2767 = vpop.f32.mrf.mxu0
      %v2768 = vadd.f32 0.0, %v2767
      %2769 = vmatmul.f32.gmra.mxu0 %v2712
      %v2770 = vpop.f32.mrf.mxu0
      %v2771 = vadd.f32 0.0, %v2770
      %2772 = vmatmul.f32.gmra.mxu0 %v2715
      %v2773 = vpop.f32.mrf.mxu0
      %v2774 = vadd.f32 0.0, %v2773
      %2775 = vmatmul.f32.gmra.mxu0 %v2718
      %v2776 = vpop.f32.mrf.mxu0
      %v2777 = vadd.f32 0.0, %v2776
      %2778 = vdwg.mxu0
      %2780 = vrot.lane.b32.xlu0 %v2667, 122
      %v2781 = vpop.permute.xlu0 %2780
      %2782 = vrot.lane.b32.xlu0 %v2201, 122
      %v2783 = vpop.permute.xlu0 %2782
      %v2786 = vsel %vm506, %v2741, 0
      %v2789 = vsel %vm506, %v2744, 0
      %v2792 = vsel %vm506, %v2747, 0
      %v2795 = vsel %vm506, %v2750, 0
      %v2798 = vsel %vm506, %v2753, 0
      %v2801 = vsel %vm506, %v2756, 0
      %v2804 = vsel %vm506, %v2759, 0
      %v2807 = vsel %vm506, %v2762, 0
      %v2810 = vsel %vm506, %v2765, 0
      %v2813 = vsel %vm506, %v2768, 0
      %v2816 = vsel %vm506, %v2771, 0
      %v2819 = vsel %vm506, %v2774, 0
      %v2822 = vsel %vm506, %v2777, 0
      %vm2824 = vcmask 1041408
      %v2825 = vsel %vm2824, %v2781, 0
      %2827 = vmatpush.msra.mxu0 0.0
      %2828 = vmatpush.msra.mxu0 0.0
      %2829 = vmatpush.msra.mxu0 0.0
      %2830 = vmatpush.msra.mxu0 0.0
      %2831 = vmatpush.msra.mxu0 0.0
      %2832 = vmatpush.msra.mxu0 0.0
      %2833 = vmatpush.msra.mxu0 0.0
      %2834 = vmatpush.msra.mxu0 0.0
      %2835 = vmatpush.msra.mxu0 0.0
      %2836 = vmatpush.msra.mxu0 0.0
      %2837 = vmatpush.msra.mxu0 0.0
      %2838 = vmatpush.msra.mxu0 0.0
      %2839 = vmatpush.msra.mxu0 0.0
      %2840 = vmatpush.msra.mxu0 0.0
      %2841 = vmatpush.msra.mxu0 0.0
      %2842 = vmatpush.msra.mxu0 %v2825
      %2843 = vmatmul.f32.gmra.mxu0 %v2786
      %v2844 = vpop.f32.mrf.mxu0
      %v2845 = vadd.f32 %v2783, %v2844
      %2846 = vmatmul.f32.gmra.mxu0 %v2789
      %v2847 = vpop.f32.mrf.mxu0
      %v2848 = vadd.f32 %v2783, %v2847
      %2849 = vmatmul.f32.gmra.mxu0 %v2792
      %v2850 = vpop.f32.mrf.mxu0
      %v2851 = vadd.f32 %v2783, %v2850
      %2852 = vmatmul.f32.gmra.mxu0 %v2795
      %v2853 = vpop.f32.mrf.mxu0
      %v2854 = vadd.f32 %v2783, %v2853
      %2855 = vmatmul.f32.gmra.mxu0 %v2798
      %v2856 = vpop.f32.mrf.mxu0
      %v2857 = vadd.f32 %v2783, %v2856
      %2858 = vmatmul.f32.gmra.mxu0 %v2801
      %v2859 = vpop.f32.mrf.mxu0
      %v2860 = vadd.f32 %v2783, %v2859
      %2861 = vmatmul.f32.gmra.mxu0 %v2804
      %v2862 = vpop.f32.mrf.mxu0
      %v2863 = vadd.f32 %v2783, %v2862
      %2864 = vmatmul.f32.gmra.mxu0 %v2807
      %v2865 = vpop.f32.mrf.mxu0
      %v2866 = vadd.f32 %v2783, %v2865
      %2867 = vmatmul.f32.gmra.mxu0 %v2810
      %v2868 = vpop.f32.mrf.mxu0
      %v2869 = vadd.f32 %v2783, %v2868
      %2870 = vmatmul.f32.gmra.mxu0 %v2813
      %v2871 = vpop.f32.mrf.mxu0
      %v2872 = vadd.f32 %v2783, %v2871
      %2873 = vmatmul.f32.gmra.mxu0 %v2816
      %v2874 = vpop.f32.mrf.mxu0
      %v2875 = vadd.f32 %v2783, %v2874
      %2876 = vmatmul.f32.gmra.mxu0 %v2819
      %v2877 = vpop.f32.mrf.mxu0
      %v2878 = vadd.f32 %v2783, %v2877
      %2879 = vmatmul.f32.gmra.mxu0 %v2822
      %v2880 = vpop.f32.mrf.mxu0
      %v2881 = vadd.f32 %v2783, %v2880
      %2882 = vdwg.mxu0
      %2896 = vrot.lane.b32.xlu0 %v2845, 2
      %v2897 = vpop.permute.xlu0 %2896
      %2898 = vrot.lane.b32.xlu0 %v2848, 2
      %v2899 = vpop.permute.xlu0 %2898
      %2900 = vrot.lane.b32.xlu0 %v2851, 2
      %v2901 = vpop.permute.xlu0 %2900
      %2902 = vrot.lane.b32.xlu0 %v2854, 2
      %v2903 = vpop.permute.xlu0 %2902
      %2904 = vrot.lane.b32.xlu0 %v2857, 2
      %v2905 = vpop.permute.xlu0 %2904
      %2906 = vrot.lane.b32.xlu0 %v2860, 2
      %v2907 = vpop.permute.xlu0 %2906
      %2908 = vrot.lane.b32.xlu0 %v2863, 2
      %v2909 = vpop.permute.xlu0 %2908
      %2910 = vrot.lane.b32.xlu0 %v2866, 2
      %v2911 = vpop.permute.xlu0 %2910
      %2912 = vrot.lane.b32.xlu0 %v2869, 2
      %v2913 = vpop.permute.xlu0 %2912
      %2914 = vrot.lane.b32.xlu0 %v2872, 2
      %v2915 = vpop.permute.xlu0 %2914
      %2916 = vrot.lane.b32.xlu0 %v2875, 2
      %v2917 = vpop.permute.xlu0 %2916
      %2918 = vrot.lane.b32.xlu0 %v2878, 2
      %v2919 = vpop.permute.xlu0 %2918
      %2920 = vrot.lane.b32.xlu0 %v2881, 2
      %v2921 = vpop.permute.xlu0 %2920
      %v2935 = vsel %vm506, %v2629, %v2897
      %v2936 = vsel %vm506, %v2632, %v2899
      %v2937 = vsel %vm506, %v2635, %v2901
      %v2938 = vsel %vm506, %v2638, %v2903
      %v2939 = vsel %vm506, %v2641, %v2905
      %v2940 = vsel %vm506, %v2644, %v2907
      %v2941 = vsel %vm506, %v2647, %v2909
      %v2942 = vsel %vm506, %v2650, %v2911
      %v2943 = vsel %vm506, %v2653, %v2913
      %v2944 = vsel %vm506, %v2656, %v2915
      %v2945 = vsel %vm506, %v2659, %v2917
      %v2946 = vsel %vm506, %v2662, %v2919
      %v2947 = vsel %vm506, %v2665, %v2921
      %v2948 = vld [vmem:[%s11] sm:$0xff]
      %v2949 = vld [vmem:[%s11 + $0x8] sm:$0xff]
      %v2950 = vld [vmem:[%s11 + $0x10] sm:$0xff]
      %v2951 = vld [vmem:[%s11 + $0x18] sm:$0xff]
      %v2952 = vld [vmem:[%s11 + $0x20] sm:$0xff]
      %v2953 = vld [vmem:[%s11 + $0x28] sm:$0xff]
      %v2954 = vld [vmem:[%s11 + $0x30] sm:$0xff]
      %v2955 = vld [vmem:[%s11 + $0x38] sm:$0xff]
      %v2956 = vld [vmem:[%s11 + $0x40] sm:$0xff]
      %v2957 = vld [vmem:[%s11 + $0x48] sm:$0xff]
      %v2958 = vld [vmem:[%s11 + $0x50] sm:$0xff]
      %v2959 = vld [vmem:[%s11 + $0x58] sm:$0xff]
      %v2960 = vld [vmem:[%s11 + $0x60] sm:$0xff]
      %v2961 = vld [vmem:[%s11 + $0x68] sm:$0xff]
      %v2962 = vld [vmem:[%s11 + $0x70] sm:$0xff]
      %v2963 = vld [vmem:[%s11 + $0x78] sm:$0xff]
      %v2964 = vld [vmem:[%s11 + $0x80] sm:$0xff]
      %v2965 = vld [vmem:[%s11 + $0x88] sm:$0xff]
      %v2966 = vld [vmem:[%s11 + $0x90] sm:$0xff]
      %v2967 = vld [vmem:[%s11 + $0x98] sm:$0xff]
      %v2968 = vld [vmem:[%s11 + $0xa0] sm:$0xff]
      %v2969 = vld [vmem:[%s11 + $0xa8] sm:$0xff]
      %v2970 = vld [vmem:[%s11 + $0xb0] sm:$0xff]
      %v2971 = vld [vmem:[%s11 + $0xb8] sm:$0xff]
      %v2972 = vld [vmem:[%s11 + $0xc0] sm:$0xff]
      %v2974 = vsel %vm2400, %v2948, 0
      %v2977 = vsel %vm2400, %v2949, 0
      %v2980 = vsel %vm2400, %v2950, 0
      %v2983 = vsel %vm2400, %v2951, 0
      %v2986 = vsel %vm2400, %v2952, 0
      %v2989 = vsel %vm2400, %v2953, 0
      %v2992 = vsel %vm2400, %v2954, 0
      %v2995 = vsel %vm2400, %v2955, 0
      %v2998 = vsel %vm2400, %v2956, 0
      %v3001 = vsel %vm2400, %v2957, 0
      %v3004 = vsel %vm2400, %v2958, 0
      %v3007 = vsel %vm2400, %v2959, 0
      %v3010 = vsel %vm2400, %v2960, 0
      %v3013 = vsel %vm2400, %v2961, 0
      %v3016 = vsel %vm2400, %v2962, 0
      %v3019 = vsel %vm2400, %v2963, 0
      %v3022 = vsel %vm2400, %v2964, 0
      %v3025 = vsel %vm2400, %v2965, 0
      %v3028 = vsel %vm2400, %v2966, 0
      %v3031 = vsel %vm2400, %v2967, 0
      %v3034 = vsel %vm2400, %v2968, 0
      %v3037 = vsel %vm2400, %v2969, 0
      %v3040 = vsel %vm2400, %v2970, 0
      %v3043 = vsel %vm2400, %v2971, 0
      %v3046 = vsel %vm2400, %v2972, 0
      %v3049 = vsel %vm2278, %v2947, 0
      %3051 = vmatpush.msra.mxu0 0.0
      %3052 = vmatpush.msra.mxu0 0.0
      %3053 = vmatpush.msra.mxu0 0.0
      %3054 = vmatpush.msra.mxu0 %v3049
      %3055 = vmatpush.msra.mxu0 %v2946
      %3056 = vmatpush.msra.mxu0 %v2945
      %3057 = vmatpush.msra.mxu0 %v2944
      %3058 = vmatpush.msra.mxu0 %v2943
      %3059 = vmatpush.msra.mxu0 %v2942
      %3060 = vmatpush.msra.mxu0 %v2941
      %3061 = vmatpush.msra.mxu0 %v2940
      %3062 = vmatpush.msra.mxu0 %v2939
      %3063 = vmatpush.msra.mxu0 %v2938
      %3064 = vmatpush.msra.mxu0 %v2937
      %3065 = vmatpush.msra.mxu0 %v2936
      %3066 = vmatpush.msra.mxu0 %v2935
      %3067 = vmatmul.f32.gmra.mxu0 %v2974
      %v3068 = vpop.f32.mrf.mxu0
      %v3069 = vadd.f32 0.0, %v3068
      %3070 = vmatmul.f32.gmra.mxu0 %v2977
      %v3071 = vpop.f32.mrf.mxu0
      %v3072 = vadd.f32 0.0, %v3071
      %3073 = vmatmul.f32.gmra.mxu0 %v2980
      %v3074 = vpop.f32.mrf.mxu0
      %v3075 = vadd.f32 0.0, %v3074
      %3076 = vmatmul.f32.gmra.mxu0 %v2983
      %v3077 = vpop.f32.mrf.mxu0
      %v3078 = vadd.f32 0.0, %v3077
      %3079 = vmatmul.f32.gmra.mxu0 %v2986
      %v3080 = vpop.f32.mrf.mxu0
      %v3081 = vadd.f32 0.0, %v3080
      %3082 = vmatmul.f32.gmra.mxu0 %v2989
      %v3083 = vpop.f32.mrf.mxu0
      %v3084 = vadd.f32 0.0, %v3083
      %3085 = vmatmul.f32.gmra.mxu0 %v2992
      %v3086 = vpop.f32.mrf.mxu0
      %v3087 = vadd.f32 0.0, %v3086
      %3088 = vmatmul.f32.gmra.mxu0 %v2995
      %v3089 = vpop.f32.mrf.mxu0
      %v3090 = vadd.f32 0.0, %v3089
      %3091 = vmatmul.f32.gmra.mxu0 %v2998
      %v3092 = vpop.f32.mrf.mxu0
      %v3093 = vadd.f32 0.0, %v3092
      %3094 = vmatmul.f32.gmra.mxu0 %v3001
      %v3095 = vpop.f32.mrf.mxu0
      %v3096 = vadd.f32 0.0, %v3095
      %3097 = vmatmul.f32.gmra.mxu0 %v3004
      %v3098 = vpop.f32.mrf.mxu0
      %v3099 = vadd.f32 0.0, %v3098
      %3100 = vmatmul.f32.gmra.mxu0 %v3007
      %v3101 = vpop.f32.mrf.mxu0
      %v3102 = vadd.f32 0.0, %v3101
      %3103 = vmatmul.f32.gmra.mxu0 %v3010
      %v3104 = vpop.f32.mrf.mxu0
      %v3105 = vadd.f32 0.0, %v3104
      %3106 = vmatmul.f32.gmra.mxu0 %v3013
      %v3107 = vpop.f32.mrf.mxu0
      %v3108 = vadd.f32 0.0, %v3107
      %3109 = vmatmul.f32.gmra.mxu0 %v3016
      %v3110 = vpop.f32.mrf.mxu0
      %v3111 = vadd.f32 0.0, %v3110
      %3112 = vmatmul.f32.gmra.mxu0 %v3019
      %v3113 = vpop.f32.mrf.mxu0
      %v3114 = vadd.f32 0.0, %v3113
      %3115 = vmatmul.f32.gmra.mxu0 %v3022
      %v3116 = vpop.f32.mrf.mxu0
      %v3117 = vadd.f32 0.0, %v3116
      %3118 = vmatmul.f32.gmra.mxu0 %v3025
      %v3119 = vpop.f32.mrf.mxu0
      %v3120 = vadd.f32 0.0, %v3119
      %3121 = vmatmul.f32.gmra.mxu0 %v3028
      %v3122 = vpop.f32.mrf.mxu0
      %v3123 = vadd.f32 0.0, %v3122
      %3124 = vmatmul.f32.gmra.mxu0 %v3031
      %v3125 = vpop.f32.mrf.mxu0
      %v3126 = vadd.f32 0.0, %v3125
      %3127 = vmatmul.f32.gmra.mxu0 %v3034
      %v3128 = vpop.f32.mrf.mxu0
      %v3129 = vadd.f32 0.0, %v3128
      %3130 = vmatmul.f32.gmra.mxu0 %v3037
      %v3131 = vpop.f32.mrf.mxu0
      %v3132 = vadd.f32 0.0, %v3131
      %3133 = vmatmul.f32.gmra.mxu0 %v3040
      %v3134 = vpop.f32.mrf.mxu0
      %v3135 = vadd.f32 0.0, %v3134
      %3136 = vmatmul.f32.gmra.mxu0 %v3043
      %v3137 = vpop.f32.mrf.mxu0
      %v3138 = vadd.f32 0.0, %v3137
      %3139 = vmatmul.f32.gmra.mxu0 %v3046
      %v3140 = vpop.f32.mrf.mxu0
      %v3141 = vadd.f32 0.0, %v3140
      %3142 = vdwg.mxu0
      %3168 = vrot.lane.b32.xlu0 %v2300, 8
      %v3169 = vpop.permute.xlu0 %3168
      %3170 = vrot.lane.b32.xlu0 %v2303, 8
      %v3171 = vpop.permute.xlu0 %3170
      %3172 = vrot.lane.b32.xlu0 %v2306, 8
      %v3173 = vpop.permute.xlu0 %3172
      %3174 = vrot.lane.b32.xlu0 %v2309, 8
      %v3175 = vpop.permute.xlu0 %3174
      %3176 = vrot.lane.b32.xlu0 %v2312, 8
      %v3177 = vpop.permute.xlu0 %3176
      %3178 = vrot.lane.b32.xlu0 %v2315, 8
      %v3179 = vpop.permute.xlu0 %3178
      %3180 = vrot.lane.b32.xlu0 %v2318, 8
      %v3181 = vpop.permute.xlu0 %3180
      %3182 = vrot.lane.b32.xlu0 %v2321, 8
      %v3183 = vpop.permute.xlu0 %3182
      %3184 = vrot.lane.b32.xlu0 %v2324, 8
      %v3185 = vpop.permute.xlu0 %3184
      %3186 = vrot.lane.b32.xlu0 %v2327, 8
      %v3187 = vpop.permute.xlu0 %3186
      %3188 = vrot.lane.b32.xlu0 %v2330, 8
      %v3189 = vpop.permute.xlu0 %3188
      %3190 = vrot.lane.b32.xlu0 %v2333, 8
      %v3191 = vpop.permute.xlu0 %3190
      %3192 = vrot.lane.b32.xlu0 %v2336, 8
      %v3193 = vpop.permute.xlu0 %3192
      %3194 = vrot.lane.b32.xlu0 %v2339, 8
      %v3195 = vpop.permute.xlu0 %3194
      %3196 = vrot.lane.b32.xlu0 %v2342, 8
      %v3197 = vpop.permute.xlu0 %3196
      %3198 = vrot.lane.b32.xlu0 %v2345, 8
      %v3199 = vpop.permute.xlu0 %3198
      %3200 = vrot.lane.b32.xlu0 %v2348, 8
      %v3201 = vpop.permute.xlu0 %3200
      %3202 = vrot.lane.b32.xlu0 %v2351, 8
      %v3203 = vpop.permute.xlu0 %3202
      %3204 = vrot.lane.b32.xlu0 %v2354, 8
      %v3205 = vpop.permute.xlu0 %3204
      %3206 = vrot.lane.b32.xlu0 %v2357, 8
      %v3207 = vpop.permute.xlu0 %3206
      %3208 = vrot.lane.b32.xlu0 %v2360, 8
      %v3209 = vpop.permute.xlu0 %3208
      %3210 = vrot.lane.b32.xlu0 %v2363, 8
      %v3211 = vpop.permute.xlu0 %3210
      %3212 = vrot.lane.b32.xlu0 %v2366, 8
      %v3213 = vpop.permute.xlu0 %3212
      %3214 = vrot.lane.b32.xlu0 %v2369, 8
      %v3215 = vpop.permute.xlu0 %3214
      %3216 = vrot.lane.b32.xlu0 %v2372, 8
      %v3217 = vpop.permute.xlu0 %3216
      %3268 = vrot.lane.b32.xlu0 %v3069, 12
      %v3269 = vpop.permute.xlu0 %3268
      %3270 = vrot.lane.b32.xlu0 %v3072, 12
      %v3271 = vpop.permute.xlu0 %3270
      %3272 = vrot.lane.b32.xlu0 %v3075, 12
      %v3273 = vpop.permute.xlu0 %3272
      %3274 = vrot.lane.b32.xlu0 %v3078, 12
      %v3275 = vpop.permute.xlu0 %3274
      %3276 = vrot.lane.b32.xlu0 %v3081, 12
      %v3277 = vpop.permute.xlu0 %3276
      %3278 = vrot.lane.b32.xlu0 %v3084, 12
      %v3279 = vpop.permute.xlu0 %3278
      %3280 = vrot.lane.b32.xlu0 %v3087, 12
      %v3281 = vpop.permute.xlu0 %3280
      %3282 = vrot.lane.b32.xlu0 %v3090, 12
      %v3283 = vpop.permute.xlu0 %3282
      %3284 = vrot.lane.b32.xlu0 %v3093, 12
      %v3285 = vpop.permute.xlu0 %3284
      %3286 = vrot.lane.b32.xlu0 %v3096, 12
      %v3287 = vpop.permute.xlu0 %3286
      %3288 = vrot.lane.b32.xlu0 %v3099, 12
      %v3289 = vpop.permute.xlu0 %3288
      %3290 = vrot.lane.b32.xlu0 %v3102, 12
      %v3291 = vpop.permute.xlu0 %3290
      %3292 = vrot.lane.b32.xlu0 %v3105, 12
      %v3293 = vpop.permute.xlu0 %3292
      %3294 = vrot.lane.b32.xlu0 %v3108, 12
      %v3295 = vpop.permute.xlu0 %3294
      %3296 = vrot.lane.b32.xlu0 %v3111, 12
      %v3297 = vpop.permute.xlu0 %3296
      %3298 = vrot.lane.b32.xlu0 %v3114, 12
      %v3299 = vpop.permute.xlu0 %3298
      %3300 = vrot.lane.b32.xlu0 %v3117, 12
      %v3301 = vpop.permute.xlu0 %3300
      %3302 = vrot.lane.b32.xlu0 %v3120, 12
      %v3303 = vpop.permute.xlu0 %3302
      %3304 = vrot.lane.b32.xlu0 %v3123, 12
      %v3305 = vpop.permute.xlu0 %3304
      %3306 = vrot.lane.b32.xlu0 %v3126, 12
      %v3307 = vpop.permute.xlu0 %3306
      %3308 = vrot.lane.b32.xlu0 %v3129, 12
      %v3309 = vpop.permute.xlu0 %3308
      %3310 = vrot.lane.b32.xlu0 %v3132, 12
      %v3311 = vpop.permute.xlu0 %3310
      %3312 = vrot.lane.b32.xlu0 %v3135, 12
      %v3313 = vpop.permute.xlu0 %3312
      %3314 = vrot.lane.b32.xlu0 %v3138, 12
      %v3315 = vpop.permute.xlu0 %3314
      %3316 = vrot.lane.b32.xlu0 %v3141, 12
      %v3317 = vpop.permute.xlu0 %3316
      %vm3343 = vcmask 64512
      %v3344 = vsel %vm3343, %v1691, %v3169
      %v3345 = vsel %vm3343, %v1694, %v3171
      %v3346 = vsel %vm3343, %v1697, %v3173
      %v3347 = vsel %vm3343, %v1700, %v3175
      %v3348 = vsel %vm3343, %v1703, %v3177
      %v3349 = vsel %vm3343, %v1706, %v3179
      %v3350 = vsel %vm3343, %v1709, %v3181
      %v3351 = vsel %vm3343, %v1712, %v3183
      %v3352 = vsel %vm3343, %v1715, %v3185
      %v3353 = vsel %vm3343, %v1718, %v3187
      %v3354 = vsel %vm3343, %v1721, %v3189
      %v3355 = vsel %vm3343, %v1724, %v3191
      %v3356 = vsel %vm3343, %v1727, %v3193
      %v3357 = vsel %vm3343, %v1730, %v3195
      %v3358 = vsel %vm3343, %v1733, %v3197
      %v3359 = vsel %vm3343, %v1736, %v3199
      %v3360 = vsel %vm3343, %v1739, %v3201
      %v3361 = vsel %vm3343, %v1742, %v3203
      %v3362 = vsel %vm3343, %v1745, %v3205
      %v3363 = vsel %vm3343, %v1748, %v3207
      %v3364 = vsel %vm3343, %v1751, %v3209
      %v3365 = vsel %vm3343, %v1754, %v3211
      %v3366 = vsel %vm3343, %v1757, %v3213
      %v3367 = vsel %vm3343, %v1760, %v3215
      %v3368 = vsel %vm3343, %v1763, %v3217
      %vm3369 = vcmask 97280
      %v3370 = vsel %vm3369, %v3344, %v3269
      %v3371 = vsel %vm3369, %v3345, %v3271
      %v3372 = vsel %vm3369, %v3346, %v3273
      %v3373 = vsel %vm3369, %v3347, %v3275
      %v3374 = vsel %vm3369, %v3348, %v3277
      %v3375 = vsel %vm3369, %v3349, %v3279
      %v3376 = vsel %vm3369, %v3350, %v3281
      %v3377 = vsel %vm3369, %v3351, %v3283
      %v3378 = vsel %vm3369, %v3352, %v3285
      %v3379 = vsel %vm3369, %v3353, %v3287
      %v3380 = vsel %vm3369, %v3354, %v3289
      %v3381 = vsel %vm3369, %v3355, %v3291
      %v3382 = vsel %vm3369, %v3356, %v3293
      %v3383 = vsel %vm3369, %v3357, %v3295
      %v3384 = vsel %vm3369, %v3358, %v3297
      %v3385 = vsel %vm3369, %v3359, %v3299
      %v3386 = vsel %vm3369, %v3360, %v3301
      %v3387 = vsel %vm3369, %v3361, %v3303
      %v3388 = vsel %vm3369, %v3362, %v3305
      %v3389 = vsel %vm3369, %v3363, %v3307
      %v3390 = vsel %vm3369, %v3364, %v3309
      %v3391 = vsel %vm3369, %v3365, %v3311
      %v3392 = vsel %vm3369, %v3366, %v3313
      %v3393 = vsel %vm3369, %v3367, %v3315
      %v3394 = vsel %vm3369, %v3368, %v3317
      %v3395 = vld [vmem:[%s7] sm:$0xff]
      %v3396 = vld [vmem:[%s7 + $0x8] sm:$0xff]
      %v3397 = vld [vmem:[%s7 + $0x10] sm:$0xff]
      %v3398 = vld [vmem:[%s7 + $0x18] sm:$0xff]
      %v3399 = vld [vmem:[%s7 + $0x20] sm:$0xff]
      %v3400 = vld [vmem:[%s7 + $0x28] sm:$0xff]
      %v3401 = vld [vmem:[%s7 + $0x30] sm:$0xff]
      %v3402 = vld [vmem:[%s7 + $0x38] sm:$0xff]
      %v3403 = vld [vmem:[%s7 + $0x40] sm:$0xff]
      %v3404 = vld [vmem:[%s7 + $0x48] sm:$0xff]
      %v3405 = vld [vmem:[%s7 + $0x50] sm:$0xff]
      %v3406 = vld [vmem:[%s7 + $0x58] sm:$0xff]
      %v3407 = vld [vmem:[%s7 + $0x60] sm:$0xff]
      %v3408 = vld [vmem:[%s7 + $0x68] sm:$0xff]
      %v3409 = vld [vmem:[%s7 + $0x70] sm:$0xff]
      %v3410 = vld [vmem:[%s7 + $0x78] sm:$0xff]
      %v3411 = vld [vmem:[%s7 + $0x80] sm:$0xff]
      %v3412 = vld [vmem:[%s7 + $0x88] sm:$0xff]
      %v3413 = vld [vmem:[%s7 + $0x90] sm:$0xff]
      %v3414 = vld [vmem:[%s7 + $0x98] sm:$0xff]
      %v3415 = vld [vmem:[%s7 + $0xa0] sm:$0xff]
      %v3416 = vld [vmem:[%s7 + $0xa8] sm:$0xff]
      %v3417 = vld [vmem:[%s7 + $0xb0] sm:$0xff]
      %v3418 = vld [vmem:[%s7 + $0xb8] sm:$0xff]
      %v3419 = vld [vmem:[%s7 + $0xc0] sm:$0xff]
      %v3420 = vadd.f32 %v3370, %v3395
      %v3421 = vadd.f32 %v3371, %v3396
      %v3422 = vadd.f32 %v3372, %v3397
      %v3423 = vadd.f32 %v3373, %v3398
      %v3424 = vadd.f32 %v3374, %v3399
      %v3425 = vadd.f32 %v3375, %v3400
      %v3426 = vadd.f32 %v3376, %v3401
      %v3427 = vadd.f32 %v3377, %v3402
      %v3428 = vadd.f32 %v3378, %v3403
      %v3429 = vadd.f32 %v3379, %v3404
      %v3430 = vadd.f32 %v3380, %v3405
      %v3431 = vadd.f32 %v3381, %v3406
      %v3432 = vadd.f32 %v3382, %v3407
      %v3433 = vadd.f32 %v3383, %v3408
      %v3434 = vadd.f32 %v3384, %v3409
      %v3435 = vadd.f32 %v3385, %v3410
      %v3436 = vadd.f32 %v3386, %v3411
      %v3437 = vadd.f32 %v3387, %v3412
      %v3438 = vadd.f32 %v3388, %v3413
      %v3439 = vadd.f32 %v3389, %v3414
      %v3440 = vadd.f32 %v3390, %v3415
      %v3441 = vadd.f32 %v3391, %v3416
      %v3442 = vadd.f32 %v3392, %v3417
      %v3443 = vadd.f32 %v3393, %v3418
      %v3444 = vadd.f32 %v3394, %v3419
      %vm3445 = vcmask 130048
      %3446 = vst.msk [vmem:[%s474] sm:$0xff] %vm3445, %v3420
      %3447 = vst.msk [vmem:[%s474 + $0x8] sm:$0xff] %vm3445, %v3421
      %3448 = vst.msk [vmem:[%s474 + $0x10] sm:$0xff] %vm3445, %v3422
      %3449 = vst.msk [vmem:[%s474 + $0x18] sm:$0xff] %vm3445, %v3423
      %3450 = vst.msk [vmem:[%s474 + $0x20] sm:$0xff] %vm3445, %v3424
      %3451 = vst.msk [vmem:[%s474 + $0x28] sm:$0xff] %vm3445, %v3425
      %3452 = vst.msk [vmem:[%s474 + $0x30] sm:$0xff] %vm3445, %v3426
      %3453 = vst.msk [vmem:[%s474 + $0x38] sm:$0xff] %vm3445, %v3427
      %3454 = vst.msk [vmem:[%s474 + $0x40] sm:$0xff] %vm3445, %v3428
      %3455 = vst.msk [vmem:[%s474 + $0x48] sm:$0xff] %vm3445, %v3429
      %3456 = vst.msk [vmem:[%s474 + $0x50] sm:$0xff] %vm3445, %v3430
      %3457 = vst.msk [vmem:[%s474 + $0x58] sm:$0xff] %vm3445, %v3431
      %3458 = vst.msk [vmem:[%s474 + $0x60] sm:$0xff] %vm3445, %v3432
      %3459 = vst.msk [vmem:[%s474 + $0x68] sm:$0xff] %vm3445, %v3433
      %3460 = vst.msk [vmem:[%s474 + $0x70] sm:$0xff] %vm3445, %v3434
      %3461 = vst.msk [vmem:[%s474 + $0x78] sm:$0xff] %vm3445, %v3435
      %3462 = vst.msk [vmem:[%s474 + $0x80] sm:$0xff] %vm3445, %v3436
      %3463 = vst.msk [vmem:[%s474 + $0x88] sm:$0xff] %vm3445, %v3437
      %3464 = vst.msk [vmem:[%s474 + $0x90] sm:$0xff] %vm3445, %v3438
      %3465 = vst.msk [vmem:[%s474 + $0x98] sm:$0xff] %vm3445, %v3439
      %3466 = vst.msk [vmem:[%s474 + $0xa0] sm:$0xff] %vm3445, %v3440
      %3467 = vst.msk [vmem:[%s474 + $0xa8] sm:$0xff] %vm3445, %v3441
      %3468 = vst.msk [vmem:[%s474 + $0xb0] sm:$0xff] %vm3445, %v3442
      %3469 = vst.msk [vmem:[%s474 + $0xb8] sm:$0xff] %vm3445, %v3443
      %3470 = vst.msk [vmem:[%s474 + $0xc0] sm:$0xff] %vm3445, %v3444
      %p3471 = scmp.lt.s32.totalorder %s24, 1
      %s3472 = scalar_select %p3471, %s24, 1
      %s3473 = smul.addr %s3472, 25
      %s3474 = smul.addr %s3473, 8
      %s3475 = scalar_lea.vmem %s13, %s3474
      // Predicated region
      $region73: #{hohygcn_forward.1} parent=71 // pred_check
        %p3476 = pneg %p330
      $region74: #{hohygcn_forward.1} parent=71 // pred_check_branch
        %3478 = sbr.rel (%p3476) target = $region76
      $region75: #{hohygcn_forward.1} parent=71 // pred_region
        _
      $region76: #{hohygcn_forward.1} parent=71 // pred_fallthru
        _
    $region72: #{hohygcn_forward.1} parent=5 // pred_fallthru
      _
    %p3479 = scmp.le.s32.totalorder 2, %s19
    // Predicated region
    $region77: #{hohygcn_forward.1} parent=5 // pred_check
      %p3480 = pneg %p3479
    $region78: #{hohygcn_forward.1} parent=5 // pred_check_branch
      %3482 = sbr.rel (%p3480) target = $region80
    $region79: #{hohygcn_forward.1} parent=5 // pred_region
      %s3483 = ssub.s32 %s19, 2
      // Predicated region
      $region81: #{hohygcn_forward.1} parent=79 // pred_check
        %p3484 = pneg %p336
      $region82: #{hohygcn_forward.1} parent=79 // pred_check_branch
        %3486 = sbr.rel (%p3484) target = $region84
      $region83: #{hohygcn_forward.1} parent=79 // pred_region
        %p3487 = scmp.lt.s32.totalorder %s25, 1
        %s3488 = scalar_select %p3487, %s25, 1
        %s3489 = smul.addr %s3488, 25
        %s3490 = smul.addr %s3489, 8
        %s3491 = scalar_lea.vmem %s13, %s3490
      $region84: #{hohygcn_forward.1} parent=79 // pred_fallthru
        _
    $region80: #{hohygcn_forward.1} parent=5 // pred_fallthru
      _
  $region6: #{hohygcn_forward.1} parent=0 // loop_footer
    %s23 = sadd.s32 1, %s19
  $region7: #{hohygcn_forward.1} parent=0 // loop_footer_branch
    %18 = sbr.rel target = $region3
  $region8: #{hohygcn_forward.1} parent=0 // loop_exit
    _

</llo_original>
